<compile_context>
chip_gen: v7x
topology: tpu7x:2x2x1
jax: 0.10.0
libtpu: 0.0.40
codegen_flags: <defaults>
</compile_context>

<pallas_src>
import functools

import jax
import jax.numpy as jnp
from jax.experimental import pallas as pl
from jax.experimental.pallas import tpu as pltpu

_LANE = 128     # gate blocks padded to a multiple of the lane width
_SUBLANE = 8    # batch padded to a multiple of the sublane width


def _round_up(x, m):
    return ((x + m - 1) // m) * m


def _gate_block_cols(w_t, h, hp):
    """(rows, 4*h) -> (rows, 4*hp): each of the 4 gates gets a lane-padded block."""
    rows = w_t.shape[0]
    out = jnp.zeros((rows, 4 * hp), w_t.dtype)
    for k in range(4):
        out = out.at[:, k * hp:k * hp + h].set(w_t[:, k * h:(k + 1) * h])
    return out


def _vmem_capacity_bytes():
    try:
        return int(pltpu.get_tpu_info().vmem_capacity_bytes)
    except Exception:
        return 64 * 1024 * 1024   # conservative fallback (v7x per-TC VMEM)


# ----------------------------- Pallas kernel ---------------------------------
def _lstm_recurrent_kernel(gx_ref, whh_hbm_ref, out_ref,
                           whh_vmem, h_scr, c_scr, dma_sem, *,
                           return_sequence, seq_len, chunk_size, padded_len):
    """One chunk of Tc timesteps of the recurrence.

    gx_ref      : (Tc, Bp, 4Hp) bf16  precomputed x @ W_ih^T + bias (gate-blocked)
    whh_hbm_ref : (Hp, 4Hp)     bf16  recurrent weights in HBM (memory_space=ANY)
    out_ref     : (Tc, Bp, Hp)  bf16  per-step h        (return_sequence=True)
                  (Bp, Hp)      f32   final h only      (return_sequence=False)
    whh_vmem    : (Hp, 4Hp)     bf16  single-buffered weight scratch (persists)
    h_scr/c_scr : (Bp, Hp)      f32   state, persists across grid steps
    """
    chunk = pl.program_id(0)
    hp = h_scr.shape[-1]

    @pl.when(chunk == 0)
    def _():
        h_scr[...] = jnp.zeros_like(h_scr)
        c_scr[...] = jnp.zeros_like(c_scr)
        # One-time weight load: invariant operand, no double-buffering.
        cp = pltpu.make_async_copy(whh_hbm_ref, whh_vmem, dma_sem)
        cp.start()
        cp.wait()

    def _sigmoid(x):
        # sigmoid(x) = 0.5*tanh(0.5*x) + 0.5  -> one EUP push instead of exp+divide.
        return 0.5 * jnp.tanh(0.5 * x) + 0.5

    def step(t, carry):
        h = h_scr[...]
        c = c_scr[...]
        gates = gx_ref[t].astype(jnp.float32) + jnp.dot(
            h.astype(whh_vmem.dtype), whh_vmem[...],
            preferred_element_type=jnp.float32)
        # Gate slices are 128-lane-aligned blocks (hp is a multiple of 128).
        i_g = _sigmoid(gates[:, 0 * hp:1 * hp])
        f_g = _sigmoid(gates[:, 1 * hp:2 * hp])
        g_g = jnp.tanh(gates[:, 2 * hp:3 * hp])
        o_g = _sigmoid(gates[:, 3 * hp:4 * hp])
        c_new = f_g * c + i_g * g_g
        h_new = o_g * jnp.tanh(c_new)
        h_scr[...] = h_new
        c_scr[...] = c_new
        if return_sequence:
            out_ref[t] = h_new.astype(out_ref.dtype)
        return carry

    if padded_len == seq_len:
        # Exact fit: static trip count, partial unroll for LLO scheduler visibility.
        jax.lax.fori_loop(0, chunk_size, step, 0, unroll=min(8, chunk_size))
    else:
        # Padded tail: dynamic trip count skips the padded steps entirely
        # (no per-step masking, no wasted matmul/EUP work).
        steps = jnp.minimum(chunk_size, seq_len - chunk * chunk_size)
        jax.lax.fori_loop(0, steps, step, 0)

    if not return_sequence:
        @pl.when(chunk == pl.num_programs(0) - 1)
        def _():
            out_ref[...] = h_scr[...].astype(out_ref.dtype)


def _lstm_recurrence(gx, whh_t, *, seq_len, return_sequence, chunk_size=None):
    """Run the time recurrence over gx (T, Bp, 4Hp) bf16 with recurrent weights whh_t."""
    t_total, bp, g4 = gx.shape
    hp = whh_t.shape[0]

    # --- VMEM budgeting (generation-aware) ---------------------------------
    vmem_cap = _vmem_capacity_bytes()
    # whh (bf16, single buffer) + h/c state (f32)
    fixed_bytes = hp * g4 * 2 + 2 * bp * hp * 4
    # gx chunk double-buffered (bf16) + out chunk double-buffered (bf16) per timestep
    per_step_bytes = 2 * bp * g4 * 2 + (2 * bp * hp * 2 if return_sequence else 0)
    if chunk_size is None:
        budget = int(vmem_cap * 0.7)
        chunk_size = max(1, (budget - fixed_bytes) // per_step_bytes)
        chunk_size = int(min(chunk_size, t_total, 256))
    chunk_size = int(max(1, min(chunk_size, t_total)))
    vmem_limit = fixed_bytes + chunk_size * per_step_bytes + (16 << 20)
    vmem_limit = int(min(max(vmem_limit, 32 << 20), int(vmem_cap * 0.9)))

    n_chunks = -(-t_total // chunk_size)
    t_pad = n_chunks * chunk_size
    if t_pad != t_total:
        gx = jnp.pad(gx, ((0, t_pad - t_total), (0, 0), (0, 0)))

    kernel = functools.partial(
        _lstm_recurrent_kernel,
        return_sequence=return_sequence,
        seq_len=seq_len,
        chunk_size=chunk_size,
        padded_len=t_pad,
    )

    if return_sequence:
        # Inter-layer activations in bf16: halves HBM write+read and the out buffers.
        out_shape = jax.ShapeDtypeStruct((t_pad, bp, hp), jnp.bfloat16)
        out_spec = pl.BlockSpec((chunk_size, bp, hp), lambda c: (c, 0, 0))
    else:
        # Resident accumulator: only the final h is written back to HBM (f32).
        out_shape = jax.ShapeDtypeStruct((bp, hp), jnp.float32)
        out_spec = pl.BlockSpec((bp, hp), lambda c: (0, 0))

    out = pl.pallas_call(
        kernel,
        out_shape=out_shape,
        grid_spec=pltpu.PrefetchScalarGridSpec(
            num_scalar_prefetch=0,
            grid=(n_chunks,),
            in_specs=[
                pl.BlockSpec((chunk_size, bp, g4), lambda c: (c, 0, 0)),  # gx chunk
                pl.BlockSpec(memory_space=pl.ANY),                        # W_hh^T in HBM
            ],
            out_specs=out_spec,
            scratch_shapes=[
                pltpu.VMEM((hp, g4), jnp.bfloat16),   # W_hh^T, single-buffered
                pltpu.VMEM((bp, hp), jnp.float32),    # h state
                pltpu.VMEM((bp, hp), jnp.float32),    # c state
                pltpu.SemaphoreType.DMA(()),          # one-time weight DMA
            ],
        ),
        compiler_params=pltpu.CompilerParams(
            dimension_semantics=("arbitrary",),       # time recurrence is sequential
            vmem_limit_bytes=vmem_limit,
        ),
    )(gx, whh_t)

    if return_sequence and t_pad != seq_len:
        out = out[:seq_len]
    return out


# --------------------------- parameter preparation ---------------------------
def init_lstm_params(key, num_features, hidden_size, num_layers):
    """PyTorch-style init: U(-1/sqrt(H), 1/sqrt(H)) for every tensor."""
    bound = 1.0 / (hidden_size ** 0.5)
    params = []
    for layer in range(num_layers):
        in_dim = num_features if layer == 0 else hidden_size
        key, k1, k2, k3, k4 = jax.random.split(key, 5)
        params.append(dict(
            w_ih=jax.random.uniform(k1, (4 * hidden_size, in_dim),
                                    jnp.float32, -bound, bound),
            w_hh=jax.random.uniform(k2, (4 * hidden_size, hidden_size),
                                    jnp.float32, -bound, bound),
            b_ih=jax.random.uniform(k3, (4 * hidden_size,),
                                    jnp.float32, -bound, bound),
            b_hh=jax.random.uniform(k4, (4 * hidden_size,),
                                    jnp.float32, -bound, bound),
        ))
    return params


def prepare_lstm_params(raw_params, hidden_size):
    """One-time prep: transpose, combine biases, gate-block lane padding, bf16 W_hh."""
    h = hidden_size
    hp = _round_up(h, _LANE)
    layers = []
    for li, p in enumerate(raw_params):
        wih_t = _gate_block_cols(jnp.asarray(p["w_ih"].T, jnp.float32), h, hp)
        if li > 0:  # input of layers > 0 is the previous layer's Hp-padded h
            wih_t = jnp.zeros((hp, 4 * hp), jnp.float32).at[:h].set(wih_t)
        whh_t = _gate_block_cols(jnp.asarray(p["w_hh"].T, jnp.float32), h, hp)
        whh_t = jnp.zeros((hp, 4 * hp), jnp.float32).at[:h].set(whh_t)
        bias = _gate_block_cols(
            (p["b_ih"] + p["b_hh"]).astype(jnp.float32).reshape(1, 4 * h), h, hp
        ).reshape(4 * hp)
        layers.append(dict(
            wih_t=wih_t,                               # f32, used in the big XLA matmul
            whh_t=whh_t.astype(jnp.bfloat16),          # bf16 recurrent weights
            bias=bias,                                 # f32
        ))
    return layers


# --------------------------------- forward -----------------------------------
def lstm_processor_forward(x, layers, *, hidden_size, time_chunk=None):
    """LSTM_Processor.forward: stacked LSTM -> output[:, -1, :]. x: (B, T, F)."""
    b, t, _ = x.shape
    h = hidden_size
    hp = layers[0]["whh_t"].shape[0]
    bp = _round_up(max(b, 1), _SUBLANE)

    # Time-major + sublane-padded batch: (T, Bp, F)
    layer_in = jnp.swapaxes(x.astype(jnp.float32), 0, 1)
    if bp != b:
        layer_in = jnp.pad(layer_in, ((0, 0), (0, bp - b), (0, 0)))

    n_layers = len(layers)
    for li, p in enumerate(layers):
        # Hoisted input projection: one big (T*Bp, Fin) x (Fin, 4Hp) matmul in XLA.
        # Stored in bf16: dominant HBM stream + gx double-buffer are halved.
        gx = (jnp.einsum("tbf,fg->tbg", layer_in, p["wih_t"],
                         preferred_element_type=jnp.float32)
              + p["bias"]).astype(jnp.bfloat16)
        is_top = li == n_layers - 1
        layer_in = _lstm_recurrence(gx, p["whh_t"], seq_len=t,
                                    return_sequence=not is_top,
                                    chunk_size=time_chunk)

    last_h = layer_in                      # (Bp, Hp) f32: final hidden state of top layer
    # TODO(synk): self.fc is undefined in the reference __init__; omitted.
    return last_h[:b, :h]


# ---------------- pure-JAX reference (correctness check only) ----------------
def _lstm_layer_ref(x, w_ih, w_hh, b_ih, b_hh):
    B, T, F = x.shape
    H = w_hh.shape[1]

    def step(carry, x_t):
        h, c = carry
        gates = x_t @ w_ih.T + h @ w_hh.T + b_ih + b_hh
        i_g = jax.nn.sigmoid(gates[:, 0 * H:1 * H])
        f_g = jax.nn.sigmoid(gates[:, 1 * H:2 * H])
        g_g = jnp.tanh(gates[:, 2 * H:3 * H])
        o_g = jax.nn.sigmoid(gates[:, 3 * H:4 * H])
        c_new = f_g * c + i_g * g_g
        h_new = o_g * jnp.tanh(c_new)
        return (h_new, c_new), h_new

    init = (jnp.zeros((B, H), jnp.float32), jnp.zeros((B, H), jnp.float32))
    _, ys = jax.lax.scan(step, init, jnp.swapaxes(x, 0, 1))
    return jnp.swapaxes(ys, 0, 1)


def _forward_ref(x, params):
    out = x
    for p in params:
        out = _lstm_layer_ref(out, p["w_ih"], p["w_hh"], p["b_ih"], p["b_hh"])
    return out[:, -1, :]


if __name__ == "__main__":
    batch, seq, num_features, hidden_size, num_layers = 2, 8, 16, 32, 2

    key = jax.random.PRNGKey(0)
    key, kx = jax.random.split(key)
    x = jax.random.normal(kx, (batch, seq, num_features), jnp.float32)

    raw_params = init_lstm_params(key, num_features, hidden_size, num_layers)
    prepared = prepare_lstm_params(raw_params, hidden_size)

    fwd = jax.jit(functools.partial(lstm_processor_forward, hidden_size=hidden_size))
    out = jax.block_until_ready(fwd(x, prepared))
    ref = jax.block_until_ready(_forward_ref(x, raw_params))
    assert out.shape == (batch, hidden_size)
    # bf16 W_hh / bf16 gx / bf16 inter-layer h (f32 accumulation + f32 resident state)
    # -> relaxed tolerance vs the f32 reference.
    assert jnp.allclose(out, ref, atol=5e-2, rtol=5e-2), "mismatch vs JAX reference"

    # Also exercise the multi-chunk path with a padded tail (T % Tc != 0):
    # chunks 0,1 take the static unrolled loop, the last chunk the dynamic-trip loop.
    seq2 = 20
    key, kx2 = jax.random.split(key)
    x2 = jax.random.normal(kx2, (batch, seq2, num_features), jnp.float32)
    fwd2 = jax.jit(functools.partial(lstm_processor_forward,
                                     hidden_size=hidden_size, time_chunk=8))
    out2 = jax.block_until_ready(fwd2(x2, prepared))
    ref2 = jax.block_until_ready(_forward_ref(x2, raw_params))
    assert out2.shape == (batch, hidden_size)
    assert jnp.allclose(out2, ref2, atol=5e-2, rtol=5e-2), "mismatch (chunked path)"

    print("KERNEL_OK")
</pallas_src>

<mosaic_0001>
module attributes {stable_mosaic.version = 11 : i64} {
  func.func @_lstm_recurrent_kernel(%arg0: i32, %arg1: memref<8x8x512xbf16, #tpu.memory_space<vmem>>, %arg2: memref<128x512xbf16, #tpu.memory_space<any>>, %arg3: memref<8x8x128xbf16, #tpu.memory_space<vmem>>, %arg4: memref<128x512xbf16, #tpu.memory_space<vmem>>, %arg5: memref<8x128xf32, #tpu.memory_space<vmem>>, %arg6: memref<8x128xf32, #tpu.memory_space<vmem>>, %arg7: memref<!tpu.dma_semaphore, #tpu.memory_space<semaphore_mem>>) attributes {dimension_semantics = [#tpu.dimension_semantics<arbitrary>], iteration_bounds = array<i64: 1>, scalar_prefetch = 0 : i64, scratch_operands = 4 : i64, tpu.core_type = #tpu.core_type<tc>, window_params = [{transform_indices = @transform_0, window_bounds = array<i64: 8, 8, 512>}, {}, {transform_indices = @transform_2, window_bounds = array<i64: 8, 8, 128>}]} {
    %c0_i32 = arith.constant 0 : i32
    %0 = arith.cmpi eq, %arg0, %c0_i32 : i32
    %1 = arith.extui %0 : i1 to i32
    %c0_i32_0 = arith.constant 0 : i32
    %2 = arith.cmpi ne, %1, %c0_i32_0 : i32
    scf.if %2 {
      %cst_192 = arith.constant 0.000000e+00 : f32
      %387 = vector.broadcast %cst_192 : f32 to vector<8x128xf32>
      %c0_193 = arith.constant 0 : index
      %c0_194 = arith.constant 0 : index
      %388 = vector.load %arg5[%c0_193, %c0_194] : memref<8x128xf32, #tpu.memory_space<vmem>>, vector<8x128xf32>
      tpu.vector_store %arg5[%c0_193, %c0_194], %387 {strides = array<i32>} : memref<8x128xf32, #tpu.memory_space<vmem>>, vector<8x128xf32>,
      %cst_195 = arith.constant 0.000000e+00 : f32
      %389 = vector.broadcast %cst_195 : f32 to vector<8x128xf32>
      %c0_196 = arith.constant 0 : index
      %c0_197 = arith.constant 0 : index
      %390 = vector.load %arg6[%c0_196, %c0_197] : memref<8x128xf32, #tpu.memory_space<vmem>>, vector<8x128xf32>
      tpu.vector_store %arg6[%c0_196, %c0_197], %389 {strides = array<i32>} : memref<8x128xf32, #tpu.memory_space<vmem>>, vector<8x128xf32>,
      tpu.enqueue_dma source(%arg2 : memref<128x512xbf16, #tpu.memory_space<any>>) target(%arg4 : memref<128x512xbf16, #tpu.memory_space<vmem>>) target_semaphore(%arg7 : memref<!tpu.dma_semaphore, #tpu.memory_space<semaphore_mem>>)
      tpu.wait_dma2 semaphore(%arg7 : memref<!tpu.dma_semaphore, #tpu.memory_space<semaphore_mem>>) src(%arg2 : memref<128x512xbf16, #tpu.memory_space<any>>) dst(%arg4 : memref<128x512xbf16, #tpu.memory_space<vmem>>)
    } else {
    }
    %c0_i32_1 = arith.constant 0 : i32
    %c0 = arith.constant 0 : index
    %c0_2 = arith.constant 0 : index
    %3 = vector.load %arg5[%c0, %c0_2] : memref<8x128xf32, #tpu.memory_space<vmem>>, vector<8x128xf32>
    %c0_3 = arith.constant 0 : index
    %c0_4 = arith.constant 0 : index
    %4 = vector.load %arg6[%c0_3, %c0_4] : memref<8x128xf32, #tpu.memory_space<vmem>>, vector<8x128xf32>
    %5 = arith.index_cast %c0_i32_1 : i32 to index
    %c0_5 = arith.constant 0 : index
    %c0_6 = arith.constant 0 : index
    %6 = vector.load %arg1[%5, %c0_5, %c0_6] : memref<8x8x512xbf16, #tpu.memory_space<vmem>>, vector<1x8x512xbf16>
    %7 = vector.shape_cast %6 : vector<1x8x512xbf16> to vector<8x512xbf16>
    %8 = arith.extf %7 : vector<8x512xbf16> to vector<8x512xf32>
    %9 = arith.truncf %3 : vector<8x128xf32> to vector<8x128xbf16>
    %c0_7 = arith.constant 0 : index
    %c0_8 = arith.constant 0 : index
    %10 = vector.load %arg4[%c0_7, %c0_8] : memref<128x512xbf16, #tpu.memory_space<vmem>>, vector<128x512xbf16>
    %cst = arith.constant dense<0.000000e+00> : vector<8x512xf32>
    %11 = tpu.matmul %9, %10, %cst {dimension_numbers = #tpu.dot_dimension_numbers<[1], [0], [0], [1], [0, 0, 1, 1], [], []>} : vector<8x128xbf16>, vector<128x512xbf16>, vector<8x512xf32> -> vector<8x512xf32>
    %12 = arith.addf %8, %11 : vector<8x512xf32>
    %13 = vector.extract_strided_slice %12 {offsets = [0, 0], sizes = [8, 128], strides = [1, 1]} : vector<8x512xf32> to vector<8x128xf32>
    %cst_9 = arith.constant 5.000000e-01 : f32
    %14 = vector.broadcast %cst_9 : f32 to vector<8x128xf32>
    %15 = arith.mulf %14, %13 : vector<8x128xf32>
    %16 = math.tanh %15 : vector<8x128xf32>
    %cst_10 = arith.constant 5.000000e-01 : f32
    %17 = vector.broadcast %cst_10 : f32 to vector<8x128xf32>
    %18 = arith.mulf %17, %16 : vector<8x128xf32>
    %cst_11 = arith.constant 5.000000e-01 : f32
    %19 = vector.broadcast %cst_11 : f32 to vector<8x128xf32>
    %20 = arith.addf %18, %19 : vector<8x128xf32>
    %21 = vector.extract_strided_slice %12 {offsets = [0, 128], sizes = [8, 128], strides = [1, 1]} : vector<8x512xf32> to vector<8x128xf32>
    %cst_12 = arith.constant 5.000000e-01 : f32
    %22 = vector.broadcast %cst_12 : f32 to vector<8x128xf32>
    %23 = arith.mulf %22, %21 : vector<8x128xf32>
    %24 = math.tanh %23 : vector<8x128xf32>
    %cst_13 = arith.constant 5.000000e-01 : f32
    %25 = vector.broadcast %cst_13 : f32 to vector<8x128xf32>
    %26 = arith.mulf %25, %24 : vector<8x128xf32>
    %cst_14 = arith.constant 5.000000e-01 : f32
    %27 = vector.broadcast %cst_14 : f32 to vector<8x128xf32>
    %28 = arith.addf %26, %27 : vector<8x128xf32>
    %29 = vector.extract_strided_slice %12 {offsets = [0, 256], sizes = [8, 128], strides = [1, 1]} : vector<8x512xf32> to vector<8x128xf32>
    %30 = math.tanh %29 : vector<8x128xf32>
    %31 = vector.extract_strided_slice %12 {offsets = [0, 384], sizes = [8, 128], strides = [1, 1]} : vector<8x512xf32> to vector<8x128xf32>
    %cst_15 = arith.constant 5.000000e-01 : f32
    %32 = vector.broadcast %cst_15 : f32 to vector<8x128xf32>
    %33 = arith.mulf %32, %31 : vector<8x128xf32>
    %34 = math.tanh %33 : vector<8x128xf32>
    %cst_16 = arith.constant 5.000000e-01 : f32
    %35 = vector.broadcast %cst_16 : f32 to vector<8x128xf32>
    %36 = arith.mulf %35, %34 : vector<8x128xf32>
    %cst_17 = arith.constant 5.000000e-01 : f32
    %37 = vector.broadcast %cst_17 : f32 to vector<8x128xf32>
    %38 = arith.addf %36, %37 : vector<8x128xf32>
    %39 = arith.mulf %28, %4 : vector<8x128xf32>
    %40 = arith.mulf %20, %30 : vector<8x128xf32>
    %41 = arith.addf %39, %40 : vector<8x128xf32>
    %42 = math.tanh %41 : vector<8x128xf32>
    %43 = arith.mulf %38, %42 : vector<8x128xf32>
    %c0_18 = arith.constant 0 : index
    %c0_19 = arith.constant 0 : index
    %44 = vector.load %arg5[%c0_18, %c0_19] : memref<8x128xf32, #tpu.memory_space<vmem>>, vector<8x128xf32>
    tpu.vector_store %arg5[%c0_18, %c0_19], %43 {strides = array<i32>} : memref<8x128xf32, #tpu.memory_space<vmem>>, vector<8x128xf32>,
    %c0_20 = arith.constant 0 : index
    %c0_21 = arith.constant 0 : index
    %45 = vector.load %arg6[%c0_20, %c0_21] : memref<8x128xf32, #tpu.memory_space<vmem>>, vector<8x128xf32>
    tpu.vector_store %arg6[%c0_20, %c0_21], %41 {strides = array<i32>} : memref<8x128xf32, #tpu.memory_space<vmem>>, vector<8x128xf32>,
    %46 = arith.truncf %43 : vector<8x128xf32> to vector<8x128xbf16>
    %47 = arith.index_cast %c0_i32_1 : i32 to index
    %c0_22 = arith.constant 0 : index
    %c0_23 = arith.constant 0 : index
    %48 = vector.load %arg3[%47, %c0_22, %c0_23] : memref<8x8x128xbf16, #tpu.memory_space<vmem>>, vector<1x8x128xbf16>
    %49 = vector.shape_cast %48 : vector<1x8x128xbf16> to vector<8x128xbf16>
    %50 = vector.shape_cast %46 : vector<8x128xbf16> to vector<1x8x128xbf16>
    tpu.vector_store %arg3[%47, %c0_22, %c0_23], %50 {strides = array<i32>} : memref<8x8x128xbf16, #tpu.memory_space<vmem>>, vector<1x8x128xbf16>,
    %c1_i32 = arith.constant 1 : i32
    %c0_24 = arith.constant 0 : index
    %c0_25 = arith.constant 0 : index
    %51 = vector.load %arg5[%c0_24, %c0_25] : memref<8x128xf32, #tpu.memory_space<vmem>>, vector<8x128xf32>
    %c0_26 = arith.constant 0 : index
    %c0_27 = arith.constant 0 : index
    %52 = vector.load %arg6[%c0_26, %c0_27] : memref<8x128xf32, #tpu.memory_space<vmem>>, vector<8x128xf32>
    %53 = arith.index_cast %c1_i32 : i32 to index
    %c0_28 = arith.constant 0 : index
    %c0_29 = arith.constant 0 : index
    %54 = vector.load %arg1[%53, %c0_28, %c0_29] : memref<8x8x512xbf16, #tpu.memory_space<vmem>>, vector<1x8x512xbf16>
    %55 = vector.shape_cast %54 : vector<1x8x512xbf16> to vector<8x512xbf16>
    %56 = arith.extf %55 : vector<8x512xbf16> to vector<8x512xf32>
    %57 = arith.truncf %51 : vector<8x128xf32> to vector<8x128xbf16>
    %c0_30 = arith.constant 0 : index
    %c0_31 = arith.constant 0 : index
    %58 = vector.load %arg4[%c0_30, %c0_31] : memref<128x512xbf16, #tpu.memory_space<vmem>>, vector<128x512xbf16>
    %cst_32 = arith.constant dense<0.000000e+00> : vector<8x512xf32>
    %59 = tpu.matmul %57, %58, %cst_32 {dimension_numbers = #tpu.dot_dimension_numbers<[1], [0], [0], [1], [0, 0, 1, 1], [], []>} : vector<8x128xbf16>, vector<128x512xbf16>, vector<8x512xf32> -> vector<8x512xf32>
    %60 = arith.addf %56, %59 : vector<8x512xf32>
    %61 = vector.extract_strided_slice %60 {offsets = [0, 0], sizes = [8, 128], strides = [1, 1]} : vector<8x512xf32> to vector<8x128xf32>
    %cst_33 = arith.constant 5.000000e-01 : f32
    %62 = vector.broadcast %cst_33 : f32 to vector<8x128xf32>
    %63 = arith.mulf %62, %61 : vector<8x128xf32>
    %64 = math.tanh %63 : vector<8x128xf32>
    %cst_34 = arith.constant 5.000000e-01 : f32
    %65 = vector.broadcast %cst_34 : f32 to vector<8x128xf32>
    %66 = arith.mulf %65, %64 : vector<8x128xf32>
    %cst_35 = arith.constant 5.000000e-01 : f32
    %67 = vector.broadcast %cst_35 : f32 to vector<8x128xf32>
    %68 = arith.addf %66, %67 : vector<8x128xf32>
    %69 = vector.extract_strided_slice %60 {offsets = [0, 128], sizes = [8, 128], strides = [1, 1]} : vector<8x512xf32> to vector<8x128xf32>
    %cst_36 = arith.constant 5.000000e-01 : f32
    %70 = vector.broadcast %cst_36 : f32 to vector<8x128xf32>
    %71 = arith.mulf %70, %69 : vector<8x128xf32>
    %72 = math.tanh %71 : vector<8x128xf32>
    %cst_37 = arith.constant 5.000000e-01 : f32
    %73 = vector.broadcast %cst_37 : f32 to vector<8x128xf32>
    %74 = arith.mulf %73, %72 : vector<8x128xf32>
    %cst_38 = arith.constant 5.000000e-01 : f32
    %75 = vector.broadcast %cst_38 : f32 to vector<8x128xf32>
    %76 = arith.addf %74, %75 : vector<8x128xf32>
    %77 = vector.extract_strided_slice %60 {offsets = [0, 256], sizes = [8, 128], strides = [1, 1]} : vector<8x512xf32> to vector<8x128xf32>
    %78 = math.tanh %77 : vector<8x128xf32>
    %79 = vector.extract_strided_slice %60 {offsets = [0, 384], sizes = [8, 128], strides = [1, 1]} : vector<8x512xf32> to vector<8x128xf32>
    %cst_39 = arith.constant 5.000000e-01 : f32
    %80 = vector.broadcast %cst_39 : f32 to vector<8x128xf32>
    %81 = arith.mulf %80, %79 : vector<8x128xf32>
    %82 = math.tanh %81 : vector<8x128xf32>
    %cst_40 = arith.constant 5.000000e-01 : f32
    %83 = vector.broadcast %cst_40 : f32 to vector<8x128xf32>
    %84 = arith.mulf %83, %82 : vector<8x128xf32>
    %cst_41 = arith.constant 5.000000e-01 : f32
    %85 = vector.broadcast %cst_41 : f32 to vector<8x128xf32>
    %86 = arith.addf %84, %85 : vector<8x128xf32>
    %87 = arith.mulf %76, %52 : vector<8x128xf32>
    %88 = arith.mulf %68, %78 : vector<8x128xf32>
    %89 = arith.addf %87, %88 : vector<8x128xf32>
    %90 = math.tanh %89 : vector<8x128xf32>
    %91 = arith.mulf %86, %90 : vector<8x128xf32>
    %c0_42 = arith.constant 0 : index
    %c0_43 = arith.constant 0 : index
    %92 = vector.load %arg5[%c0_42, %c0_43] : memref<8x128xf32, #tpu.memory_space<vmem>>, vector<8x128xf32>
    tpu.vector_store %arg5[%c0_42, %c0_43], %91 {strides = array<i32>} : memref<8x128xf32, #tpu.memory_space<vmem>>, vector<8x128xf32>,
    %c0_44 = arith.constant 0 : index
    %c0_45 = arith.constant 0 : index
    %93 = vector.load %arg6[%c0_44, %c0_45] : memref<8x128xf32, #tpu.memory_space<vmem>>, vector<8x128xf32>
    tpu.vector_store %arg6[%c0_44, %c0_45], %89 {strides = array<i32>} : memref<8x128xf32, #tpu.memory_space<vmem>>, vector<8x128xf32>,
    %94 = arith.truncf %91 : vector<8x128xf32> to vector<8x128xbf16>
    %95 = arith.index_cast %c1_i32 : i32 to index
    %c0_46 = arith.constant 0 : index
    %c0_47 = arith.constant 0 : index
    %96 = vector.load %arg3[%95, %c0_46, %c0_47] : memref<8x8x128xbf16, #tpu.memory_space<vmem>>, vector<1x8x128xbf16>
    %97 = vector.shape_cast %96 : vector<1x8x128xbf16> to vector<8x128xbf16>
    %98 = vector.shape_cast %94 : vector<8x128xbf16> to vector<1x8x128xbf16>
    tpu.vector_store %arg3[%95, %c0_46, %c0_47], %98 {strides = array<i32>} : memref<8x8x128xbf16, #tpu.memory_space<vmem>>, vector<1x8x128xbf16>,
    %c2_i32 = arith.constant 2 : i32
    %c0_48 = arith.constant 0 : index
    %c0_49 = arith.constant 0 : index
    %99 = vector.load %arg5[%c0_48, %c0_49] : memref<8x128xf32, #tpu.memory_space<vmem>>, vector<8x128xf32>
    %c0_50 = arith.constant 0 : index
    %c0_51 = arith.constant 0 : index
    %100 = vector.load %arg6[%c0_50, %c0_51] : memref<8x128xf32, #tpu.memory_space<vmem>>, vector<8x128xf32>
    %101 = arith.index_cast %c2_i32 : i32 to index
    %c0_52 = arith.constant 0 : index
    %c0_53 = arith.constant 0 : index
    %102 = vector.load %arg1[%101, %c0_52, %c0_53] : memref<8x8x512xbf16, #tpu.memory_space<vmem>>, vector<1x8x512xbf16>
    %103 = vector.shape_cast %102 : vector<1x8x512xbf16> to vector<8x512xbf16>
    %104 = arith.extf %103 : vector<8x512xbf16> to vector<8x512xf32>
    %105 = arith.truncf %99 : vector<8x128xf32> to vector<8x128xbf16>
    %c0_54 = arith.constant 0 : index
    %c0_55 = arith.constant 0 : index
    %106 = vector.load %arg4[%c0_54, %c0_55] : memref<128x512xbf16, #tpu.memory_space<vmem>>, vector<128x512xbf16>
    %cst_56 = arith.constant dense<0.000000e+00> : vector<8x512xf32>
    %107 = tpu.matmul %105, %106, %cst_56 {dimension_numbers = #tpu.dot_dimension_numbers<[1], [0], [0], [1], [0, 0, 1, 1], [], []>} : vector<8x128xbf16>, vector<128x512xbf16>, vector<8x512xf32> -> vector<8x512xf32>
    %108 = arith.addf %104, %107 : vector<8x512xf32>
    %109 = vector.extract_strided_slice %108 {offsets = [0, 0], sizes = [8, 128], strides = [1, 1]} : vector<8x512xf32> to vector<8x128xf32>
    %cst_57 = arith.constant 5.000000e-01 : f32
    %110 = vector.broadcast %cst_57 : f32 to vector<8x128xf32>
    %111 = arith.mulf %110, %109 : vector<8x128xf32>
    %112 = math.tanh %111 : vector<8x128xf32>
    %cst_58 = arith.constant 5.000000e-01 : f32
    %113 = vector.broadcast %cst_58 : f32 to vector<8x128xf32>
    %114 = arith.mulf %113, %112 : vector<8x128xf32>
    %cst_59 = arith.constant 5.000000e-01 : f32
    %115 = vector.broadcast %cst_59 : f32 to vector<8x128xf32>
    %116 = arith.addf %114, %115 : vector<8x128xf32>
    %117 = vector.extract_strided_slice %108 {offsets = [0, 128], sizes = [8, 128], strides = [1, 1]} : vector<8x512xf32> to vector<8x128xf32>
    %cst_60 = arith.constant 5.000000e-01 : f32
    %118 = vector.broadcast %cst_60 : f32 to vector<8x128xf32>
    %119 = arith.mulf %118, %117 : vector<8x128xf32>
    %120 = math.tanh %119 : vector<8x128xf32>
    %cst_61 = arith.constant 5.000000e-01 : f32
    %121 = vector.broadcast %cst_61 : f32 to vector<8x128xf32>
    %122 = arith.mulf %121, %120 : vector<8x128xf32>
    %cst_62 = arith.constant 5.000000e-01 : f32
    %123 = vector.broadcast %cst_62 : f32 to vector<8x128xf32>
    %124 = arith.addf %122, %123 : vector<8x128xf32>
    %125 = vector.extract_strided_slice %108 {offsets = [0, 256], sizes = [8, 128], strides = [1, 1]} : vector<8x512xf32> to vector<8x128xf32>
    %126 = math.tanh %125 : vector<8x128xf32>
    %127 = vector.extract_strided_slice %108 {offsets = [0, 384], sizes = [8, 128], strides = [1, 1]} : vector<8x512xf32> to vector<8x128xf32>
    %cst_63 = arith.constant 5.000000e-01 : f32
    %128 = vector.broadcast %cst_63 : f32 to vector<8x128xf32>
    %129 = arith.mulf %128, %127 : vector<8x128xf32>
    %130 = math.tanh %129 : vector<8x128xf32>
    %cst_64 = arith.constant 5.000000e-01 : f32
    %131 = vector.broadcast %cst_64 : f32 to vector<8x128xf32>
    %132 = arith.mulf %131, %130 : vector<8x128xf32>
    %cst_65 = arith.constant 5.000000e-01 : f32
    %133 = vector.broadcast %cst_65 : f32 to vector<8x128xf32>
    %134 = arith.addf %132, %133 : vector<8x128xf32>
    %135 = arith.mulf %124, %100 : vector<8x128xf32>
    %136 = arith.mulf %116, %126 : vector<8x128xf32>
    %137 = arith.addf %135, %136 : vector<8x128xf32>
    %138 = math.tanh %137 : vector<8x128xf32>
    %139 = arith.mulf %134, %138 : vector<8x128xf32>
    %c0_66 = arith.constant 0 : index
    %c0_67 = arith.constant 0 : index
    %140 = vector.load %arg5[%c0_66, %c0_67] : memref<8x128xf32, #tpu.memory_space<vmem>>, vector<8x128xf32>
    tpu.vector_store %arg5[%c0_66, %c0_67], %139 {strides = array<i32>} : memref<8x128xf32, #tpu.memory_space<vmem>>, vector<8x128xf32>,
    %c0_68 = arith.constant 0 : index
    %c0_69 = arith.constant 0 : index
    %141 = vector.load %arg6[%c0_68, %c0_69] : memref<8x128xf32, #tpu.memory_space<vmem>>, vector<8x128xf32>
    tpu.vector_store %arg6[%c0_68, %c0_69], %137 {strides = array<i32>} : memref<8x128xf32, #tpu.memory_space<vmem>>, vector<8x128xf32>,
    %142 = arith.truncf %139 : vector<8x128xf32> to vector<8x128xbf16>
    %143 = arith.index_cast %c2_i32 : i32 to index
    %c0_70 = arith.constant 0 : index
    %c0_71 = arith.constant 0 : index
    %144 = vector.load %arg3[%143, %c0_70, %c0_71] : memref<8x8x128xbf16, #tpu.memory_space<vmem>>, vector<1x8x128xbf16>
    %145 = vector.shape_cast %144 : vector<1x8x128xbf16> to vector<8x128xbf16>
    %146 = vector.shape_cast %142 : vector<8x128xbf16> to vector<1x8x128xbf16>
    tpu.vector_store %arg3[%143, %c0_70, %c0_71], %146 {strides = array<i32>} : memref<8x8x128xbf16, #tpu.memory_space<vmem>>, vector<1x8x128xbf16>,
    %c3_i32 = arith.constant 3 : i32
    %c0_72 = arith.constant 0 : index
    %c0_73 = arith.constant 0 : index
    %147 = vector.load %arg5[%c0_72, %c0_73] : memref<8x128xf32, #tpu.memory_space<vmem>>, vector<8x128xf32>
    %c0_74 = arith.constant 0 : index
    %c0_75 = arith.constant 0 : index
    %148 = vector.load %arg6[%c0_74, %c0_75] : memref<8x128xf32, #tpu.memory_space<vmem>>, vector<8x128xf32>
    %149 = arith.index_cast %c3_i32 : i32 to index
    %c0_76 = arith.constant 0 : index
    %c0_77 = arith.constant 0 : index
    %150 = vector.load %arg1[%149, %c0_76, %c0_77] : memref<8x8x512xbf16, #tpu.memory_space<vmem>>, vector<1x8x512xbf16>
    %151 = vector.shape_cast %150 : vector<1x8x512xbf16> to vector<8x512xbf16>
    %152 = arith.extf %151 : vector<8x512xbf16> to vector<8x512xf32>
    %153 = arith.truncf %147 : vector<8x128xf32> to vector<8x128xbf16>
    %c0_78 = arith.constant 0 : index
    %c0_79 = arith.constant 0 : index
    %154 = vector.load %arg4[%c0_78, %c0_79] : memref<128x512xbf16, #tpu.memory_space<vmem>>, vector<128x512xbf16>
    %cst_80 = arith.constant dense<0.000000e+00> : vector<8x512xf32>
    %155 = tpu.matmul %153, %154, %cst_80 {dimension_numbers = #tpu.dot_dimension_numbers<[1], [0], [0], [1], [0, 0, 1, 1], [], []>} : vector<8x128xbf16>, vector<128x512xbf16>, vector<8x512xf32> -> vector<8x512xf32>
    %156 = arith.addf %152, %155 : vector<8x512xf32>
    %157 = vector.extract_strided_slice %156 {offsets = [0, 0], sizes = [8, 128], strides = [1, 1]} : vector<8x512xf32> to vector<8x128xf32>
    %cst_81 = arith.constant 5.000000e-01 : f32
    %158 = vector.broadcast %cst_81 : f32 to vector<8x128xf32>
    %159 = arith.mulf %158, %157 : vector<8x128xf32>
    %160 = math.tanh %159 : vector<8x128xf32>
    %cst_82 = arith.constant 5.000000e-01 : f32
    %161 = vector.broadcast %cst_82 : f32 to vector<8x128xf32>
    %162 = arith.mulf %161, %160 : vector<8x128xf32>
    %cst_83 = arith.constant 5.000000e-01 : f32
    %163 = vector.broadcast %cst_83 : f32 to vector<8x128xf32>
    %164 = arith.addf %162, %163 : vector<8x128xf32>
    %165 = vector.extract_strided_slice %156 {offsets = [0, 128], sizes = [8, 128], strides = [1, 1]} : vector<8x512xf32> to vector<8x128xf32>
    %cst_84 = arith.constant 5.000000e-01 : f32
    %166 = vector.broadcast %cst_84 : f32 to vector<8x128xf32>
    %167 = arith.mulf %166, %165 : vector<8x128xf32>
    %168 = math.tanh %167 : vector<8x128xf32>
    %cst_85 = arith.constant 5.000000e-01 : f32
    %169 = vector.broadcast %cst_85 : f32 to vector<8x128xf32>
    %170 = arith.mulf %169, %168 : vector<8x128xf32>
    %cst_86 = arith.constant 5.000000e-01 : f32
    %171 = vector.broadcast %cst_86 : f32 to vector<8x128xf32>
    %172 = arith.addf %170, %171 : vector<8x128xf32>
    %173 = vector.extract_strided_slice %156 {offsets = [0, 256], sizes = [8, 128], strides = [1, 1]} : vector<8x512xf32> to vector<8x128xf32>
    %174 = math.tanh %173 : vector<8x128xf32>
    %175 = vector.extract_strided_slice %156 {offsets = [0, 384], sizes = [8, 128], strides = [1, 1]} : vector<8x512xf32> to vector<8x128xf32>
    %cst_87 = arith.constant 5.000000e-01 : f32
    %176 = vector.broadcast %cst_87 : f32 to vector<8x128xf32>
    %177 = arith.mulf %176, %175 : vector<8x128xf32>
    %178 = math.tanh %177 : vector<8x128xf32>
    %cst_88 = arith.constant 5.000000e-01 : f32
    %179 = vector.broadcast %cst_88 : f32 to vector<8x128xf32>
    %180 = arith.mulf %179, %178 : vector<8x128xf32>
    %cst_89 = arith.constant 5.000000e-01 : f32
    %181 = vector.broadcast %cst_89 : f32 to vector<8x128xf32>
    %182 = arith.addf %180, %181 : vector<8x128xf32>
    %183 = arith.mulf %172, %148 : vector<8x128xf32>
    %184 = arith.mulf %164, %174 : vector<8x128xf32>
    %185 = arith.addf %183, %184 : vector<8x128xf32>
    %186 = math.tanh %185 : vector<8x128xf32>
    %187 = arith.mulf %182, %186 : vector<8x128xf32>
    %c0_90 = arith.constant 0 : index
    %c0_91 = arith.constant 0 : index
    %188 = vector.load %arg5[%c0_90, %c0_91] : memref<8x128xf32, #tpu.memory_space<vmem>>, vector<8x128xf32>
    tpu.vector_store %arg5[%c0_90, %c0_91], %187 {strides = array<i32>} : memref<8x128xf32, #tpu.memory_space<vmem>>, vector<8x128xf32>,
    %c0_92 = arith.constant 0 : index
    %c0_93 = arith.constant 0 : index
    %189 = vector.load %arg6[%c0_92, %c0_93] : memref<8x128xf32, #tpu.memory_space<vmem>>, vector<8x128xf32>
    tpu.vector_store %arg6[%c0_92, %c0_93], %185 {strides = array<i32>} : memref<8x128xf32, #tpu.memory_space<vmem>>, vector<8x128xf32>,
    %190 = arith.truncf %187 : vector<8x128xf32> to vector<8x128xbf16>
    %191 = arith.index_cast %c3_i32 : i32 to index
    %c0_94 = arith.constant 0 : index
    %c0_95 = arith.constant 0 : index
    %192 = vector.load %arg3[%191, %c0_94, %c0_95] : memref<8x8x128xbf16, #tpu.memory_space<vmem>>, vector<1x8x128xbf16>
    %193 = vector.shape_cast %192 : vector<1x8x128xbf16> to vector<8x128xbf16>
    %194 = vector.shape_cast %190 : vector<8x128xbf16> to vector<1x8x128xbf16>
    tpu.vector_store %arg3[%191, %c0_94, %c0_95], %194 {strides = array<i32>} : memref<8x8x128xbf16, #tpu.memory_space<vmem>>, vector<1x8x128xbf16>,
    %c4_i32 = arith.constant 4 : i32
    %c0_96 = arith.constant 0 : index
    %c0_97 = arith.constant 0 : index
    %195 = vector.load %arg5[%c0_96, %c0_97] : memref<8x128xf32, #tpu.memory_space<vmem>>, vector<8x128xf32>
    %c0_98 = arith.constant 0 : index
    %c0_99 = arith.constant 0 : index
    %196 = vector.load %arg6[%c0_98, %c0_99] : memref<8x128xf32, #tpu.memory_space<vmem>>, vector<8x128xf32>
    %197 = arith.index_cast %c4_i32 : i32 to index
    %c0_100 = arith.constant 0 : index
    %c0_101 = arith.constant 0 : index
    %198 = vector.load %arg1[%197, %c0_100, %c0_101] : memref<8x8x512xbf16, #tpu.memory_space<vmem>>, vector<1x8x512xbf16>
    %199 = vector.shape_cast %198 : vector<1x8x512xbf16> to vector<8x512xbf16>
    %200 = arith.extf %199 : vector<8x512xbf16> to vector<8x512xf32>
    %201 = arith.truncf %195 : vector<8x128xf32> to vector<8x128xbf16>
    %c0_102 = arith.constant 0 : index
    %c0_103 = arith.constant 0 : index
    %202 = vector.load %arg4[%c0_102, %c0_103] : memref<128x512xbf16, #tpu.memory_space<vmem>>, vector<128x512xbf16>
    %cst_104 = arith.constant dense<0.000000e+00> : vector<8x512xf32>
    %203 = tpu.matmul %201, %202, %cst_104 {dimension_numbers = #tpu.dot_dimension_numbers<[1], [0], [0], [1], [0, 0, 1, 1], [], []>} : vector<8x128xbf16>, vector<128x512xbf16>, vector<8x512xf32> -> vector<8x512xf32>
    %204 = arith.addf %200, %203 : vector<8x512xf32>
    %205 = vector.extract_strided_slice %204 {offsets = [0, 0], sizes = [8, 128], strides = [1, 1]} : vector<8x512xf32> to vector<8x128xf32>
    %cst_105 = arith.constant 5.000000e-01 : f32
    %206 = vector.broadcast %cst_105 : f32 to vector<8x128xf32>
    %207 = arith.mulf %206, %205 : vector<8x128xf32>
    %208 = math.tanh %207 : vector<8x128xf32>
    %cst_106 = arith.constant 5.000000e-01 : f32
    %209 = vector.broadcast %cst_106 : f32 to vector<8x128xf32>
    %210 = arith.mulf %209, %208 : vector<8x128xf32>
    %cst_107 = arith.constant 5.000000e-01 : f32
    %211 = vector.broadcast %cst_107 : f32 to vector<8x128xf32>
    %212 = arith.addf %210, %211 : vector<8x128xf32>
    %213 = vector.extract_strided_slice %204 {offsets = [0, 128], sizes = [8, 128], strides = [1, 1]} : vector<8x512xf32> to vector<8x128xf32>
    %cst_108 = arith.constant 5.000000e-01 : f32
    %214 = vector.broadcast %cst_108 : f32 to vector<8x128xf32>
    %215 = arith.mulf %214, %213 : vector<8x128xf32>
    %216 = math.tanh %215 : vector<8x128xf32>
    %cst_109 = arith.constant 5.000000e-01 : f32
    %217 = vector.broadcast %cst_109 : f32 to vector<8x128xf32>
    %218 = arith.mulf %217, %216 : vector<8x128xf32>
    %cst_110 = arith.constant 5.000000e-01 : f32
    %219 = vector.broadcast %cst_110 : f32 to vector<8x128xf32>
    %220 = arith.addf %218, %219 : vector<8x128xf32>
    %221 = vector.extract_strided_slice %204 {offsets = [0, 256], sizes = [8, 128], strides = [1, 1]} : vector<8x512xf32> to vector<8x128xf32>
    %222 = math.tanh %221 : vector<8x128xf32>
    %223 = vector.extract_strided_slice %204 {offsets = [0, 384], sizes = [8, 128], strides = [1, 1]} : vector<8x512xf32> to vector<8x128xf32>
    %cst_111 = arith.constant 5.000000e-01 : f32
    %224 = vector.broadcast %cst_111 : f32 to vector<8x128xf32>
    %225 = arith.mulf %224, %223 : vector<8x128xf32>
    %226 = math.tanh %225 : vector<8x128xf32>
    %cst_112 = arith.constant 5.000000e-01 : f32
    %227 = vector.broadcast %cst_112 : f32 to vector<8x128xf32>
    %228 = arith.mulf %227, %226 : vector<8x128xf32>
    %cst_113 = arith.constant 5.000000e-01 : f32
    %229 = vector.broadcast %cst_113 : f32 to vector<8x128xf32>
    %230 = arith.addf %228, %229 : vector<8x128xf32>
    %231 = arith.mulf %220, %196 : vector<8x128xf32>
    %232 = arith.mulf %212, %222 : vector<8x128xf32>
    %233 = arith.addf %231, %232 : vector<8x128xf32>
    %234 = math.tanh %233 : vector<8x128xf32>
    %235 = arith.mulf %230, %234 : vector<8x128xf32>
    %c0_114 = arith.constant 0 : index
    %c0_115 = arith.constant 0 : index
    %236 = vector.load %arg5[%c0_114, %c0_115] : memref<8x128xf32, #tpu.memory_space<vmem>>, vector<8x128xf32>
    tpu.vector_store %arg5[%c0_114, %c0_115], %235 {strides = array<i32>} : memref<8x128xf32, #tpu.memory_space<vmem>>, vector<8x128xf32>,
    %c0_116 = arith.constant 0 : index
    %c0_117 = arith.constant 0 : index
    %237 = vector.load %arg6[%c0_116, %c0_117] : memref<8x128xf32, #tpu.memory_space<vmem>>, vector<8x128xf32>
    tpu.vector_store %arg6[%c0_116, %c0_117], %233 {strides = array<i32>} : memref<8x128xf32, #tpu.memory_space<vmem>>, vector<8x128xf32>,
    %238 = arith.truncf %235 : vector<8x128xf32> to vector<8x128xbf16>
    %239 = arith.index_cast %c4_i32 : i32 to index
    %c0_118 = arith.constant 0 : index
    %c0_119 = arith.constant 0 : index
    %240 = vector.load %arg3[%239, %c0_118, %c0_119] : memref<8x8x128xbf16, #tpu.memory_space<vmem>>, vector<1x8x128xbf16>
    %241 = vector.shape_cast %240 : vector<1x8x128xbf16> to vector<8x128xbf16>
    %242 = vector.shape_cast %238 : vector<8x128xbf16> to vector<1x8x128xbf16>
    tpu.vector_store %arg3[%239, %c0_118, %c0_119], %242 {strides = array<i32>} : memref<8x8x128xbf16, #tpu.memory_space<vmem>>, vector<1x8x128xbf16>,
    %c5_i32 = arith.constant 5 : i32
    %c0_120 = arith.constant 0 : index
    %c0_121 = arith.constant 0 : index
    %243 = vector.load %arg5[%c0_120, %c0_121] : memref<8x128xf32, #tpu.memory_space<vmem>>, vector<8x128xf32>
    %c0_122 = arith.constant 0 : index
    %c0_123 = arith.constant 0 : index
    %244 = vector.load %arg6[%c0_122, %c0_123] : memref<8x128xf32, #tpu.memory_space<vmem>>, vector<8x128xf32>
    %245 = arith.index_cast %c5_i32 : i32 to index
    %c0_124 = arith.constant 0 : index
    %c0_125 = arith.constant 0 : index
    %246 = vector.load %arg1[%245, %c0_124, %c0_125] : memref<8x8x512xbf16, #tpu.memory_space<vmem>>, vector<1x8x512xbf16>
    %247 = vector.shape_cast %246 : vector<1x8x512xbf16> to vector<8x512xbf16>
    %248 = arith.extf %247 : vector<8x512xbf16> to vector<8x512xf32>
    %249 = arith.truncf %243 : vector<8x128xf32> to vector<8x128xbf16>
    %c0_126 = arith.constant 0 : index
    %c0_127 = arith.constant 0 : index
    %250 = vector.load %arg4[%c0_126, %c0_127] : memref<128x512xbf16, #tpu.memory_space<vmem>>, vector<128x512xbf16>
    %cst_128 = arith.constant dense<0.000000e+00> : vector<8x512xf32>
    %251 = tpu.matmul %249, %250, %cst_128 {dimension_numbers = #tpu.dot_dimension_numbers<[1], [0], [0], [1], [0, 0, 1, 1], [], []>} : vector<8x128xbf16>, vector<128x512xbf16>, vector<8x512xf32> -> vector<8x512xf32>
    %252 = arith.addf %248, %251 : vector<8x512xf32>
    %253 = vector.extract_strided_slice %252 {offsets = [0, 0], sizes = [8, 128], strides = [1, 1]} : vector<8x512xf32> to vector<8x128xf32>
    %cst_129 = arith.constant 5.000000e-01 : f32
    %254 = vector.broadcast %cst_129 : f32 to vector<8x128xf32>
    %255 = arith.mulf %254, %253 : vector<8x128xf32>
    %256 = math.tanh %255 : vector<8x128xf32>
    %cst_130 = arith.constant 5.000000e-01 : f32
    %257 = vector.broadcast %cst_130 : f32 to vector<8x128xf32>
    %258 = arith.mulf %257, %256 : vector<8x128xf32>
    %cst_131 = arith.constant 5.000000e-01 : f32
    %259 = vector.broadcast %cst_131 : f32 to vector<8x128xf32>
    %260 = arith.addf %258, %259 : vector<8x128xf32>
    %261 = vector.extract_strided_slice %252 {offsets = [0, 128], sizes = [8, 128], strides = [1, 1]} : vector<8x512xf32> to vector<8x128xf32>
    %cst_132 = arith.constant 5.000000e-01 : f32
    %262 = vector.broadcast %cst_132 : f32 to vector<8x128xf32>
    %263 = arith.mulf %262, %261 : vector<8x128xf32>
    %264 = math.tanh %263 : vector<8x128xf32>
    %cst_133 = arith.constant 5.000000e-01 : f32
    %265 = vector.broadcast %cst_133 : f32 to vector<8x128xf32>
    %266 = arith.mulf %265, %264 : vector<8x128xf32>
    %cst_134 = arith.constant 5.000000e-01 : f32
    %267 = vector.broadcast %cst_134 : f32 to vector<8x128xf32>
    %268 = arith.addf %266, %267 : vector<8x128xf32>
    %269 = vector.extract_strided_slice %252 {offsets = [0, 256], sizes = [8, 128], strides = [1, 1]} : vector<8x512xf32> to vector<8x128xf32>
    %270 = math.tanh %269 : vector<8x128xf32>
    %271 = vector.extract_strided_slice %252 {offsets = [0, 384], sizes = [8, 128], strides = [1, 1]} : vector<8x512xf32> to vector<8x128xf32>
    %cst_135 = arith.constant 5.000000e-01 : f32
    %272 = vector.broadcast %cst_135 : f32 to vector<8x128xf32>
    %273 = arith.mulf %272, %271 : vector<8x128xf32>
    %274 = math.tanh %273 : vector<8x128xf32>
    %cst_136 = arith.constant 5.000000e-01 : f32
    %275 = vector.broadcast %cst_136 : f32 to vector<8x128xf32>
    %276 = arith.mulf %275, %274 : vector<8x128xf32>
    %cst_137 = arith.constant 5.000000e-01 : f32
    %277 = vector.broadcast %cst_137 : f32 to vector<8x128xf32>
    %278 = arith.addf %276, %277 : vector<8x128xf32>
    %279 = arith.mulf %268, %244 : vector<8x128xf32>
    %280 = arith.mulf %260, %270 : vector<8x128xf32>
    %281 = arith.addf %279, %280 : vector<8x128xf32>
    %282 = math.tanh %281 : vector<8x128xf32>
    %283 = arith.mulf %278, %282 : vector<8x128xf32>
    %c0_138 = arith.constant 0 : index
    %c0_139 = arith.constant 0 : index
    %284 = vector.load %arg5[%c0_138, %c0_139] : memref<8x128xf32, #tpu.memory_space<vmem>>, vector<8x128xf32>
    tpu.vector_store %arg5[%c0_138, %c0_139], %283 {strides = array<i32>} : memref<8x128xf32, #tpu.memory_space<vmem>>, vector<8x128xf32>,
    %c0_140 = arith.constant 0 : index
    %c0_141 = arith.constant 0 : index
    %285 = vector.load %arg6[%c0_140, %c0_141] : memref<8x128xf32, #tpu.memory_space<vmem>>, vector<8x128xf32>
    tpu.vector_store %arg6[%c0_140, %c0_141], %281 {strides = array<i32>} : memref<8x128xf32, #tpu.memory_space<vmem>>, vector<8x128xf32>,
    %286 = arith.truncf %283 : vector<8x128xf32> to vector<8x128xbf16>
    %287 = arith.index_cast %c5_i32 : i32 to index
    %c0_142 = arith.constant 0 : index
    %c0_143 = arith.constant 0 : index
    %288 = vector.load %arg3[%287, %c0_142, %c0_143] : memref<8x8x128xbf16, #tpu.memory_space<vmem>>, vector<1x8x128xbf16>
    %289 = vector.shape_cast %288 : vector<1x8x128xbf16> to vector<8x128xbf16>
    %290 = vector.shape_cast %286 : vector<8x128xbf16> to vector<1x8x128xbf16>
    tpu.vector_store %arg3[%287, %c0_142, %c0_143], %290 {strides = array<i32>} : memref<8x8x128xbf16, #tpu.memory_space<vmem>>, vector<1x8x128xbf16>,
    %c6_i32 = arith.constant 6 : i32
    %c0_144 = arith.constant 0 : index
    %c0_145 = arith.constant 0 : index
    %291 = vector.load %arg5[%c0_144, %c0_145] : memref<8x128xf32, #tpu.memory_space<vmem>>, vector<8x128xf32>
    %c0_146 = arith.constant 0 : index
    %c0_147 = arith.constant 0 : index
    %292 = vector.load %arg6[%c0_146, %c0_147] : memref<8x128xf32, #tpu.memory_space<vmem>>, vector<8x128xf32>
    %293 = arith.index_cast %c6_i32 : i32 to index
    %c0_148 = arith.constant 0 : index
    %c0_149 = arith.constant 0 : index
    %294 = vector.load %arg1[%293, %c0_148, %c0_149] : memref<8x8x512xbf16, #tpu.memory_space<vmem>>, vector<1x8x512xbf16>
    %295 = vector.shape_cast %294 : vector<1x8x512xbf16> to vector<8x512xbf16>
    %296 = arith.extf %295 : vector<8x512xbf16> to vector<8x512xf32>
    %297 = arith.truncf %291 : vector<8x128xf32> to vector<8x128xbf16>
    %c0_150 = arith.constant 0 : index
    %c0_151 = arith.constant 0 : index
    %298 = vector.load %arg4[%c0_150, %c0_151] : memref<128x512xbf16, #tpu.memory_space<vmem>>, vector<128x512xbf16>
    %cst_152 = arith.constant dense<0.000000e+00> : vector<8x512xf32>
    %299 = tpu.matmul %297, %298, %cst_152 {dimension_numbers = #tpu.dot_dimension_numbers<[1], [0], [0], [1], [0, 0, 1, 1], [], []>} : vector<8x128xbf16>, vector<128x512xbf16>, vector<8x512xf32> -> vector<8x512xf32>
    %300 = arith.addf %296, %299 : vector<8x512xf32>
    %301 = vector.extract_strided_slice %300 {offsets = [0, 0], sizes = [8, 128], strides = [1, 1]} : vector<8x512xf32> to vector<8x128xf32>
    %cst_153 = arith.constant 5.000000e-01 : f32
    %302 = vector.broadcast %cst_153 : f32 to vector<8x128xf32>
    %303 = arith.mulf %302, %301 : vector<8x128xf32>
    %304 = math.tanh %303 : vector<8x128xf32>
    %cst_154 = arith.constant 5.000000e-01 : f32
    %305 = vector.broadcast %cst_154 : f32 to vector<8x128xf32>
    %306 = arith.mulf %305, %304 : vector<8x128xf32>
    %cst_155 = arith.constant 5.000000e-01 : f32
    %307 = vector.broadcast %cst_155 : f32 to vector<8x128xf32>
    %308 = arith.addf %306, %307 : vector<8x128xf32>
    %309 = vector.extract_strided_slice %300 {offsets = [0, 128], sizes = [8, 128], strides = [1, 1]} : vector<8x512xf32> to vector<8x128xf32>
    %cst_156 = arith.constant 5.000000e-01 : f32
    %310 = vector.broadcast %cst_156 : f32 to vector<8x128xf32>
    %311 = arith.mulf %310, %309 : vector<8x128xf32>
    %312 = math.tanh %311 : vector<8x128xf32>
    %cst_157 = arith.constant 5.000000e-01 : f32
    %313 = vector.broadcast %cst_157 : f32 to vector<8x128xf32>
    %314 = arith.mulf %313, %312 : vector<8x128xf32>
    %cst_158 = arith.constant 5.000000e-01 : f32
    %315 = vector.broadcast %cst_158 : f32 to vector<8x128xf32>
    %316 = arith.addf %314, %315 : vector<8x128xf32>
    %317 = vector.extract_strided_slice %300 {offsets = [0, 256], sizes = [8, 128], strides = [1, 1]} : vector<8x512xf32> to vector<8x128xf32>
    %318 = math.tanh %317 : vector<8x128xf32>
    %319 = vector.extract_strided_slice %300 {offsets = [0, 384], sizes = [8, 128], strides = [1, 1]} : vector<8x512xf32> to vector<8x128xf32>
    %cst_159 = arith.constant 5.000000e-01 : f32
    %320 = vector.broadcast %cst_159 : f32 to vector<8x128xf32>
    %321 = arith.mulf %320, %319 : vector<8x128xf32>
    %322 = math.tanh %321 : vector<8x128xf32>
    %cst_160 = arith.constant 5.000000e-01 : f32
    %323 = vector.broadcast %cst_160 : f32 to vector<8x128xf32>
    %324 = arith.mulf %323, %322 : vector<8x128xf32>
    %cst_161 = arith.constant 5.000000e-01 : f32
    %325 = vector.broadcast %cst_161 : f32 to vector<8x128xf32>
    %326 = arith.addf %324, %325 : vector<8x128xf32>
    %327 = arith.mulf %316, %292 : vector<8x128xf32>
    %328 = arith.mulf %308, %318 : vector<8x128xf32>
    %329 = arith.addf %327, %328 : vector<8x128xf32>
    %330 = math.tanh %329 : vector<8x128xf32>
    %331 = arith.mulf %326, %330 : vector<8x128xf32>
    %c0_162 = arith.constant 0 : index
    %c0_163 = arith.constant 0 : index
    %332 = vector.load %arg5[%c0_162, %c0_163] : memref<8x128xf32, #tpu.memory_space<vmem>>, vector<8x128xf32>
    tpu.vector_store %arg5[%c0_162, %c0_163], %331 {strides = array<i32>} : memref<8x128xf32, #tpu.memory_space<vmem>>, vector<8x128xf32>,
    %c0_164 = arith.constant 0 : index
    %c0_165 = arith.constant 0 : index
    %333 = vector.load %arg6[%c0_164, %c0_165] : memref<8x128xf32, #tpu.memory_space<vmem>>, vector<8x128xf32>
    tpu.vector_store %arg6[%c0_164, %c0_165], %329 {strides = array<i32>} : memref<8x128xf32, #tpu.memory_space<vmem>>, vector<8x128xf32>,
    %334 = arith.truncf %331 : vector<8x128xf32> to vector<8x128xbf16>
    %335 = arith.index_cast %c6_i32 : i32 to index
    %c0_166 = arith.constant 0 : index
    %c0_167 = arith.constant 0 : index
    %336 = vector.load %arg3[%335, %c0_166, %c0_167] : memref<8x8x128xbf16, #tpu.memory_space<vmem>>, vector<1x8x128xbf16>
    %337 = vector.shape_cast %336 : vector<1x8x128xbf16> to vector<8x128xbf16>
    %338 = vector.shape_cast %334 : vector<8x128xbf16> to vector<1x8x128xbf16>
    tpu.vector_store %arg3[%335, %c0_166, %c0_167], %338 {strides = array<i32>} : memref<8x8x128xbf16, #tpu.memory_space<vmem>>, vector<1x8x128xbf16>,
    %c7_i32 = arith.constant 7 : i32
    %c0_168 = arith.constant 0 : index
    %c0_169 = arith.constant 0 : index
    %339 = vector.load %arg5[%c0_168, %c0_169] : memref<8x128xf32, #tpu.memory_space<vmem>>, vector<8x128xf32>
    %c0_170 = arith.constant 0 : index
    %c0_171 = arith.constant 0 : index
    %340 = vector.load %arg6[%c0_170, %c0_171] : memref<8x128xf32, #tpu.memory_space<vmem>>, vector<8x128xf32>
    %341 = arith.index_cast %c7_i32 : i32 to index
    %c0_172 = arith.constant 0 : index
    %c0_173 = arith.constant 0 : index
    %342 = vector.load %arg1[%341, %c0_172, %c0_173] : memref<8x8x512xbf16, #tpu.memory_space<vmem>>, vector<1x8x512xbf16>
    %343 = vector.shape_cast %342 : vector<1x8x512xbf16> to vector<8x512xbf16>
    %344 = arith.extf %343 : vector<8x512xbf16> to vector<8x512xf32>
    %345 = arith.truncf %339 : vector<8x128xf32> to vector<8x128xbf16>
    %c0_174 = arith.constant 0 : index
    %c0_175 = arith.constant 0 : index
    %346 = vector.load %arg4[%c0_174, %c0_175] : memref<128x512xbf16, #tpu.memory_space<vmem>>, vector<128x512xbf16>
    %cst_176 = arith.constant dense<0.000000e+00> : vector<8x512xf32>
    %347 = tpu.matmul %345, %346, %cst_176 {dimension_numbers = #tpu.dot_dimension_numbers<[1], [0], [0], [1], [0, 0, 1, 1], [], []>} : vector<8x128xbf16>, vector<128x512xbf16>, vector<8x512xf32> -> vector<8x512xf32>
    %348 = arith.addf %344, %347 : vector<8x512xf32>
    %349 = vector.extract_strided_slice %348 {offsets = [0, 0], sizes = [8, 128], strides = [1, 1]} : vector<8x512xf32> to vector<8x128xf32>
    %cst_177 = arith.constant 5.000000e-01 : f32
    %350 = vector.broadcast %cst_177 : f32 to vector<8x128xf32>
    %351 = arith.mulf %350, %349 : vector<8x128xf32>
    %352 = math.tanh %351 : vector<8x128xf32>
    %cst_178 = arith.constant 5.000000e-01 : f32
    %353 = vector.broadcast %cst_178 : f32 to vector<8x128xf32>
    %354 = arith.mulf %353, %352 : vector<8x128xf32>
    %cst_179 = arith.constant 5.000000e-01 : f32
    %355 = vector.broadcast %cst_179 : f32 to vector<8x128xf32>
    %356 = arith.addf %354, %355 : vector<8x128xf32>
    %357 = vector.extract_strided_slice %348 {offsets = [0, 128], sizes = [8, 128], strides = [1, 1]} : vector<8x512xf32> to vector<8x128xf32>
    %cst_180 = arith.constant 5.000000e-01 : f32
    %358 = vector.broadcast %cst_180 : f32 to vector<8x128xf32>
    %359 = arith.mulf %358, %357 : vector<8x128xf32>
    %360 = math.tanh %359 : vector<8x128xf32>
    %cst_181 = arith.constant 5.000000e-01 : f32
    %361 = vector.broadcast %cst_181 : f32 to vector<8x128xf32>
    %362 = arith.mulf %361, %360 : vector<8x128xf32>
    %cst_182 = arith.constant 5.000000e-01 : f32
    %363 = vector.broadcast %cst_182 : f32 to vector<8x128xf32>
    %364 = arith.addf %362, %363 : vector<8x128xf32>
    %365 = vector.extract_strided_slice %348 {offsets = [0, 256], sizes = [8, 128], strides = [1, 1]} : vector<8x512xf32> to vector<8x128xf32>
    %366 = math.tanh %365 : vector<8x128xf32>
    %367 = vector.extract_strided_slice %348 {offsets = [0, 384], sizes = [8, 128], strides = [1, 1]} : vector<8x512xf32> to vector<8x128xf32>
    %cst_183 = arith.constant 5.000000e-01 : f32
    %368 = vector.broadcast %cst_183 : f32 to vector<8x128xf32>
    %369 = arith.mulf %368, %367 : vector<8x128xf32>
    %370 = math.tanh %369 : vector<8x128xf32>
    %cst_184 = arith.constant 5.000000e-01 : f32
    %371 = vector.broadcast %cst_184 : f32 to vector<8x128xf32>
    %372 = arith.mulf %371, %370 : vector<8x128xf32>
    %cst_185 = arith.constant 5.000000e-01 : f32
    %373 = vector.broadcast %cst_185 : f32 to vector<8x128xf32>
    %374 = arith.addf %372, %373 : vector<8x128xf32>
    %375 = arith.mulf %364, %340 : vector<8x128xf32>
    %376 = arith.mulf %356, %366 : vector<8x128xf32>
    %377 = arith.addf %375, %376 : vector<8x128xf32>
    %378 = math.tanh %377 : vector<8x128xf32>
    %379 = arith.mulf %374, %378 : vector<8x128xf32>
    %c0_186 = arith.constant 0 : index
    %c0_187 = arith.constant 0 : index
    %380 = vector.load %arg5[%c0_186, %c0_187] : memref<8x128xf32, #tpu.memory_space<vmem>>, vector<8x128xf32>
    tpu.vector_store %arg5[%c0_186, %c0_187], %379 {strides = array<i32>} : memref<8x128xf32, #tpu.memory_space<vmem>>, vector<8x128xf32>,
    %c0_188 = arith.constant 0 : index
    %c0_189 = arith.constant 0 : index
    %381 = vector.load %arg6[%c0_188, %c0_189] : memref<8x128xf32, #tpu.memory_space<vmem>>, vector<8x128xf32>
    tpu.vector_store %arg6[%c0_188, %c0_189], %377 {strides = array<i32>} : memref<8x128xf32, #tpu.memory_space<vmem>>, vector<8x128xf32>,
    %382 = arith.truncf %379 : vector<8x128xf32> to vector<8x128xbf16>
    %383 = arith.index_cast %c7_i32 : i32 to index
    %c0_190 = arith.constant 0 : index
    %c0_191 = arith.constant 0 : index
    %384 = vector.load %arg3[%383, %c0_190, %c0_191] : memref<8x8x128xbf16, #tpu.memory_space<vmem>>, vector<1x8x128xbf16>
    %385 = vector.shape_cast %384 : vector<1x8x128xbf16> to vector<8x128xbf16>
    %386 = vector.shape_cast %382 : vector<8x128xbf16> to vector<1x8x128xbf16>
    tpu.vector_store %arg3[%383, %c0_190, %c0_191], %386 {strides = array<i32>} : memref<8x8x128xbf16, #tpu.memory_space<vmem>>, vector<1x8x128xbf16>,
    %c8_i32 = arith.constant 8 : i32
    return
  }
  func.func @transform_0(%arg0: i32) -> (i32, i32, i32) {
    %c0_i32 = arith.constant 0 : i32
    %c0_i32_0 = arith.constant 0 : i32
    %c0_i32_1 = arith.constant 0 : i32
    return %arg0, %c0_i32, %c0_i32_0 : i32, i32, i32
  }
  func.func @transform_2(%arg0: i32) -> (i32, i32, i32) {
    %c0_i32 = arith.constant 0 : i32
    %c0_i32_0 = arith.constant 0 : i32
    %c0_i32_1 = arith.constant 0 : i32
    return %arg0, %c0_i32, %c0_i32_0 : i32, i32, i32
  }
}

module attributes {stable_mosaic.version = 11 : i64} {
  func.func @_lstm_recurrent_kernel(%arg0: i32, %arg1: memref<8x8x512xbf16, #tpu.memory_space<vmem>>, %arg2: memref<128x512xbf16, #tpu.memory_space<any>>, %arg3: memref<8x128xf32, #tpu.memory_space<vmem>>, %arg4: memref<128x512xbf16, #tpu.memory_space<vmem>>, %arg5: memref<8x128xf32, #tpu.memory_space<vmem>>, %arg6: memref<8x128xf32, #tpu.memory_space<vmem>>, %arg7: memref<!tpu.dma_semaphore, #tpu.memory_space<semaphore_mem>>) attributes {dimension_semantics = [#tpu.dimension_semantics<arbitrary>], iteration_bounds = array<i64: 1>, scalar_prefetch = 0 : i64, scratch_operands = 4 : i64, tpu.core_type = #tpu.core_type<tc>, window_params = [{transform_indices = @transform_0, window_bounds = array<i64: 8, 8, 512>}, {}, {pipeline_mode = #tpu.pipeline_mode<synchronous>, transform_indices = @transform_2, window_bounds = array<i64: 8, 128>}]} {
    %c0_i32 = arith.constant 0 : i32
    %0 = arith.cmpi eq, %arg0, %c0_i32 : i32
    %1 = arith.extui %0 : i1 to i32
    %c0_i32_0 = arith.constant 0 : i32
    %2 = arith.cmpi ne, %1, %c0_i32_0 : i32
    scf.if %2 {
      %cst_178 = arith.constant 0.000000e+00 : f32
      %350 = vector.broadcast %cst_178 : f32 to vector<8x128xf32>
      %c0_179 = arith.constant 0 : index
      %c0_180 = arith.constant 0 : index
      %351 = vector.load %arg5[%c0_179, %c0_180] : memref<8x128xf32, #tpu.memory_space<vmem>>, vector<8x128xf32>
      tpu.vector_store %arg5[%c0_179, %c0_180], %350 {strides = array<i32>} : memref<8x128xf32, #tpu.memory_space<vmem>>, vector<8x128xf32>,
      %cst_181 = arith.constant 0.000000e+00 : f32
      %352 = vector.broadcast %cst_181 : f32 to vector<8x128xf32>
      %c0_182 = arith.constant 0 : index
      %c0_183 = arith.constant 0 : index
      %353 = vector.load %arg6[%c0_182, %c0_183] : memref<8x128xf32, #tpu.memory_space<vmem>>, vector<8x128xf32>
      tpu.vector_store %arg6[%c0_182, %c0_183], %352 {strides = array<i32>} : memref<8x128xf32, #tpu.memory_space<vmem>>, vector<8x128xf32>,
      tpu.enqueue_dma source(%arg2 : memref<128x512xbf16, #tpu.memory_space<any>>) target(%arg4 : memref<128x512xbf16, #tpu.memory_space<vmem>>) target_semaphore(%arg7 : memref<!tpu.dma_semaphore, #tpu.memory_space<semaphore_mem>>)
      tpu.wait_dma2 semaphore(%arg7 : memref<!tpu.dma_semaphore, #tpu.memory_space<semaphore_mem>>) src(%arg2 : memref<128x512xbf16, #tpu.memory_space<any>>) dst(%arg4 : memref<128x512xbf16, #tpu.memory_space<vmem>>)
    } else {
    }
    %c0_i32_1 = arith.constant 0 : i32
    %c0 = arith.constant 0 : index
    %c0_2 = arith.constant 0 : index
    %3 = vector.load %arg5[%c0, %c0_2] : memref<8x128xf32, #tpu.memory_space<vmem>>, vector<8x128xf32>
    %c0_3 = arith.constant 0 : index
    %c0_4 = arith.constant 0 : index
    %4 = vector.load %arg6[%c0_3, %c0_4] : memref<8x128xf32, #tpu.memory_space<vmem>>, vector<8x128xf32>
    %5 = arith.index_cast %c0_i32_1 : i32 to index
    %c0_5 = arith.constant 0 : index
    %c0_6 = arith.constant 0 : index
    %6 = vector.load %arg1[%5, %c0_5, %c0_6] : memref<8x8x512xbf16, #tpu.memory_space<vmem>>, vector<1x8x512xbf16>
    %7 = vector.shape_cast %6 : vector<1x8x512xbf16> to vector<8x512xbf16>
    %8 = arith.extf %7 : vector<8x512xbf16> to vector<8x512xf32>
    %9 = arith.truncf %3 : vector<8x128xf32> to vector<8x128xbf16>
    %c0_7 = arith.constant 0 : index
    %c0_8 = arith.constant 0 : index
    %10 = vector.load %arg4[%c0_7, %c0_8] : memref<128x512xbf16, #tpu.memory_space<vmem>>, vector<128x512xbf16>
    %cst = arith.constant dense<0.000000e+00> : vector<8x512xf32>
    %11 = tpu.matmul %9, %10, %cst {dimension_numbers = #tpu.dot_dimension_numbers<[1], [0], [0], [1], [0, 0, 1, 1], [], []>} : vector<8x128xbf16>, vector<128x512xbf16>, vector<8x512xf32> -> vector<8x512xf32>
    %12 = arith.addf %8, %11 : vector<8x512xf32>
    %13 = vector.extract_strided_slice %12 {offsets = [0, 0], sizes = [8, 128], strides = [1, 1]} : vector<8x512xf32> to vector<8x128xf32>
    %cst_9 = arith.constant 5.000000e-01 : f32
    %14 = vector.broadcast %cst_9 : f32 to vector<8x128xf32>
    %15 = arith.mulf %14, %13 : vector<8x128xf32>
    %16 = math.tanh %15 : vector<8x128xf32>
    %cst_10 = arith.constant 5.000000e-01 : f32
    %17 = vector.broadcast %cst_10 : f32 to vector<8x128xf32>
    %18 = arith.mulf %17, %16 : vector<8x128xf32>
    %cst_11 = arith.constant 5.000000e-01 : f32
    %19 = vector.broadcast %cst_11 : f32 to vector<8x128xf32>
    %20 = arith.addf %18, %19 : vector<8x128xf32>
    %21 = vector.extract_strided_slice %12 {offsets = [0, 128], sizes = [8, 128], strides = [1, 1]} : vector<8x512xf32> to vector<8x128xf32>
    %cst_12 = arith.constant 5.000000e-01 : f32
    %22 = vector.broadcast %cst_12 : f32 to vector<8x128xf32>
    %23 = arith.mulf %22, %21 : vector<8x128xf32>
    %24 = math.tanh %23 : vector<8x128xf32>
    %cst_13 = arith.constant 5.000000e-01 : f32
    %25 = vector.broadcast %cst_13 : f32 to vector<8x128xf32>
    %26 = arith.mulf %25, %24 : vector<8x128xf32>
    %cst_14 = arith.constant 5.000000e-01 : f32
    %27 = vector.broadcast %cst_14 : f32 to vector<8x128xf32>
    %28 = arith.addf %26, %27 : vector<8x128xf32>
    %29 = vector.extract_strided_slice %12 {offsets = [0, 256], sizes = [8, 128], strides = [1, 1]} : vector<8x512xf32> to vector<8x128xf32>
    %30 = math.tanh %29 : vector<8x128xf32>
    %31 = vector.extract_strided_slice %12 {offsets = [0, 384], sizes = [8, 128], strides = [1, 1]} : vector<8x512xf32> to vector<8x128xf32>
    %cst_15 = arith.constant 5.000000e-01 : f32
    %32 = vector.broadcast %cst_15 : f32 to vector<8x128xf32>
    %33 = arith.mulf %32, %31 : vector<8x128xf32>
    %34 = math.tanh %33 : vector<8x128xf32>
    %cst_16 = arith.constant 5.000000e-01 : f32
    %35 = vector.broadcast %cst_16 : f32 to vector<8x128xf32>
    %36 = arith.mulf %35, %34 : vector<8x128xf32>
    %cst_17 = arith.constant 5.000000e-01 : f32
    %37 = vector.broadcast %cst_17 : f32 to vector<8x128xf32>
    %38 = arith.addf %36, %37 : vector<8x128xf32>
    %39 = arith.mulf %28, %4 : vector<8x128xf32>
    %40 = arith.mulf %20, %30 : vector<8x128xf32>
    %41 = arith.addf %39, %40 : vector<8x128xf32>
    %42 = math.tanh %41 : vector<8x128xf32>
    %43 = arith.mulf %38, %42 : vector<8x128xf32>
    %c0_18 = arith.constant 0 : index
    %c0_19 = arith.constant 0 : index
    %44 = vector.load %arg5[%c0_18, %c0_19] : memref<8x128xf32, #tpu.memory_space<vmem>>, vector<8x128xf32>
    tpu.vector_store %arg5[%c0_18, %c0_19], %43 {strides = array<i32>} : memref<8x128xf32, #tpu.memory_space<vmem>>, vector<8x128xf32>,
    %c0_20 = arith.constant 0 : index
    %c0_21 = arith.constant 0 : index
    %45 = vector.load %arg6[%c0_20, %c0_21] : memref<8x128xf32, #tpu.memory_space<vmem>>, vector<8x128xf32>
    tpu.vector_store %arg6[%c0_20, %c0_21], %41 {strides = array<i32>} : memref<8x128xf32, #tpu.memory_space<vmem>>, vector<8x128xf32>,
    %c1_i32 = arith.constant 1 : i32
    %c0_22 = arith.constant 0 : index
    %c0_23 = arith.constant 0 : index
    %46 = vector.load %arg5[%c0_22, %c0_23] : memref<8x128xf32, #tpu.memory_space<vmem>>, vector<8x128xf32>
    %c0_24 = arith.constant 0 : index
    %c0_25 = arith.constant 0 : index
    %47 = vector.load %arg6[%c0_24, %c0_25] : memref<8x128xf32, #tpu.memory_space<vmem>>, vector<8x128xf32>
    %48 = arith.index_cast %c1_i32 : i32 to index
    %c0_26 = arith.constant 0 : index
    %c0_27 = arith.constant 0 : index
    %49 = vector.load %arg1[%48, %c0_26, %c0_27] : memref<8x8x512xbf16, #tpu.memory_space<vmem>>, vector<1x8x512xbf16>
    %50 = vector.shape_cast %49 : vector<1x8x512xbf16> to vector<8x512xbf16>
    %51 = arith.extf %50 : vector<8x512xbf16> to vector<8x512xf32>
    %52 = arith.truncf %46 : vector<8x128xf32> to vector<8x128xbf16>
    %c0_28 = arith.constant 0 : index
    %c0_29 = arith.constant 0 : index
    %53 = vector.load %arg4[%c0_28, %c0_29] : memref<128x512xbf16, #tpu.memory_space<vmem>>, vector<128x512xbf16>
    %cst_30 = arith.constant dense<0.000000e+00> : vector<8x512xf32>
    %54 = tpu.matmul %52, %53, %cst_30 {dimension_numbers = #tpu.dot_dimension_numbers<[1], [0], [0], [1], [0, 0, 1, 1], [], []>} : vector<8x128xbf16>, vector<128x512xbf16>, vector<8x512xf32> -> vector<8x512xf32>
    %55 = arith.addf %51, %54 : vector<8x512xf32>
    %56 = vector.extract_strided_slice %55 {offsets = [0, 0], sizes = [8, 128], strides = [1, 1]} : vector<8x512xf32> to vector<8x128xf32>
    %cst_31 = arith.constant 5.000000e-01 : f32
    %57 = vector.broadcast %cst_31 : f32 to vector<8x128xf32>
    %58 = arith.mulf %57, %56 : vector<8x128xf32>
    %59 = math.tanh %58 : vector<8x128xf32>
    %cst_32 = arith.constant 5.000000e-01 : f32
    %60 = vector.broadcast %cst_32 : f32 to vector<8x128xf32>
    %61 = arith.mulf %60, %59 : vector<8x128xf32>
    %cst_33 = arith.constant 5.000000e-01 : f32
    %62 = vector.broadcast %cst_33 : f32 to vector<8x128xf32>
    %63 = arith.addf %61, %62 : vector<8x128xf32>
    %64 = vector.extract_strided_slice %55 {offsets = [0, 128], sizes = [8, 128], strides = [1, 1]} : vector<8x512xf32> to vector<8x128xf32>
    %cst_34 = arith.constant 5.000000e-01 : f32
    %65 = vector.broadcast %cst_34 : f32 to vector<8x128xf32>
    %66 = arith.mulf %65, %64 : vector<8x128xf32>
    %67 = math.tanh %66 : vector<8x128xf32>
    %cst_35 = arith.constant 5.000000e-01 : f32
    %68 = vector.broadcast %cst_35 : f32 to vector<8x128xf32>
    %69 = arith.mulf %68, %67 : vector<8x128xf32>
    %cst_36 = arith.constant 5.000000e-01 : f32
    %70 = vector.broadcast %cst_36 : f32 to vector<8x128xf32>
    %71 = arith.addf %69, %70 : vector<8x128xf32>
    %72 = vector.extract_strided_slice %55 {offsets = [0, 256], sizes = [8, 128], strides = [1, 1]} : vector<8x512xf32> to vector<8x128xf32>
    %73 = math.tanh %72 : vector<8x128xf32>
    %74 = vector.extract_strided_slice %55 {offsets = [0, 384], sizes = [8, 128], strides = [1, 1]} : vector<8x512xf32> to vector<8x128xf32>
    %cst_37 = arith.constant 5.000000e-01 : f32
    %75 = vector.broadcast %cst_37 : f32 to vector<8x128xf32>
    %76 = arith.mulf %75, %74 : vector<8x128xf32>
    %77 = math.tanh %76 : vector<8x128xf32>
    %cst_38 = arith.constant 5.000000e-01 : f32
    %78 = vector.broadcast %cst_38 : f32 to vector<8x128xf32>
    %79 = arith.mulf %78, %77 : vector<8x128xf32>
    %cst_39 = arith.constant 5.000000e-01 : f32
    %80 = vector.broadcast %cst_39 : f32 to vector<8x128xf32>
    %81 = arith.addf %79, %80 : vector<8x128xf32>
    %82 = arith.mulf %71, %47 : vector<8x128xf32>
    %83 = arith.mulf %63, %73 : vector<8x128xf32>
    %84 = arith.addf %82, %83 : vector<8x128xf32>
    %85 = math.tanh %84 : vector<8x128xf32>
    %86 = arith.mulf %81, %85 : vector<8x128xf32>
    %c0_40 = arith.constant 0 : index
    %c0_41 = arith.constant 0 : index
    %87 = vector.load %arg5[%c0_40, %c0_41] : memref<8x128xf32, #tpu.memory_space<vmem>>, vector<8x128xf32>
    tpu.vector_store %arg5[%c0_40, %c0_41], %86 {strides = array<i32>} : memref<8x128xf32, #tpu.memory_space<vmem>>, vector<8x128xf32>,
    %c0_42 = arith.constant 0 : index
    %c0_43 = arith.constant 0 : index
    %88 = vector.load %arg6[%c0_42, %c0_43] : memref<8x128xf32, #tpu.memory_space<vmem>>, vector<8x128xf32>
    tpu.vector_store %arg6[%c0_42, %c0_43], %84 {strides = array<i32>} : memref<8x128xf32, #tpu.memory_space<vmem>>, vector<8x128xf32>,
    %c2_i32 = arith.constant 2 : i32
    %c0_44 = arith.constant 0 : index
    %c0_45 = arith.constant 0 : index
    %89 = vector.load %arg5[%c0_44, %c0_45] : memref<8x128xf32, #tpu.memory_space<vmem>>, vector<8x128xf32>
    %c0_46 = arith.constant 0 : index
    %c0_47 = arith.constant 0 : index
    %90 = vector.load %arg6[%c0_46, %c0_47] : memref<8x128xf32, #tpu.memory_space<vmem>>, vector<8x128xf32>
    %91 = arith.index_cast %c2_i32 : i32 to index
    %c0_48 = arith.constant 0 : index
    %c0_49 = arith.constant 0 : index
    %92 = vector.load %arg1[%91, %c0_48, %c0_49] : memref<8x8x512xbf16, #tpu.memory_space<vmem>>, vector<1x8x512xbf16>
    %93 = vector.shape_cast %92 : vector<1x8x512xbf16> to vector<8x512xbf16>
    %94 = arith.extf %93 : vector<8x512xbf16> to vector<8x512xf32>
    %95 = arith.truncf %89 : vector<8x128xf32> to vector<8x128xbf16>
    %c0_50 = arith.constant 0 : index
    %c0_51 = arith.constant 0 : index
    %96 = vector.load %arg4[%c0_50, %c0_51] : memref<128x512xbf16, #tpu.memory_space<vmem>>, vector<128x512xbf16>
    %cst_52 = arith.constant dense<0.000000e+00> : vector<8x512xf32>
    %97 = tpu.matmul %95, %96, %cst_52 {dimension_numbers = #tpu.dot_dimension_numbers<[1], [0], [0], [1], [0, 0, 1, 1], [], []>} : vector<8x128xbf16>, vector<128x512xbf16>, vector<8x512xf32> -> vector<8x512xf32>
    %98 = arith.addf %94, %97 : vector<8x512xf32>
    %99 = vector.extract_strided_slice %98 {offsets = [0, 0], sizes = [8, 128], strides = [1, 1]} : vector<8x512xf32> to vector<8x128xf32>
    %cst_53 = arith.constant 5.000000e-01 : f32
    %100 = vector.broadcast %cst_53 : f32 to vector<8x128xf32>
    %101 = arith.mulf %100, %99 : vector<8x128xf32>
    %102 = math.tanh %101 : vector<8x128xf32>
    %cst_54 = arith.constant 5.000000e-01 : f32
    %103 = vector.broadcast %cst_54 : f32 to vector<8x128xf32>
    %104 = arith.mulf %103, %102 : vector<8x128xf32>
    %cst_55 = arith.constant 5.000000e-01 : f32
    %105 = vector.broadcast %cst_55 : f32 to vector<8x128xf32>
    %106 = arith.addf %104, %105 : vector<8x128xf32>
    %107 = vector.extract_strided_slice %98 {offsets = [0, 128], sizes = [8, 128], strides = [1, 1]} : vector<8x512xf32> to vector<8x128xf32>
    %cst_56 = arith.constant 5.000000e-01 : f32
    %108 = vector.broadcast %cst_56 : f32 to vector<8x128xf32>
    %109 = arith.mulf %108, %107 : vector<8x128xf32>
    %110 = math.tanh %109 : vector<8x128xf32>
    %cst_57 = arith.constant 5.000000e-01 : f32
    %111 = vector.broadcast %cst_57 : f32 to vector<8x128xf32>
    %112 = arith.mulf %111, %110 : vector<8x128xf32>
    %cst_58 = arith.constant 5.000000e-01 : f32
    %113 = vector.broadcast %cst_58 : f32 to vector<8x128xf32>
    %114 = arith.addf %112, %113 : vector<8x128xf32>
    %115 = vector.extract_strided_slice %98 {offsets = [0, 256], sizes = [8, 128], strides = [1, 1]} : vector<8x512xf32> to vector<8x128xf32>
    %116 = math.tanh %115 : vector<8x128xf32>
    %117 = vector.extract_strided_slice %98 {offsets = [0, 384], sizes = [8, 128], strides = [1, 1]} : vector<8x512xf32> to vector<8x128xf32>
    %cst_59 = arith.constant 5.000000e-01 : f32
    %118 = vector.broadcast %cst_59 : f32 to vector<8x128xf32>
    %119 = arith.mulf %118, %117 : vector<8x128xf32>
    %120 = math.tanh %119 : vector<8x128xf32>
    %cst_60 = arith.constant 5.000000e-01 : f32
    %121 = vector.broadcast %cst_60 : f32 to vector<8x128xf32>
    %122 = arith.mulf %121, %120 : vector<8x128xf32>
    %cst_61 = arith.constant 5.000000e-01 : f32
    %123 = vector.broadcast %cst_61 : f32 to vector<8x128xf32>
    %124 = arith.addf %122, %123 : vector<8x128xf32>
    %125 = arith.mulf %114, %90 : vector<8x128xf32>
    %126 = arith.mulf %106, %116 : vector<8x128xf32>
    %127 = arith.addf %125, %126 : vector<8x128xf32>
    %128 = math.tanh %127 : vector<8x128xf32>
    %129 = arith.mulf %124, %128 : vector<8x128xf32>
    %c0_62 = arith.constant 0 : index
    %c0_63 = arith.constant 0 : index
    %130 = vector.load %arg5[%c0_62, %c0_63] : memref<8x128xf32, #tpu.memory_space<vmem>>, vector<8x128xf32>
    tpu.vector_store %arg5[%c0_62, %c0_63], %129 {strides = array<i32>} : memref<8x128xf32, #tpu.memory_space<vmem>>, vector<8x128xf32>,
    %c0_64 = arith.constant 0 : index
    %c0_65 = arith.constant 0 : index
    %131 = vector.load %arg6[%c0_64, %c0_65] : memref<8x128xf32, #tpu.memory_space<vmem>>, vector<8x128xf32>
    tpu.vector_store %arg6[%c0_64, %c0_65], %127 {strides = array<i32>} : memref<8x128xf32, #tpu.memory_space<vmem>>, vector<8x128xf32>,
    %c3_i32 = arith.constant 3 : i32
    %c0_66 = arith.constant 0 : index
    %c0_67 = arith.constant 0 : index
    %132 = vector.load %arg5[%c0_66, %c0_67] : memref<8x128xf32, #tpu.memory_space<vmem>>, vector<8x128xf32>
    %c0_68 = arith.constant 0 : index
    %c0_69 = arith.constant 0 : index
    %133 = vector.load %arg6[%c0_68, %c0_69] : memref<8x128xf32, #tpu.memory_space<vmem>>, vector<8x128xf32>
    %134 = arith.index_cast %c3_i32 : i32 to index
    %c0_70 = arith.constant 0 : index
    %c0_71 = arith.constant 0 : index
    %135 = vector.load %arg1[%134, %c0_70, %c0_71] : memref<8x8x512xbf16, #tpu.memory_space<vmem>>, vector<1x8x512xbf16>
    %136 = vector.shape_cast %135 : vector<1x8x512xbf16> to vector<8x512xbf16>
    %137 = arith.extf %136 : vector<8x512xbf16> to vector<8x512xf32>
    %138 = arith.truncf %132 : vector<8x128xf32> to vector<8x128xbf16>
    %c0_72 = arith.constant 0 : index
    %c0_73 = arith.constant 0 : index
    %139 = vector.load %arg4[%c0_72, %c0_73] : memref<128x512xbf16, #tpu.memory_space<vmem>>, vector<128x512xbf16>
    %cst_74 = arith.constant dense<0.000000e+00> : vector<8x512xf32>
    %140 = tpu.matmul %138, %139, %cst_74 {dimension_numbers = #tpu.dot_dimension_numbers<[1], [0], [0], [1], [0, 0, 1, 1], [], []>} : vector<8x128xbf16>, vector<128x512xbf16>, vector<8x512xf32> -> vector<8x512xf32>
    %141 = arith.addf %137, %140 : vector<8x512xf32>
    %142 = vector.extract_strided_slice %141 {offsets = [0, 0], sizes = [8, 128], strides = [1, 1]} : vector<8x512xf32> to vector<8x128xf32>
    %cst_75 = arith.constant 5.000000e-01 : f32
    %143 = vector.broadcast %cst_75 : f32 to vector<8x128xf32>
    %144 = arith.mulf %143, %142 : vector<8x128xf32>
    %145 = math.tanh %144 : vector<8x128xf32>
    %cst_76 = arith.constant 5.000000e-01 : f32
    %146 = vector.broadcast %cst_76 : f32 to vector<8x128xf32>
    %147 = arith.mulf %146, %145 : vector<8x128xf32>
    %cst_77 = arith.constant 5.000000e-01 : f32
    %148 = vector.broadcast %cst_77 : f32 to vector<8x128xf32>
    %149 = arith.addf %147, %148 : vector<8x128xf32>
    %150 = vector.extract_strided_slice %141 {offsets = [0, 128], sizes = [8, 128], strides = [1, 1]} : vector<8x512xf32> to vector<8x128xf32>
    %cst_78 = arith.constant 5.000000e-01 : f32
    %151 = vector.broadcast %cst_78 : f32 to vector<8x128xf32>
    %152 = arith.mulf %151, %150 : vector<8x128xf32>
    %153 = math.tanh %152 : vector<8x128xf32>
    %cst_79 = arith.constant 5.000000e-01 : f32
    %154 = vector.broadcast %cst_79 : f32 to vector<8x128xf32>
    %155 = arith.mulf %154, %153 : vector<8x128xf32>
    %cst_80 = arith.constant 5.000000e-01 : f32
    %156 = vector.broadcast %cst_80 : f32 to vector<8x128xf32>
    %157 = arith.addf %155, %156 : vector<8x128xf32>
    %158 = vector.extract_strided_slice %141 {offsets = [0, 256], sizes = [8, 128], strides = [1, 1]} : vector<8x512xf32> to vector<8x128xf32>
    %159 = math.tanh %158 : vector<8x128xf32>
    %160 = vector.extract_strided_slice %141 {offsets = [0, 384], sizes = [8, 128], strides = [1, 1]} : vector<8x512xf32> to vector<8x128xf32>
    %cst_81 = arith.constant 5.000000e-01 : f32
    %161 = vector.broadcast %cst_81 : f32 to vector<8x128xf32>
    %162 = arith.mulf %161, %160 : vector<8x128xf32>
    %163 = math.tanh %162 : vector<8x128xf32>
    %cst_82 = arith.constant 5.000000e-01 : f32
    %164 = vector.broadcast %cst_82 : f32 to vector<8x128xf32>
    %165 = arith.mulf %164, %163 : vector<8x128xf32>
    %cst_83 = arith.constant 5.000000e-01 : f32
    %166 = vector.broadcast %cst_83 : f32 to vector<8x128xf32>
    %167 = arith.addf %165, %166 : vector<8x128xf32>
    %168 = arith.mulf %157, %133 : vector<8x128xf32>
    %169 = arith.mulf %149, %159 : vector<8x128xf32>
    %170 = arith.addf %168, %169 : vector<8x128xf32>
    %171 = math.tanh %170 : vector<8x128xf32>
    %172 = arith.mulf %167, %171 : vector<8x128xf32>
    %c0_84 = arith.constant 0 : index
    %c0_85 = arith.constant 0 : index
    %173 = vector.load %arg5[%c0_84, %c0_85] : memref<8x128xf32, #tpu.memory_space<vmem>>, vector<8x128xf32>
    tpu.vector_store %arg5[%c0_84, %c0_85], %172 {strides = array<i32>} : memref<8x128xf32, #tpu.memory_space<vmem>>, vector<8x128xf32>,
    %c0_86 = arith.constant 0 : index
    %c0_87 = arith.constant 0 : index
    %174 = vector.load %arg6[%c0_86, %c0_87] : memref<8x128xf32, #tpu.memory_space<vmem>>, vector<8x128xf32>
    tpu.vector_store %arg6[%c0_86, %c0_87], %170 {strides = array<i32>} : memref<8x128xf32, #tpu.memory_space<vmem>>, vector<8x128xf32>,
    %c4_i32 = arith.constant 4 : i32
    %c0_88 = arith.constant 0 : index
    %c0_89 = arith.constant 0 : index
    %175 = vector.load %arg5[%c0_88, %c0_89] : memref<8x128xf32, #tpu.memory_space<vmem>>, vector<8x128xf32>
    %c0_90 = arith.constant 0 : index
    %c0_91 = arith.constant 0 : index
    %176 = vector.load %arg6[%c0_90, %c0_91] : memref<8x128xf32, #tpu.memory_space<vmem>>, vector<8x128xf32>
    %177 = arith.index_cast %c4_i32 : i32 to index
    %c0_92 = arith.constant 0 : index
    %c0_93 = arith.constant 0 : index
    %178 = vector.load %arg1[%177, %c0_92, %c0_93] : memref<8x8x512xbf16, #tpu.memory_space<vmem>>, vector<1x8x512xbf16>
    %179 = vector.shape_cast %178 : vector<1x8x512xbf16> to vector<8x512xbf16>
    %180 = arith.extf %179 : vector<8x512xbf16> to vector<8x512xf32>
    %181 = arith.truncf %175 : vector<8x128xf32> to vector<8x128xbf16>
    %c0_94 = arith.constant 0 : index
    %c0_95 = arith.constant 0 : index
    %182 = vector.load %arg4[%c0_94, %c0_95] : memref<128x512xbf16, #tpu.memory_space<vmem>>, vector<128x512xbf16>
    %cst_96 = arith.constant dense<0.000000e+00> : vector<8x512xf32>
    %183 = tpu.matmul %181, %182, %cst_96 {dimension_numbers = #tpu.dot_dimension_numbers<[1], [0], [0], [1], [0, 0, 1, 1], [], []>} : vector<8x128xbf16>, vector<128x512xbf16>, vector<8x512xf32> -> vector<8x512xf32>
    %184 = arith.addf %180, %183 : vector<8x512xf32>
    %185 = vector.extract_strided_slice %184 {offsets = [0, 0], sizes = [8, 128], strides = [1, 1]} : vector<8x512xf32> to vector<8x128xf32>
    %cst_97 = arith.constant 5.000000e-01 : f32
    %186 = vector.broadcast %cst_97 : f32 to vector<8x128xf32>
    %187 = arith.mulf %186, %185 : vector<8x128xf32>
    %188 = math.tanh %187 : vector<8x128xf32>
    %cst_98 = arith.constant 5.000000e-01 : f32
    %189 = vector.broadcast %cst_98 : f32 to vector<8x128xf32>
    %190 = arith.mulf %189, %188 : vector<8x128xf32>
    %cst_99 = arith.constant 5.000000e-01 : f32
    %191 = vector.broadcast %cst_99 : f32 to vector<8x128xf32>
    %192 = arith.addf %190, %191 : vector<8x128xf32>
    %193 = vector.extract_strided_slice %184 {offsets = [0, 128], sizes = [8, 128], strides = [1, 1]} : vector<8x512xf32> to vector<8x128xf32>
    %cst_100 = arith.constant 5.000000e-01 : f32
    %194 = vector.broadcast %cst_100 : f32 to vector<8x128xf32>
    %195 = arith.mulf %194, %193 : vector<8x128xf32>
    %196 = math.tanh %195 : vector<8x128xf32>
    %cst_101 = arith.constant 5.000000e-01 : f32
    %197 = vector.broadcast %cst_101 : f32 to vector<8x128xf32>
    %198 = arith.mulf %197, %196 : vector<8x128xf32>
    %cst_102 = arith.constant 5.000000e-01 : f32
    %199 = vector.broadcast %cst_102 : f32 to vector<8x128xf32>
    %200 = arith.addf %198, %199 : vector<8x128xf32>
    %201 = vector.extract_strided_slice %184 {offsets = [0, 256], sizes = [8, 128], strides = [1, 1]} : vector<8x512xf32> to vector<8x128xf32>
    %202 = math.tanh %201 : vector<8x128xf32>
    %203 = vector.extract_strided_slice %184 {offsets = [0, 384], sizes = [8, 128], strides = [1, 1]} : vector<8x512xf32> to vector<8x128xf32>
    %cst_103 = arith.constant 5.000000e-01 : f32
    %204 = vector.broadcast %cst_103 : f32 to vector<8x128xf32>
    %205 = arith.mulf %204, %203 : vector<8x128xf32>
    %206 = math.tanh %205 : vector<8x128xf32>
    %cst_104 = arith.constant 5.000000e-01 : f32
    %207 = vector.broadcast %cst_104 : f32 to vector<8x128xf32>
    %208 = arith.mulf %207, %206 : vector<8x128xf32>
    %cst_105 = arith.constant 5.000000e-01 : f32
    %209 = vector.broadcast %cst_105 : f32 to vector<8x128xf32>
    %210 = arith.addf %208, %209 : vector<8x128xf32>
    %211 = arith.mulf %200, %176 : vector<8x128xf32>
    %212 = arith.mulf %192, %202 : vector<8x128xf32>
    %213 = arith.addf %211, %212 : vector<8x128xf32>
    %214 = math.tanh %213 : vector<8x128xf32>
    %215 = arith.mulf %210, %214 : vector<8x128xf32>
    %c0_106 = arith.constant 0 : index
    %c0_107 = arith.constant 0 : index
    %216 = vector.load %arg5[%c0_106, %c0_107] : memref<8x128xf32, #tpu.memory_space<vmem>>, vector<8x128xf32>
    tpu.vector_store %arg5[%c0_106, %c0_107], %215 {strides = array<i32>} : memref<8x128xf32, #tpu.memory_space<vmem>>, vector<8x128xf32>,
    %c0_108 = arith.constant 0 : index
    %c0_109 = arith.constant 0 : index
    %217 = vector.load %arg6[%c0_108, %c0_109] : memref<8x128xf32, #tpu.memory_space<vmem>>, vector<8x128xf32>
    tpu.vector_store %arg6[%c0_108, %c0_109], %213 {strides = array<i32>} : memref<8x128xf32, #tpu.memory_space<vmem>>, vector<8x128xf32>,
    %c5_i32 = arith.constant 5 : i32
    %c0_110 = arith.constant 0 : index
    %c0_111 = arith.constant 0 : index
    %218 = vector.load %arg5[%c0_110, %c0_111] : memref<8x128xf32, #tpu.memory_space<vmem>>, vector<8x128xf32>
    %c0_112 = arith.constant 0 : index
    %c0_113 = arith.constant 0 : index
    %219 = vector.load %arg6[%c0_112, %c0_113] : memref<8x128xf32, #tpu.memory_space<vmem>>, vector<8x128xf32>
    %220 = arith.index_cast %c5_i32 : i32 to index
    %c0_114 = arith.constant 0 : index
    %c0_115 = arith.constant 0 : index
    %221 = vector.load %arg1[%220, %c0_114, %c0_115] : memref<8x8x512xbf16, #tpu.memory_space<vmem>>, vector<1x8x512xbf16>
    %222 = vector.shape_cast %221 : vector<1x8x512xbf16> to vector<8x512xbf16>
    %223 = arith.extf %222 : vector<8x512xbf16> to vector<8x512xf32>
    %224 = arith.truncf %218 : vector<8x128xf32> to vector<8x128xbf16>
    %c0_116 = arith.constant 0 : index
    %c0_117 = arith.constant 0 : index
    %225 = vector.load %arg4[%c0_116, %c0_117] : memref<128x512xbf16, #tpu.memory_space<vmem>>, vector<128x512xbf16>
    %cst_118 = arith.constant dense<0.000000e+00> : vector<8x512xf32>
    %226 = tpu.matmul %224, %225, %cst_118 {dimension_numbers = #tpu.dot_dimension_numbers<[1], [0], [0], [1], [0, 0, 1, 1], [], []>} : vector<8x128xbf16>, vector<128x512xbf16>, vector<8x512xf32> -> vector<8x512xf32>
    %227 = arith.addf %223, %226 : vector<8x512xf32>
    %228 = vector.extract_strided_slice %227 {offsets = [0, 0], sizes = [8, 128], strides = [1, 1]} : vector<8x512xf32> to vector<8x128xf32>
    %cst_119 = arith.constant 5.000000e-01 : f32
    %229 = vector.broadcast %cst_119 : f32 to vector<8x128xf32>
    %230 = arith.mulf %229, %228 : vector<8x128xf32>
    %231 = math.tanh %230 : vector<8x128xf32>
    %cst_120 = arith.constant 5.000000e-01 : f32
    %232 = vector.broadcast %cst_120 : f32 to vector<8x128xf32>
    %233 = arith.mulf %232, %231 : vector<8x128xf32>
    %cst_121 = arith.constant 5.000000e-01 : f32
    %234 = vector.broadcast %cst_121 : f32 to vector<8x128xf32>
    %235 = arith.addf %233, %234 : vector<8x128xf32>
    %236 = vector.extract_strided_slice %227 {offsets = [0, 128], sizes = [8, 128], strides = [1, 1]} : vector<8x512xf32> to vector<8x128xf32>
    %cst_122 = arith.constant 5.000000e-01 : f32
    %237 = vector.broadcast %cst_122 : f32 to vector<8x128xf32>
    %238 = arith.mulf %237, %236 : vector<8x128xf32>
    %239 = math.tanh %238 : vector<8x128xf32>
    %cst_123 = arith.constant 5.000000e-01 : f32
    %240 = vector.broadcast %cst_123 : f32 to vector<8x128xf32>
    %241 = arith.mulf %240, %239 : vector<8x128xf32>
    %cst_124 = arith.constant 5.000000e-01 : f32
    %242 = vector.broadcast %cst_124 : f32 to vector<8x128xf32>
    %243 = arith.addf %241, %242 : vector<8x128xf32>
    %244 = vector.extract_strided_slice %227 {offsets = [0, 256], sizes = [8, 128], strides = [1, 1]} : vector<8x512xf32> to vector<8x128xf32>
    %245 = math.tanh %244 : vector<8x128xf32>
    %246 = vector.extract_strided_slice %227 {offsets = [0, 384], sizes = [8, 128], strides = [1, 1]} : vector<8x512xf32> to vector<8x128xf32>
    %cst_125 = arith.constant 5.000000e-01 : f32
    %247 = vector.broadcast %cst_125 : f32 to vector<8x128xf32>
    %248 = arith.mulf %247, %246 : vector<8x128xf32>
    %249 = math.tanh %248 : vector<8x128xf32>
    %cst_126 = arith.constant 5.000000e-01 : f32
    %250 = vector.broadcast %cst_126 : f32 to vector<8x128xf32>
    %251 = arith.mulf %250, %249 : vector<8x128xf32>
    %cst_127 = arith.constant 5.000000e-01 : f32
    %252 = vector.broadcast %cst_127 : f32 to vector<8x128xf32>
    %253 = arith.addf %251, %252 : vector<8x128xf32>
    %254 = arith.mulf %243, %219 : vector<8x128xf32>
    %255 = arith.mulf %235, %245 : vector<8x128xf32>
    %256 = arith.addf %254, %255 : vector<8x128xf32>
    %257 = math.tanh %256 : vector<8x128xf32>
    %258 = arith.mulf %253, %257 : vector<8x128xf32>
    %c0_128 = arith.constant 0 : index
    %c0_129 = arith.constant 0 : index
    %259 = vector.load %arg5[%c0_128, %c0_129] : memref<8x128xf32, #tpu.memory_space<vmem>>, vector<8x128xf32>
    tpu.vector_store %arg5[%c0_128, %c0_129], %258 {strides = array<i32>} : memref<8x128xf32, #tpu.memory_space<vmem>>, vector<8x128xf32>,
    %c0_130 = arith.constant 0 : index
    %c0_131 = arith.constant 0 : index
    %260 = vector.load %arg6[%c0_130, %c0_131] : memref<8x128xf32, #tpu.memory_space<vmem>>, vector<8x128xf32>
    tpu.vector_store %arg6[%c0_130, %c0_131], %256 {strides = array<i32>} : memref<8x128xf32, #tpu.memory_space<vmem>>, vector<8x128xf32>,
    %c6_i32 = arith.constant 6 : i32
    %c0_132 = arith.constant 0 : index
    %c0_133 = arith.constant 0 : index
    %261 = vector.load %arg5[%c0_132, %c0_133] : memref<8x128xf32, #tpu.memory_space<vmem>>, vector<8x128xf32>
    %c0_134 = arith.constant 0 : index
    %c0_135 = arith.constant 0 : index
    %262 = vector.load %arg6[%c0_134, %c0_135] : memref<8x128xf32, #tpu.memory_space<vmem>>, vector<8x128xf32>
    %263 = arith.index_cast %c6_i32 : i32 to index
    %c0_136 = arith.constant 0 : index
    %c0_137 = arith.constant 0 : index
    %264 = vector.load %arg1[%263, %c0_136, %c0_137] : memref<8x8x512xbf16, #tpu.memory_space<vmem>>, vector<1x8x512xbf16>
    %265 = vector.shape_cast %264 : vector<1x8x512xbf16> to vector<8x512xbf16>
    %266 = arith.extf %265 : vector<8x512xbf16> to vector<8x512xf32>
    %267 = arith.truncf %261 : vector<8x128xf32> to vector<8x128xbf16>
    %c0_138 = arith.constant 0 : index
    %c0_139 = arith.constant 0 : index
    %268 = vector.load %arg4[%c0_138, %c0_139] : memref<128x512xbf16, #tpu.memory_space<vmem>>, vector<128x512xbf16>
    %cst_140 = arith.constant dense<0.000000e+00> : vector<8x512xf32>
    %269 = tpu.matmul %267, %268, %cst_140 {dimension_numbers = #tpu.dot_dimension_numbers<[1], [0], [0], [1], [0, 0, 1, 1], [], []>} : vector<8x128xbf16>, vector<128x512xbf16>, vector<8x512xf32> -> vector<8x512xf32>
    %270 = arith.addf %266, %269 : vector<8x512xf32>
    %271 = vector.extract_strided_slice %270 {offsets = [0, 0], sizes = [8, 128], strides = [1, 1]} : vector<8x512xf32> to vector<8x128xf32>
    %cst_141 = arith.constant 5.000000e-01 : f32
    %272 = vector.broadcast %cst_141 : f32 to vector<8x128xf32>
    %273 = arith.mulf %272, %271 : vector<8x128xf32>
    %274 = math.tanh %273 : vector<8x128xf32>
    %cst_142 = arith.constant 5.000000e-01 : f32
    %275 = vector.broadcast %cst_142 : f32 to vector<8x128xf32>
    %276 = arith.mulf %275, %274 : vector<8x128xf32>
    %cst_143 = arith.constant 5.000000e-01 : f32
    %277 = vector.broadcast %cst_143 : f32 to vector<8x128xf32>
    %278 = arith.addf %276, %277 : vector<8x128xf32>
    %279 = vector.extract_strided_slice %270 {offsets = [0, 128], sizes = [8, 128], strides = [1, 1]} : vector<8x512xf32> to vector<8x128xf32>
    %cst_144 = arith.constant 5.000000e-01 : f32
    %280 = vector.broadcast %cst_144 : f32 to vector<8x128xf32>
    %281 = arith.mulf %280, %279 : vector<8x128xf32>
    %282 = math.tanh %281 : vector<8x128xf32>
    %cst_145 = arith.constant 5.000000e-01 : f32
    %283 = vector.broadcast %cst_145 : f32 to vector<8x128xf32>
    %284 = arith.mulf %283, %282 : vector<8x128xf32>
    %cst_146 = arith.constant 5.000000e-01 : f32
    %285 = vector.broadcast %cst_146 : f32 to vector<8x128xf32>
    %286 = arith.addf %284, %285 : vector<8x128xf32>
    %287 = vector.extract_strided_slice %270 {offsets = [0, 256], sizes = [8, 128], strides = [1, 1]} : vector<8x512xf32> to vector<8x128xf32>
    %288 = math.tanh %287 : vector<8x128xf32>
    %289 = vector.extract_strided_slice %270 {offsets = [0, 384], sizes = [8, 128], strides = [1, 1]} : vector<8x512xf32> to vector<8x128xf32>
    %cst_147 = arith.constant 5.000000e-01 : f32
    %290 = vector.broadcast %cst_147 : f32 to vector<8x128xf32>
    %291 = arith.mulf %290, %289 : vector<8x128xf32>
    %292 = math.tanh %291 : vector<8x128xf32>
    %cst_148 = arith.constant 5.000000e-01 : f32
    %293 = vector.broadcast %cst_148 : f32 to vector<8x128xf32>
    %294 = arith.mulf %293, %292 : vector<8x128xf32>
    %cst_149 = arith.constant 5.000000e-01 : f32
    %295 = vector.broadcast %cst_149 : f32 to vector<8x128xf32>
    %296 = arith.addf %294, %295 : vector<8x128xf32>
    %297 = arith.mulf %286, %262 : vector<8x128xf32>
    %298 = arith.mulf %278, %288 : vector<8x128xf32>
    %299 = arith.addf %297, %298 : vector<8x128xf32>
    %300 = math.tanh %299 : vector<8x128xf32>
    %301 = arith.mulf %296, %300 : vector<8x128xf32>
    %c0_150 = arith.constant 0 : index
    %c0_151 = arith.constant 0 : index
    %302 = vector.load %arg5[%c0_150, %c0_151] : memref<8x128xf32, #tpu.memory_space<vmem>>, vector<8x128xf32>
    tpu.vector_store %arg5[%c0_150, %c0_151], %301 {strides = array<i32>} : memref<8x128xf32, #tpu.memory_space<vmem>>, vector<8x128xf32>,
    %c0_152 = arith.constant 0 : index
    %c0_153 = arith.constant 0 : index
    %303 = vector.load %arg6[%c0_152, %c0_153] : memref<8x128xf32, #tpu.memory_space<vmem>>, vector<8x128xf32>
    tpu.vector_store %arg6[%c0_152, %c0_153], %299 {strides = array<i32>} : memref<8x128xf32, #tpu.memory_space<vmem>>, vector<8x128xf32>,
    %c7_i32 = arith.constant 7 : i32
    %c0_154 = arith.constant 0 : index
    %c0_155 = arith.constant 0 : index
    %304 = vector.load %arg5[%c0_154, %c0_155] : memref<8x128xf32, #tpu.memory_space<vmem>>, vector<8x128xf32>
    %c0_156 = arith.constant 0 : index
    %c0_157 = arith.constant 0 : index
    %305 = vector.load %arg6[%c0_156, %c0_157] : memref<8x128xf32, #tpu.memory_space<vmem>>, vector<8x128xf32>
    %306 = arith.index_cast %c7_i32 : i32 to index
    %c0_158 = arith.constant 0 : index
    %c0_159 = arith.constant 0 : index
    %307 = vector.load %arg1[%306, %c0_158, %c0_159] : memref<8x8x512xbf16, #tpu.memory_space<vmem>>, vector<1x8x512xbf16>
    %308 = vector.shape_cast %307 : vector<1x8x512xbf16> to vector<8x512xbf16>
    %309 = arith.extf %308 : vector<8x512xbf16> to vector<8x512xf32>
    %310 = arith.truncf %304 : vector<8x128xf32> to vector<8x128xbf16>
    %c0_160 = arith.constant 0 : index
    %c0_161 = arith.constant 0 : index
    %311 = vector.load %arg4[%c0_160, %c0_161] : memref<128x512xbf16, #tpu.memory_space<vmem>>, vector<128x512xbf16>
    %cst_162 = arith.constant dense<0.000000e+00> : vector<8x512xf32>
    %312 = tpu.matmul %310, %311, %cst_162 {dimension_numbers = #tpu.dot_dimension_numbers<[1], [0], [0], [1], [0, 0, 1, 1], [], []>} : vector<8x128xbf16>, vector<128x512xbf16>, vector<8x512xf32> -> vector<8x512xf32>
    %313 = arith.addf %309, %312 : vector<8x512xf32>
    %314 = vector.extract_strided_slice %313 {offsets = [0, 0], sizes = [8, 128], strides = [1, 1]} : vector<8x512xf32> to vector<8x128xf32>
    %cst_163 = arith.constant 5.000000e-01 : f32
    %315 = vector.broadcast %cst_163 : f32 to vector<8x128xf32>
    %316 = arith.mulf %315, %314 : vector<8x128xf32>
    %317 = math.tanh %316 : vector<8x128xf32>
    %cst_164 = arith.constant 5.000000e-01 : f32
    %318 = vector.broadcast %cst_164 : f32 to vector<8x128xf32>
    %319 = arith.mulf %318, %317 : vector<8x128xf32>
    %cst_165 = arith.constant 5.000000e-01 : f32
    %320 = vector.broadcast %cst_165 : f32 to vector<8x128xf32>
    %321 = arith.addf %319, %320 : vector<8x128xf32>
    %322 = vector.extract_strided_slice %313 {offsets = [0, 128], sizes = [8, 128], strides = [1, 1]} : vector<8x512xf32> to vector<8x128xf32>
    %cst_166 = arith.constant 5.000000e-01 : f32
    %323 = vector.broadcast %cst_166 : f32 to vector<8x128xf32>
    %324 = arith.mulf %323, %322 : vector<8x128xf32>
    %325 = math.tanh %324 : vector<8x128xf32>
    %cst_167 = arith.constant 5.000000e-01 : f32
    %326 = vector.broadcast %cst_167 : f32 to vector<8x128xf32>
    %327 = arith.mulf %326, %325 : vector<8x128xf32>
    %cst_168 = arith.constant 5.000000e-01 : f32
    %328 = vector.broadcast %cst_168 : f32 to vector<8x128xf32>
    %329 = arith.addf %327, %328 : vector<8x128xf32>
    %330 = vector.extract_strided_slice %313 {offsets = [0, 256], sizes = [8, 128], strides = [1, 1]} : vector<8x512xf32> to vector<8x128xf32>
    %331 = math.tanh %330 : vector<8x128xf32>
    %332 = vector.extract_strided_slice %313 {offsets = [0, 384], sizes = [8, 128], strides = [1, 1]} : vector<8x512xf32> to vector<8x128xf32>
    %cst_169 = arith.constant 5.000000e-01 : f32
    %333 = vector.broadcast %cst_169 : f32 to vector<8x128xf32>
    %334 = arith.mulf %333, %332 : vector<8x128xf32>
    %335 = math.tanh %334 : vector<8x128xf32>
    %cst_170 = arith.constant 5.000000e-01 : f32
    %336 = vector.broadcast %cst_170 : f32 to vector<8x128xf32>
    %337 = arith.mulf %336, %335 : vector<8x128xf32>
    %cst_171 = arith.constant 5.000000e-01 : f32
    %338 = vector.broadcast %cst_171 : f32 to vector<8x128xf32>
    %339 = arith.addf %337, %338 : vector<8x128xf32>
    %340 = arith.mulf %329, %305 : vector<8x128xf32>
    %341 = arith.mulf %321, %331 : vector<8x128xf32>
    %342 = arith.addf %340, %341 : vector<8x128xf32>
    %343 = math.tanh %342 : vector<8x128xf32>
    %344 = arith.mulf %339, %343 : vector<8x128xf32>
    %c0_172 = arith.constant 0 : index
    %c0_173 = arith.constant 0 : index
    %345 = vector.load %arg5[%c0_172, %c0_173] : memref<8x128xf32, #tpu.memory_space<vmem>>, vector<8x128xf32>
    tpu.vector_store %arg5[%c0_172, %c0_173], %344 {strides = array<i32>} : memref<8x128xf32, #tpu.memory_space<vmem>>, vector<8x128xf32>,
    %c0_174 = arith.constant 0 : index
    %c0_175 = arith.constant 0 : index
    %346 = vector.load %arg6[%c0_174, %c0_175] : memref<8x128xf32, #tpu.memory_space<vmem>>, vector<8x128xf32>
    tpu.vector_store %arg6[%c0_174, %c0_175], %342 {strides = array<i32>} : memref<8x128xf32, #tpu.memory_space<vmem>>, vector<8x128xf32>,
    %c8_i32 = arith.constant 8 : i32
    %c0_i32_176 = arith.constant 0 : i32
    %347 = arith.cmpi eq, %arg0, %c0_i32_176 : i32
    %348 = arith.extui %347 : i1 to i32
    %c0_i32_177 = arith.constant 0 : i32
    %349 = arith.cmpi ne, %348, %c0_i32_177 : i32
    scf.if %349 {
      %c0_178 = arith.constant 0 : index
      %c0_179 = arith.constant 0 : index
      %350 = vector.load %arg5[%c0_178, %c0_179] : memref<8x128xf32, #tpu.memory_space<vmem>>, vector<8x128xf32>
      %c0_180 = arith.constant 0 : index
      %c0_181 = arith.constant 0 : index
      %351 = vector.load %arg3[%c0_180, %c0_181] : memref<8x128xf32, #tpu.memory_space<vmem>>, vector<8x128xf32>
      tpu.vector_store %arg3[%c0_180, %c0_181], %350 {strides = array<i32>} : memref<8x128xf32, #tpu.memory_space<vmem>>, vector<8x128xf32>,
    } else {
    }
    return
  }
  func.func @transform_0(%arg0: i32) -> (i32, i32, i32) {
    %c0_i32 = arith.constant 0 : i32
    %c0_i32_0 = arith.constant 0 : i32
    %c0_i32_1 = arith.constant 0 : i32
    return %arg0, %c0_i32, %c0_i32_0 : i32, i32, i32
  }
  func.func @transform_2(%arg0: i32) -> (i32, i32) {
    %c0_i32 = arith.constant 0 : i32
    %c0_i32_0 = arith.constant 0 : i32
    %c0_i32_1 = arith.constant 0 : i32
    return %c0_i32, %c0_i32_0 : i32, i32
  }
}

</mosaic_0001>

<llo_original>
// kernel: lstm_processor_forward.3
$region0: #{lstm_processor_forward.3}
  #allocation0 [shape = 'u32[]', space=smem, size = 0x4, offset = 0x4, fixed_abs, tag = 'smem constant byte address 0x4 - core index']
  #allocation1 [shape = 'u32[144,128]{1,0:T(1,128)}', space=vmem, size = 0x12000, scoped, tag = 'internal scratch']
  #allocation2 [shape = 'bf16[128,512]{1,0:T(16,128)(2,1)}', space=vmem, size = 0x20000, scoped, tag = 'scratch operand']
  #allocation3 [shape = 'f32[8,128]{1,0:T(8,128)}', space=vmem, size = 0x1000, scoped, tag = 'scratch operand']
  #allocation4 [shape = 'f32[8,128]{1,0:T(8,128)}', space=vmem, size = 0x1000, scoped, tag = 'scratch operand']
  #allocation5 [shape = 's32[1]{0}', space=sflag, size = 0x4, scoped, tag = 'scratch operand']
  #allocation6 [shape = 's32[]', space=sflag, size = 0x4, offset = 0, fixed_abs, tag = 'sflag constant byte address 0x0 - dummy sync flag']
  %s0 = inlined_call_operand.vmem [shape: bf16[8,8,512], index: 0, kind: input, shape index: {}]
  %s1 = inlined_call_operand.vmem [shape: bf16[128,512], index: 1, kind: input, shape index: {}]
  %s2 = inlined_call_operand.vmem [shape: f32[8,128], index: 2, kind: output, shape index: {}]
  %s3 = sld [smem:[#allocation0]]
  $region59: #{lstm_processor_forward.3} parent=0
    _
  %s5 = ssub.s32 1, %s3
  %s6 = scalar_select 0, %s5, %s3
  // Predicated region
  $region2: #{lstm_processor_forward.3} parent=0 // pred_check
    _
  $region3: #{lstm_processor_forward.3} parent=0 // pred_check_branch
    %8 = sbr.rel (0) target = $region5
  $region4: #{lstm_processor_forward.3} parent=0 // pred_region
    _
  $region5: #{lstm_processor_forward.3} parent=0 // pred_fallthru
    _
  %p10 = scmp.eq.s32.totalorder 0, 0
  // Predicated region
  $region6: #{lstm_processor_forward.3} parent=0 // pred_check
    %p11 = pneg %p10
  $region7: #{lstm_processor_forward.3} parent=0 // pred_check_branch
    %13 = sbr.rel (%p11) target = $region9
  $region8: #{lstm_processor_forward.3} parent=0 // pred_region
    %14 = vst [vmem:[#allocation3] sm:$0xff] 0.0
    %15 = vst [vmem:[#allocation4] sm:$0xff] 0.0
    %p17 = scmp.lt.u32.totalorder 4, 8
    %p18 = pneg %p17
    // Predicated region
    $region10: #{lstm_processor_forward.3} parent=8 // pred_check
      _
    $region11: #{lstm_processor_forward.3} parent=8 // pred_check_branch
      %20 = sbr.rel (%p17) target = $region13
    $region12: #{lstm_processor_forward.3} parent=8 // pred_region
      %s161 = sand.u32 4, 7
      %p162 = scmp.eq.s32.totalorder %s161, 0
      %p163 = pneg %p162
      // Predicated region
      $region25: #{lstm_processor_forward.3} parent=12 // pred_check
        _
      $region26: #{lstm_processor_forward.3} parent=12 // pred_check_branch
        %165 = sbr.rel (%p162) target = $region28
      $region27: #{lstm_processor_forward.3} parent=12 // pred_region
        %s166 = sand.u32 4, 7
        %s167 = ssub.s32 4, %s166
        %s168 = scalar_lea.vmem %s1, %s167
        %s169 = ssub.s32 4, %s166
        %s170 = scalar_lea.vmem [#allocation2], %s169
        loop: start=0, step=1, limit=1
        $region29: #{lstm_processor_forward.3} parent=27 // loop_pre_header
          _
        $region30: #{lstm_processor_forward.3} parent=27 // loop_header
          %s172 = sphi 0, %s176
          %p173 = scmp.ge.s32.totalorder %s172, 1
          %s177 = sphi %s1, %s1
          %s178 = sphi [#allocation2], [#allocation2]
        $region31: #{lstm_processor_forward.3} parent=27 // loop_header_branch
          %175 = sbr.rel (%p173) target = $region35
        $region32: #{lstm_processor_forward.3} parent=27 // loop_body
          _
        $region33: #{lstm_processor_forward.3} parent=27 // loop_footer
          %s176 = sadd.s32 1, %s172
        $region34: #{lstm_processor_forward.3} parent=27 // loop_footer_branch
          %171 = sbr.rel target = $region30
        $region35: #{lstm_processor_forward.3} parent=27 // loop_exit
          _
        %s179 = sshllo.u32 0, %s166
        loop: start=0, step=1, limit=1
        $region36: #{lstm_processor_forward.3} parent=27 // loop_pre_header
          _
        $region37: #{lstm_processor_forward.3} parent=27 // loop_header
          %s181 = sphi 0, %s185
          %p182 = scmp.ge.s32.totalorder %s181, 1
          %s186 = sphi %s168, %s168
          %s187 = sphi %s170, %s170
        $region38: #{lstm_processor_forward.3} parent=27 // loop_header_branch
          %184 = sbr.rel (%p182) target = $region42
        $region39: #{lstm_processor_forward.3} parent=27 // loop_body
          %v188 = vld [vmem:[%s186] sm:%s179]
          %189 = vst [vmem:[%s187] sm:%s179] %v188
          %v190 = vld [vmem:[%s186 + $0x10] sm:%s179]
          %191 = vst [vmem:[%s187 + $0x4] sm:%s179] %v190
          %v192 = vld [vmem:[%s186 + $0x4] sm:%s179]
          %193 = vst [vmem:[%s187 + $0x8] sm:%s179] %v192
          %v194 = vld [vmem:[%s186 + $0x14] sm:%s179]
          %195 = vst [vmem:[%s187 + $0xc] sm:%s179] %v194
          %v196 = vld [vmem:[%s186 + $0x8] sm:%s179]
          %197 = vst [vmem:[%s187 + $0x10] sm:%s179] %v196
          %v198 = vld [vmem:[%s186 + $0x18] sm:%s179]
          %199 = vst [vmem:[%s187 + $0x14] sm:%s179] %v198
          %v200 = vld [vmem:[%s186 + $0xc] sm:%s179]
          %201 = vst [vmem:[%s187 + $0x18] sm:%s179] %v200
          %v202 = vld [vmem:[%s186 + $0x1c] sm:%s179]
          %203 = vst [vmem:[%s187 + $0x1c] sm:%s179] %v202
          %v204 = vld [vmem:[%s186 + $0x20] sm:%s179]
          %205 = vst [vmem:[%s187 + $0x20] sm:%s179] %v204
          %v206 = vld [vmem:[%s186 + $0x30] sm:%s179]
          %207 = vst [vmem:[%s187 + $0x24] sm:%s179] %v206
          %v208 = vld [vmem:[%s186 + $0x24] sm:%s179]
          %209 = vst [vmem:[%s187 + $0x28] sm:%s179] %v208
          %v210 = vld [vmem:[%s186 + $0x34] sm:%s179]
          %211 = vst [vmem:[%s187 + $0x2c] sm:%s179] %v210
          %v212 = vld [vmem:[%s186 + $0x28] sm:%s179]
          %213 = vst [vmem:[%s187 + $0x30] sm:%s179] %v212
          %v214 = vld [vmem:[%s186 + $0x38] sm:%s179]
          %215 = vst [vmem:[%s187 + $0x34] sm:%s179] %v214
          %v216 = vld [vmem:[%s186 + $0x2c] sm:%s179]
          %217 = vst [vmem:[%s187 + $0x38] sm:%s179] %v216
          %v218 = vld [vmem:[%s186 + $0x3c] sm:%s179]
          %219 = vst [vmem:[%s187 + $0x3c] sm:%s179] %v218
          %v220 = vld [vmem:[%s186 + $0x40] sm:%s179]
          %221 = vst [vmem:[%s187 + $0x40] sm:%s179] %v220
          %v222 = vld [vmem:[%s186 + $0x50] sm:%s179]
          %223 = vst [vmem:[%s187 + $0x44] sm:%s179] %v222
          %v224 = vld [vmem:[%s186 + $0x44] sm:%s179]
          %225 = vst [vmem:[%s187 + $0x48] sm:%s179] %v224
          %v226 = vld [vmem:[%s186 + $0x54] sm:%s179]
          %227 = vst [vmem:[%s187 + $0x4c] sm:%s179] %v226
          %v228 = vld [vmem:[%s186 + $0x48] sm:%s179]
          %229 = vst [vmem:[%s187 + $0x50] sm:%s179] %v228
          %v230 = vld [vmem:[%s186 + $0x58] sm:%s179]
          %231 = vst [vmem:[%s187 + $0x54] sm:%s179] %v230
          %v232 = vld [vmem:[%s186 + $0x4c] sm:%s179]
          %233 = vst [vmem:[%s187 + $0x58] sm:%s179] %v232
          %v234 = vld [vmem:[%s186 + $0x5c] sm:%s179]
          %235 = vst [vmem:[%s187 + $0x5c] sm:%s179] %v234
          %v236 = vld [vmem:[%s186 + $0x60] sm:%s179]
          %237 = vst [vmem:[%s187 + $0x60] sm:%s179] %v236
          %v238 = vld [vmem:[%s186 + $0x70] sm:%s179]
          %239 = vst [vmem:[%s187 + $0x64] sm:%s179] %v238
          %v240 = vld [vmem:[%s186 + $0x64] sm:%s179]
          %241 = vst [vmem:[%s187 + $0x68] sm:%s179] %v240
          %v242 = vld [vmem:[%s186 + $0x74] sm:%s179]
          %243 = vst [vmem:[%s187 + $0x6c] sm:%s179] %v242
          %v244 = vld [vmem:[%s186 + $0x68] sm:%s179]
          %245 = vst [vmem:[%s187 + $0x70] sm:%s179] %v244
          %v246 = vld [vmem:[%s186 + $0x78] sm:%s179]
          %247 = vst [vmem:[%s187 + $0x74] sm:%s179] %v246
          %v248 = vld [vmem:[%s186 + $0x6c] sm:%s179]
          %249 = vst [vmem:[%s187 + $0x78] sm:%s179] %v248
          %v250 = vld [vmem:[%s186 + $0x7c] sm:%s179]
          %251 = vst [vmem:[%s187 + $0x7c] sm:%s179] %v250
          %v252 = vld [vmem:[%s186 + $0x80] sm:%s179]
          %253 = vst [vmem:[%s187 + $0x80] sm:%s179] %v252
          %v254 = vld [vmem:[%s186 + $0x90] sm:%s179]
          %255 = vst [vmem:[%s187 + $0x84] sm:%s179] %v254
          %v256 = vld [vmem:[%s186 + $0x84] sm:%s179]
          %257 = vst [vmem:[%s187 + $0x88] sm:%s179] %v256
          %v258 = vld [vmem:[%s186 + $0x94] sm:%s179]
          %259 = vst [vmem:[%s187 + $0x8c] sm:%s179] %v258
          %v260 = vld [vmem:[%s186 + $0x88] sm:%s179]
          %261 = vst [vmem:[%s187 + $0x90] sm:%s179] %v260
          %v262 = vld [vmem:[%s186 + $0x98] sm:%s179]
          %263 = vst [vmem:[%s187 + $0x94] sm:%s179] %v262
          %v264 = vld [vmem:[%s186 + $0x8c] sm:%s179]
          %265 = vst [vmem:[%s187 + $0x98] sm:%s179] %v264
          %v266 = vld [vmem:[%s186 + $0x9c] sm:%s179]
          %267 = vst [vmem:[%s187 + $0x9c] sm:%s179] %v266
          %v268 = vld [vmem:[%s186 + $0xa0] sm:%s179]
          %269 = vst [vmem:[%s187 + $0xa0] sm:%s179] %v268
          %v270 = vld [vmem:[%s186 + $0xb0] sm:%s179]
          %271 = vst [vmem:[%s187 + $0xa4] sm:%s179] %v270
          %v272 = vld [vmem:[%s186 + $0xa4] sm:%s179]
          %273 = vst [vmem:[%s187 + $0xa8] sm:%s179] %v272
          %v274 = vld [vmem:[%s186 + $0xb4] sm:%s179]
          %275 = vst [vmem:[%s187 + $0xac] sm:%s179] %v274
          %v276 = vld [vmem:[%s186 + $0xa8] sm:%s179]
          %277 = vst [vmem:[%s187 + $0xb0] sm:%s179] %v276
          %v278 = vld [vmem:[%s186 + $0xb8] sm:%s179]
          %279 = vst [vmem:[%s187 + $0xb4] sm:%s179] %v278
          %v280 = vld [vmem:[%s186 + $0xac] sm:%s179]
          %281 = vst [vmem:[%s187 + $0xb8] sm:%s179] %v280
          %v282 = vld [vmem:[%s186 + $0xbc] sm:%s179]
          %283 = vst [vmem:[%s187 + $0xbc] sm:%s179] %v282
          %v284 = vld [vmem:[%s186 + $0xc0] sm:%s179]
          %285 = vst [vmem:[%s187 + $0xc0] sm:%s179] %v284
          %v286 = vld [vmem:[%s186 + $0xd0] sm:%s179]
          %287 = vst [vmem:[%s187 + $0xc4] sm:%s179] %v286
          %v288 = vld [vmem:[%s186 + $0xc4] sm:%s179]
          %289 = vst [vmem:[%s187 + $0xc8] sm:%s179] %v288
          %v290 = vld [vmem:[%s186 + $0xd4] sm:%s179]
          %291 = vst [vmem:[%s187 + $0xcc] sm:%s179] %v290
          %v292 = vld [vmem:[%s186 + $0xc8] sm:%s179]
          %293 = vst [vmem:[%s187 + $0xd0] sm:%s179] %v292
          %v294 = vld [vmem:[%s186 + $0xd8] sm:%s179]
          %295 = vst [vmem:[%s187 + $0xd4] sm:%s179] %v294
          %v296 = vld [vmem:[%s186 + $0xcc] sm:%s179]
          %297 = vst [vmem:[%s187 + $0xd8] sm:%s179] %v296
          %v298 = vld [vmem:[%s186 + $0xdc] sm:%s179]
          %299 = vst [vmem:[%s187 + $0xdc] sm:%s179] %v298
          %v300 = vld [vmem:[%s186 + $0xe0] sm:%s179]
          %301 = vst [vmem:[%s187 + $0xe0] sm:%s179] %v300
          %v302 = vld [vmem:[%s186 + $0xf0] sm:%s179]
          %303 = vst [vmem:[%s187 + $0xe4] sm:%s179] %v302
          %v304 = vld [vmem:[%s186 + $0xe4] sm:%s179]
          %305 = vst [vmem:[%s187 + $0xe8] sm:%s179] %v304
          %v306 = vld [vmem:[%s186 + $0xf4] sm:%s179]
          %307 = vst [vmem:[%s187 + $0xec] sm:%s179] %v306
          %v308 = vld [vmem:[%s186 + $0xe8] sm:%s179]
          %309 = vst [vmem:[%s187 + $0xf0] sm:%s179] %v308
          %v310 = vld [vmem:[%s186 + $0xf8] sm:%s179]
          %311 = vst [vmem:[%s187 + $0xf4] sm:%s179] %v310
          %v312 = vld [vmem:[%s186 + $0xec] sm:%s179]
          %313 = vst [vmem:[%s187 + $0xf8] sm:%s179] %v312
          %v314 = vld [vmem:[%s186 + $0xfc] sm:%s179]
          %315 = vst [vmem:[%s187 + $0xfc] sm:%s179] %v314
        $region40: #{lstm_processor_forward.3} parent=27 // loop_footer
          %s185 = sadd.s32 1, %s181
        $region41: #{lstm_processor_forward.3} parent=27 // loop_footer_branch
          %180 = sbr.rel target = $region37
        $region42: #{lstm_processor_forward.3} parent=27 // loop_exit
          _
      $region28: #{lstm_processor_forward.3} parent=12 // pred_fallthru
        _
    $region13: #{lstm_processor_forward.3} parent=8 // pred_fallthru
      _
    // Predicated region
    $region14: #{lstm_processor_forward.3} parent=8 // pred_check
      %p21 = pneg %p17
    $region15: #{lstm_processor_forward.3} parent=8 // pred_check_branch
      %23 = sbr.rel (%p21) target = $region17
    $region16: #{lstm_processor_forward.3} parent=8 // pred_region
      %s24 = sshllo.u32 0, 4
      loop: start=0, step=1, limit=1
      $region18: #{lstm_processor_forward.3} parent=16 // loop_pre_header
        _
      $region19: #{lstm_processor_forward.3} parent=16 // loop_header
        %s26 = sphi 0, %s30
        %p27 = scmp.ge.s32.totalorder %s26, 1
        %s31 = sphi %s1, %s1
        %s32 = sphi [#allocation2], [#allocation2]
      $region20: #{lstm_processor_forward.3} parent=16 // loop_header_branch
        %29 = sbr.rel (%p27) target = $region24
      $region21: #{lstm_processor_forward.3} parent=16 // loop_body
        %v33 = vld [vmem:[%s31] sm:%s24]
        %34 = vst [vmem:[%s32] sm:%s24] %v33
        %v35 = vld [vmem:[%s31 + $0x10] sm:%s24]
        %36 = vst [vmem:[%s32 + $0x4] sm:%s24] %v35
        %v37 = vld [vmem:[%s31 + $0x4] sm:%s24]
        %38 = vst [vmem:[%s32 + $0x8] sm:%s24] %v37
        %v39 = vld [vmem:[%s31 + $0x14] sm:%s24]
        %40 = vst [vmem:[%s32 + $0xc] sm:%s24] %v39
        %v41 = vld [vmem:[%s31 + $0x8] sm:%s24]
        %42 = vst [vmem:[%s32 + $0x10] sm:%s24] %v41
        %v43 = vld [vmem:[%s31 + $0x18] sm:%s24]
        %44 = vst [vmem:[%s32 + $0x14] sm:%s24] %v43
        %v45 = vld [vmem:[%s31 + $0xc] sm:%s24]
        %46 = vst [vmem:[%s32 + $0x18] sm:%s24] %v45
        %v47 = vld [vmem:[%s31 + $0x1c] sm:%s24]
        %48 = vst [vmem:[%s32 + $0x1c] sm:%s24] %v47
        %v49 = vld [vmem:[%s31 + $0x20] sm:%s24]
        %50 = vst [vmem:[%s32 + $0x20] sm:%s24] %v49
        %v51 = vld [vmem:[%s31 + $0x30] sm:%s24]
        %52 = vst [vmem:[%s32 + $0x24] sm:%s24] %v51
        %v53 = vld [vmem:[%s31 + $0x24] sm:%s24]
        %54 = vst [vmem:[%s32 + $0x28] sm:%s24] %v53
        %v55 = vld [vmem:[%s31 + $0x34] sm:%s24]
        %56 = vst [vmem:[%s32 + $0x2c] sm:%s24] %v55
        %v57 = vld [vmem:[%s31 + $0x28] sm:%s24]
        %58 = vst [vmem:[%s32 + $0x30] sm:%s24] %v57
        %v59 = vld [vmem:[%s31 + $0x38] sm:%s24]
        %60 = vst [vmem:[%s32 + $0x34] sm:%s24] %v59
        %v61 = vld [vmem:[%s31 + $0x2c] sm:%s24]
        %62 = vst [vmem:[%s32 + $0x38] sm:%s24] %v61
        %v63 = vld [vmem:[%s31 + $0x3c] sm:%s24]
        %64 = vst [vmem:[%s32 + $0x3c] sm:%s24] %v63
        %v65 = vld [vmem:[%s31 + $0x40] sm:%s24]
        %66 = vst [vmem:[%s32 + $0x40] sm:%s24] %v65
        %v67 = vld [vmem:[%s31 + $0x50] sm:%s24]
        %68 = vst [vmem:[%s32 + $0x44] sm:%s24] %v67
        %v69 = vld [vmem:[%s31 + $0x44] sm:%s24]
        %70 = vst [vmem:[%s32 + $0x48] sm:%s24] %v69
        %v71 = vld [vmem:[%s31 + $0x54] sm:%s24]
        %72 = vst [vmem:[%s32 + $0x4c] sm:%s24] %v71
        %v73 = vld [vmem:[%s31 + $0x48] sm:%s24]
        %74 = vst [vmem:[%s32 + $0x50] sm:%s24] %v73
        %v75 = vld [vmem:[%s31 + $0x58] sm:%s24]
        %76 = vst [vmem:[%s32 + $0x54] sm:%s24] %v75
        %v77 = vld [vmem:[%s31 + $0x4c] sm:%s24]
        %78 = vst [vmem:[%s32 + $0x58] sm:%s24] %v77
        %v79 = vld [vmem:[%s31 + $0x5c] sm:%s24]
        %80 = vst [vmem:[%s32 + $0x5c] sm:%s24] %v79
        %v81 = vld [vmem:[%s31 + $0x60] sm:%s24]
        %82 = vst [vmem:[%s32 + $0x60] sm:%s24] %v81
        %v83 = vld [vmem:[%s31 + $0x70] sm:%s24]
        %84 = vst [vmem:[%s32 + $0x64] sm:%s24] %v83
        %v85 = vld [vmem:[%s31 + $0x64] sm:%s24]
        %86 = vst [vmem:[%s32 + $0x68] sm:%s24] %v85
        %v87 = vld [vmem:[%s31 + $0x74] sm:%s24]
        %88 = vst [vmem:[%s32 + $0x6c] sm:%s24] %v87
        %v89 = vld [vmem:[%s31 + $0x68] sm:%s24]
        %90 = vst [vmem:[%s32 + $0x70] sm:%s24] %v89
        %v91 = vld [vmem:[%s31 + $0x78] sm:%s24]
        %92 = vst [vmem:[%s32 + $0x74] sm:%s24] %v91
        %v93 = vld [vmem:[%s31 + $0x6c] sm:%s24]
        %94 = vst [vmem:[%s32 + $0x78] sm:%s24] %v93
        %v95 = vld [vmem:[%s31 + $0x7c] sm:%s24]
        %96 = vst [vmem:[%s32 + $0x7c] sm:%s24] %v95
        %v97 = vld [vmem:[%s31 + $0x80] sm:%s24]
        %98 = vst [vmem:[%s32 + $0x80] sm:%s24] %v97
        %v99 = vld [vmem:[%s31 + $0x90] sm:%s24]
        %100 = vst [vmem:[%s32 + $0x84] sm:%s24] %v99
        %v101 = vld [vmem:[%s31 + $0x84] sm:%s24]
        %102 = vst [vmem:[%s32 + $0x88] sm:%s24] %v101
        %v103 = vld [vmem:[%s31 + $0x94] sm:%s24]
        %104 = vst [vmem:[%s32 + $0x8c] sm:%s24] %v103
        %v105 = vld [vmem:[%s31 + $0x88] sm:%s24]
        %106 = vst [vmem:[%s32 + $0x90] sm:%s24] %v105
        %v107 = vld [vmem:[%s31 + $0x98] sm:%s24]
        %108 = vst [vmem:[%s32 + $0x94] sm:%s24] %v107
        %v109 = vld [vmem:[%s31 + $0x8c] sm:%s24]
        %110 = vst [vmem:[%s32 + $0x98] sm:%s24] %v109
        %v111 = vld [vmem:[%s31 + $0x9c] sm:%s24]
        %112 = vst [vmem:[%s32 + $0x9c] sm:%s24] %v111
        %v113 = vld [vmem:[%s31 + $0xa0] sm:%s24]
        %114 = vst [vmem:[%s32 + $0xa0] sm:%s24] %v113
        %v115 = vld [vmem:[%s31 + $0xb0] sm:%s24]
        %116 = vst [vmem:[%s32 + $0xa4] sm:%s24] %v115
        %v117 = vld [vmem:[%s31 + $0xa4] sm:%s24]
        %118 = vst [vmem:[%s32 + $0xa8] sm:%s24] %v117
        %v119 = vld [vmem:[%s31 + $0xb4] sm:%s24]
        %120 = vst [vmem:[%s32 + $0xac] sm:%s24] %v119
        %v121 = vld [vmem:[%s31 + $0xa8] sm:%s24]
        %122 = vst [vmem:[%s32 + $0xb0] sm:%s24] %v121
        %v123 = vld [vmem:[%s31 + $0xb8] sm:%s24]
        %124 = vst [vmem:[%s32 + $0xb4] sm:%s24] %v123
        %v125 = vld [vmem:[%s31 + $0xac] sm:%s24]
        %126 = vst [vmem:[%s32 + $0xb8] sm:%s24] %v125
        %v127 = vld [vmem:[%s31 + $0xbc] sm:%s24]
        %128 = vst [vmem:[%s32 + $0xbc] sm:%s24] %v127
        %v129 = vld [vmem:[%s31 + $0xc0] sm:%s24]
        %130 = vst [vmem:[%s32 + $0xc0] sm:%s24] %v129
        %v131 = vld [vmem:[%s31 + $0xd0] sm:%s24]
        %132 = vst [vmem:[%s32 + $0xc4] sm:%s24] %v131
        %v133 = vld [vmem:[%s31 + $0xc4] sm:%s24]
        %134 = vst [vmem:[%s32 + $0xc8] sm:%s24] %v133
        %v135 = vld [vmem:[%s31 + $0xd4] sm:%s24]
        %136 = vst [vmem:[%s32 + $0xcc] sm:%s24] %v135
        %v137 = vld [vmem:[%s31 + $0xc8] sm:%s24]
        %138 = vst [vmem:[%s32 + $0xd0] sm:%s24] %v137
        %v139 = vld [vmem:[%s31 + $0xd8] sm:%s24]
        %140 = vst [vmem:[%s32 + $0xd4] sm:%s24] %v139
        %v141 = vld [vmem:[%s31 + $0xcc] sm:%s24]
        %142 = vst [vmem:[%s32 + $0xd8] sm:%s24] %v141
        %v143 = vld [vmem:[%s31 + $0xdc] sm:%s24]
        %144 = vst [vmem:[%s32 + $0xdc] sm:%s24] %v143
        %v145 = vld [vmem:[%s31 + $0xe0] sm:%s24]
        %146 = vst [vmem:[%s32 + $0xe0] sm:%s24] %v145
        %v147 = vld [vmem:[%s31 + $0xf0] sm:%s24]
        %148 = vst [vmem:[%s32 + $0xe4] sm:%s24] %v147
        %v149 = vld [vmem:[%s31 + $0xe4] sm:%s24]
        %150 = vst [vmem:[%s32 + $0xe8] sm:%s24] %v149
        %v151 = vld [vmem:[%s31 + $0xf4] sm:%s24]
        %152 = vst [vmem:[%s32 + $0xec] sm:%s24] %v151
        %v153 = vld [vmem:[%s31 + $0xe8] sm:%s24]
        %154 = vst [vmem:[%s32 + $0xf0] sm:%s24] %v153
        %v155 = vld [vmem:[%s31 + $0xf8] sm:%s24]
        %156 = vst [vmem:[%s32 + $0xf4] sm:%s24] %v155
        %v157 = vld [vmem:[%s31 + $0xec] sm:%s24]
        %158 = vst [vmem:[%s32 + $0xf8] sm:%s24] %v157
        %v159 = vld [vmem:[%s31 + $0xfc] sm:%s24]
        %160 = vst [vmem:[%s32 + $0xfc] sm:%s24] %v159
      $region22: #{lstm_processor_forward.3} parent=16 // loop_footer
        %s30 = sadd.s32 1, %s26
      $region23: #{lstm_processor_forward.3} parent=16 // loop_footer_branch
        %25 = sbr.rel target = $region19
      $region24: #{lstm_processor_forward.3} parent=16 // loop_exit
        _
    $region17: #{lstm_processor_forward.3} parent=8 // pred_fallthru
      _
    // Predicated region
    $region43: #{lstm_processor_forward.3} parent=8 // pred_check
      _
    $region44: #{lstm_processor_forward.3} parent=8 // pred_check_branch
      %318 = sbr.rel (0) target = $region46
    $region45: #{lstm_processor_forward.3} parent=8 // pred_region
      %319 = vsyncadd [#allocation5], 4096
    $region46: #{lstm_processor_forward.3} parent=8 // pred_fallthru
      _
    %s320 = smul.u32 4, 16
    %s321 = smul.u32 %s320, 4
    %s322 = sshll.u32 %s321, 4
    %323 = dma.done [#allocation5], %s322
  $region9: #{lstm_processor_forward.3} parent=0 // pred_fallthru
    _
  %v324 = vld [vmem:[#allocation3] sm:$0xff]
  %v325 = vld [vmem:[#allocation4] sm:$0xff]
  %v326 = vld [vmem:[%s0] sm:$0xff]
  %v327 = vld [vmem:[%s0 + $0x8] sm:$0xff]
  %v328 = vunpack.c.l.bf16 %v326
  %v329 = vunpack.c.h.bf16 %v326
  %v330 = vunpack.c.l.bf16 %v327
  %v331 = vunpack.c.h.bf16 %v327
  %v332 = vpack.c.bf16 %v324, %v324
  %v333 = vld [vmem:[#allocation2] sm:$0xff]
  %v334 = vld [vmem:[#allocation2 + $0x8] sm:$0xff]
  %v335 = vld [vmem:[#allocation2 + $0x10] sm:$0xff]
  %v336 = vld [vmem:[#allocation2 + $0x18] sm:$0xff]
  %v337 = vld [vmem:[#allocation2 + $0x20] sm:$0xff]
  %v338 = vld [vmem:[#allocation2 + $0x28] sm:$0xff]
  %v339 = vld [vmem:[#allocation2 + $0x30] sm:$0xff]
  %v340 = vld [vmem:[#allocation2 + $0x38] sm:$0xff]
  %v341 = vld [vmem:[#allocation2 + $0x40] sm:$0xff]
  %v342 = vld [vmem:[#allocation2 + $0x48] sm:$0xff]
  %v343 = vld [vmem:[#allocation2 + $0x50] sm:$0xff]
  %v344 = vld [vmem:[#allocation2 + $0x58] sm:$0xff]
  %v345 = vld [vmem:[#allocation2 + $0x60] sm:$0xff]
  %v346 = vld [vmem:[#allocation2 + $0x68] sm:$0xff]
  %v347 = vld [vmem:[#allocation2 + $0x70] sm:$0xff]
  %v348 = vld [vmem:[#allocation2 + $0x78] sm:$0xff]
  %v349 = vld [vmem:[#allocation2 + $0x80] sm:$0xff]
  %v350 = vld [vmem:[#allocation2 + $0x88] sm:$0xff]
  %v351 = vld [vmem:[#allocation2 + $0x90] sm:$0xff]
  %v352 = vld [vmem:[#allocation2 + $0x98] sm:$0xff]
  %v353 = vld [vmem:[#allocation2 + $0xa0] sm:$0xff]
  %v354 = vld [vmem:[#allocation2 + $0xa8] sm:$0xff]
  %v355 = vld [vmem:[#allocation2 + $0xb0] sm:$0xff]
  %v356 = vld [vmem:[#allocation2 + $0xb8] sm:$0xff]
  %v357 = vld [vmem:[#allocation2 + $0xc0] sm:$0xff]
  %v358 = vld [vmem:[#allocation2 + $0xc8] sm:$0xff]
  %v359 = vld [vmem:[#allocation2 + $0xd0] sm:$0xff]
  %v360 = vld [vmem:[#allocation2 + $0xd8] sm:$0xff]
  %v361 = vld [vmem:[#allocation2 + $0xe0] sm:$0xff]
  %v362 = vld [vmem:[#allocation2 + $0xe8] sm:$0xff]
  %v363 = vld [vmem:[#allocation2 + $0xf0] sm:$0xff]
  %v364 = vld [vmem:[#allocation2 + $0xf8] sm:$0xff]
  %365 = vmatprep.subr.bf16.mxu0 %v334
  %366 = vmatpush1.bf16.msra.mxu0 %v333
  %367 = vmatprep.subr.bf16.mxu0 %v338
  %368 = vmatpush1.bf16.msra.mxu0 %v337
  %369 = vmatprep.subr.bf16.mxu0 %v342
  %370 = vmatpush1.bf16.msra.mxu0 %v341
  %371 = vmatprep.subr.bf16.mxu0 %v346
  %372 = vmatpush1.bf16.msra.mxu0 %v345
  %373 = vmatprep.subr.bf16.mxu0 %v350
  %374 = vmatpush1.bf16.msra.mxu0 %v349
  %375 = vmatprep.subr.bf16.mxu0 %v354
  %376 = vmatpush1.bf16.msra.mxu0 %v353
  %377 = vmatprep.subr.bf16.mxu0 %v358
  %378 = vmatpush1.bf16.msra.mxu0 %v357
  %379 = vmatprep.subr.bf16.mxu0 %v362
  %380 = vmatpush1.bf16.msra.mxu0 %v361
  %381 = vmatprep.subr.bf16.mxu0 0
  %382 = vmatpush1.bf16.msra.mxu0 0
  %383 = vmatprep.subr.bf16.mxu0 0
  %384 = vmatpush1.bf16.msra.mxu0 0
  %385 = vmatprep.subr.bf16.mxu0 0
  %386 = vmatpush1.bf16.msra.mxu0 0
  %387 = vmatprep.subr.bf16.mxu0 0
  %388 = vmatpush1.bf16.msra.mxu0 0
  %389 = vmatprep.subr.bf16.mxu0 0
  %390 = vmatpush1.bf16.msra.mxu0 0
  %391 = vmatprep.subr.bf16.mxu0 0
  %392 = vmatpush1.bf16.msra.mxu0 0
  %393 = vmatprep.subr.bf16.mxu0 0
  %394 = vmatpush1.bf16.msra.mxu0 0
  %395 = vmatprep.subr.bf16.mxu0 0
  %396 = vmatpush1.bf16.msra.mxu0 0
  %397 = vmatprep.mubr.bf16.mxu0 0
  %398 = vmatmul.mubr.bf16.gmra.mrb[0].mxu0 %v332
  %v399 = vpop.f32.mrb[0].mxu0
  %v400 = vadd.f32 0.0, %v399
  %v401 = vpop.f32.mrb[0].mxu0
  %v402 = vadd.f32 0.0, %v401
  %v403 = vpop.f32.mrb[0].mxu0
  %v404 = vpop.f32.mrb[0].mxu0
  %405 = vdwg.mxu0
  %406 = vmatprep.subr.bf16.mxu0 %v336
  %407 = vmatpush1.bf16.msra.mxu0 %v335
  %408 = vmatprep.subr.bf16.mxu0 %v340
  %409 = vmatpush1.bf16.msra.mxu0 %v339
  %410 = vmatprep.subr.bf16.mxu0 %v344
  %411 = vmatpush1.bf16.msra.mxu0 %v343
  %412 = vmatprep.subr.bf16.mxu0 %v348
  %413 = vmatpush1.bf16.msra.mxu0 %v347
  %414 = vmatprep.subr.bf16.mxu0 %v352
  %415 = vmatpush1.bf16.msra.mxu0 %v351
  %416 = vmatprep.subr.bf16.mxu0 %v356
  %417 = vmatpush1.bf16.msra.mxu0 %v355
  %418 = vmatprep.subr.bf16.mxu0 %v360
  %419 = vmatpush1.bf16.msra.mxu0 %v359
  %420 = vmatprep.subr.bf16.mxu0 %v364
  %421 = vmatpush1.bf16.msra.mxu0 %v363
  %422 = vmatprep.subr.bf16.mxu0 0
  %423 = vmatpush1.bf16.msra.mxu0 0
  %424 = vmatprep.subr.bf16.mxu0 0
  %425 = vmatpush1.bf16.msra.mxu0 0
  %426 = vmatprep.subr.bf16.mxu0 0
  %427 = vmatpush1.bf16.msra.mxu0 0
  %428 = vmatprep.subr.bf16.mxu0 0
  %429 = vmatpush1.bf16.msra.mxu0 0
  %430 = vmatprep.subr.bf16.mxu0 0
  %431 = vmatpush1.bf16.msra.mxu0 0
  %432 = vmatprep.subr.bf16.mxu0 0
  %433 = vmatpush1.bf16.msra.mxu0 0
  %434 = vmatprep.subr.bf16.mxu0 0
  %435 = vmatpush1.bf16.msra.mxu0 0
  %436 = vmatprep.subr.bf16.mxu0 0
  %437 = vmatpush1.bf16.msra.mxu0 0
  %438 = vmatprep.mubr.bf16.mxu0 0
  %439 = vmatmul.mubr.bf16.gmra.mrb[0].mxu0 %v332
  %v440 = vpop.f32.mrb[0].mxu0
  %v441 = vadd.f32 0.0, %v440
  %v442 = vpop.f32.mrb[0].mxu0
  %v443 = vadd.f32 0.0, %v442
  %v444 = vpop.f32.mrb[0].mxu0
  %v445 = vpop.f32.mrb[0].mxu0
  %446 = vdwg.mxu0
  %v447 = vadd.f32 %v328, %v400
  %v448 = vadd.f32 %v329, %v402
  %v449 = vadd.f32 %v330, %v441
  %v450 = vadd.f32 %v331, %v443
  %v451 = vmul.f32 %v447, 0.5
  %v452 = vtanh.pop %v451
  %v453 = vmul.f32 %v452, 0.5
  %v454 = vadd.f32 %v453, 0.5
  %v455 = vmul.f32 %v448, 0.5
  %v456 = vtanh.pop %v455
  %v457 = vmul.f32 %v456, 0.5
  %v458 = vadd.f32 %v457, 0.5
  %v459 = vtanh.pop %v449
  %v460 = vmul.f32 %v450, 0.5
  %v461 = vtanh.pop %v460
  %v462 = vmul.f32 %v461, 0.5
  %v463 = vadd.f32 %v462, 0.5
  %v464 = vmul.f32 %v458, %v325
  %v465 = vmul.f32 %v454, %v459
  %v466 = vadd.f32 %v464, %v465
  %v467 = vtanh.pop %v466
  %v468 = vmul.f32 %v463, %v467
  %469 = vst [vmem:[#allocation3] sm:$0xff] %v468
  %470 = vst [vmem:[#allocation4] sm:$0xff] %v466
  %v471 = vld [vmem:[#allocation3] sm:$0xff]
  %v472 = vld [vmem:[#allocation4] sm:$0xff]
  %s473 = scalar_lea.vmem %s0, 16
  %v474 = vld [vmem:[%s473] sm:$0xff]
  %v475 = vld [vmem:[%s473 + $0x8] sm:$0xff]
  %v476 = vunpack.c.l.bf16 %v474
  %v477 = vunpack.c.h.bf16 %v474
  %v478 = vunpack.c.l.bf16 %v475
  %v479 = vunpack.c.h.bf16 %v475
  %v480 = vpack.c.bf16 %v471, %v471
  %v481 = vld [vmem:[#allocation2] sm:$0xff]
  %v482 = vld [vmem:[#allocation2 + $0x8] sm:$0xff]
  %v483 = vld [vmem:[#allocation2 + $0x10] sm:$0xff]
  %v484 = vld [vmem:[#allocation2 + $0x18] sm:$0xff]
  %v485 = vld [vmem:[#allocation2 + $0x20] sm:$0xff]
  %v486 = vld [vmem:[#allocation2 + $0x28] sm:$0xff]
  %v487 = vld [vmem:[#allocation2 + $0x30] sm:$0xff]
  %v488 = vld [vmem:[#allocation2 + $0x38] sm:$0xff]
  %v489 = vld [vmem:[#allocation2 + $0x40] sm:$0xff]
  %v490 = vld [vmem:[#allocation2 + $0x48] sm:$0xff]
  %v491 = vld [vmem:[#allocation2 + $0x50] sm:$0xff]
  %v492 = vld [vmem:[#allocation2 + $0x58] sm:$0xff]
  %v493 = vld [vmem:[#allocation2 + $0x60] sm:$0xff]
  %v494 = vld [vmem:[#allocation2 + $0x68] sm:$0xff]
  %v495 = vld [vmem:[#allocation2 + $0x70] sm:$0xff]
  %v496 = vld [vmem:[#allocation2 + $0x78] sm:$0xff]
  %v497 = vld [vmem:[#allocation2 + $0x80] sm:$0xff]
  %v498 = vld [vmem:[#allocation2 + $0x88] sm:$0xff]
  %v499 = vld [vmem:[#allocation2 + $0x90] sm:$0xff]
  %v500 = vld [vmem:[#allocation2 + $0x98] sm:$0xff]
  %v501 = vld [vmem:[#allocation2 + $0xa0] sm:$0xff]
  %v502 = vld [vmem:[#allocation2 + $0xa8] sm:$0xff]
  %v503 = vld [vmem:[#allocation2 + $0xb0] sm:$0xff]
  %v504 = vld [vmem:[#allocation2 + $0xb8] sm:$0xff]
  %v505 = vld [vmem:[#allocation2 + $0xc0] sm:$0xff]
  %v506 = vld [vmem:[#allocation2 + $0xc8] sm:$0xff]
  %v507 = vld [vmem:[#allocation2 + $0xd0] sm:$0xff]
  %v508 = vld [vmem:[#allocation2 + $0xd8] sm:$0xff]
  %v509 = vld [vmem:[#allocation2 + $0xe0] sm:$0xff]
  %v510 = vld [vmem:[#allocation2 + $0xe8] sm:$0xff]
  %v511 = vld [vmem:[#allocation2 + $0xf0] sm:$0xff]
  %v512 = vld [vmem:[#allocation2 + $0xf8] sm:$0xff]
  %513 = vmatprep.subr.bf16.mxu0 %v482
  %514 = vmatpush1.bf16.msra.mxu0 %v481
  %515 = vmatprep.subr.bf16.mxu0 %v486
  %516 = vmatpush1.bf16.msra.mxu0 %v485
  %517 = vmatprep.subr.bf16.mxu0 %v490
  %518 = vmatpush1.bf16.msra.mxu0 %v489
  %519 = vmatprep.subr.bf16.mxu0 %v494
  %520 = vmatpush1.bf16.msra.mxu0 %v493
  %521 = vmatprep.subr.bf16.mxu0 %v498
  %522 = vmatpush1.bf16.msra.mxu0 %v497
  %523 = vmatprep.subr.bf16.mxu0 %v502
  %524 = vmatpush1.bf16.msra.mxu0 %v501
  %525 = vmatprep.subr.bf16.mxu0 %v506
  %526 = vmatpush1.bf16.msra.mxu0 %v505
  %527 = vmatprep.subr.bf16.mxu0 %v510
  %528 = vmatpush1.bf16.msra.mxu0 %v509
  %529 = vmatprep.subr.bf16.mxu0 0
  %530 = vmatpush1.bf16.msra.mxu0 0
  %531 = vmatprep.subr.bf16.mxu0 0
  %532 = vmatpush1.bf16.msra.mxu0 0
  %533 = vmatprep.subr.bf16.mxu0 0
  %534 = vmatpush1.bf16.msra.mxu0 0
  %535 = vmatprep.subr.bf16.mxu0 0
  %536 = vmatpush1.bf16.msra.mxu0 0
  %537 = vmatprep.subr.bf16.mxu0 0
  %538 = vmatpush1.bf16.msra.mxu0 0
  %539 = vmatprep.subr.bf16.mxu0 0
  %540 = vmatpush1.bf16.msra.mxu0 0
  %541 = vmatprep.subr.bf16.mxu0 0
  %542 = vmatpush1.bf16.msra.mxu0 0
  %543 = vmatprep.subr.bf16.mxu0 0
  %544 = vmatpush1.bf16.msra.mxu0 0
  %545 = vmatprep.mubr.bf16.mxu0 0
  %546 = vmatmul.mubr.bf16.gmra.mrb[0].mxu0 %v480
  %v547 = vpop.f32.mrb[0].mxu0
  %v548 = vadd.f32 0.0, %v547
  %v549 = vpop.f32.mrb[0].mxu0
  %v550 = vadd.f32 0.0, %v549
  %v551 = vpop.f32.mrb[0].mxu0
  %v552 = vpop.f32.mrb[0].mxu0
  %553 = vdwg.mxu0
  %554 = vmatprep.subr.bf16.mxu0 %v484
  %555 = vmatpush1.bf16.msra.mxu0 %v483
  %556 = vmatprep.subr.bf16.mxu0 %v488
  %557 = vmatpush1.bf16.msra.mxu0 %v487
  %558 = vmatprep.subr.bf16.mxu0 %v492
  %559 = vmatpush1.bf16.msra.mxu0 %v491
  %560 = vmatprep.subr.bf16.mxu0 %v496
  %561 = vmatpush1.bf16.msra.mxu0 %v495
  %562 = vmatprep.subr.bf16.mxu0 %v500
  %563 = vmatpush1.bf16.msra.mxu0 %v499
  %564 = vmatprep.subr.bf16.mxu0 %v504
  %565 = vmatpush1.bf16.msra.mxu0 %v503
  %566 = vmatprep.subr.bf16.mxu0 %v508
  %567 = vmatpush1.bf16.msra.mxu0 %v507
  %568 = vmatprep.subr.bf16.mxu0 %v512
  %569 = vmatpush1.bf16.msra.mxu0 %v511
  %570 = vmatprep.subr.bf16.mxu0 0
  %571 = vmatpush1.bf16.msra.mxu0 0
  %572 = vmatprep.subr.bf16.mxu0 0
  %573 = vmatpush1.bf16.msra.mxu0 0
  %574 = vmatprep.subr.bf16.mxu0 0
  %575 = vmatpush1.bf16.msra.mxu0 0
  %576 = vmatprep.subr.bf16.mxu0 0
  %577 = vmatpush1.bf16.msra.mxu0 0
  %578 = vmatprep.subr.bf16.mxu0 0
  %579 = vmatpush1.bf16.msra.mxu0 0
  %580 = vmatprep.subr.bf16.mxu0 0
  %581 = vmatpush1.bf16.msra.mxu0 0
  %582 = vmatprep.subr.bf16.mxu0 0
  %583 = vmatpush1.bf16.msra.mxu0 0
  %584 = vmatprep.subr.bf16.mxu0 0
  %585 = vmatpush1.bf16.msra.mxu0 0
  %586 = vmatprep.mubr.bf16.mxu0 0
  %587 = vmatmul.mubr.bf16.gmra.mrb[0].mxu0 %v480
  %v588 = vpop.f32.mrb[0].mxu0
  %v589 = vadd.f32 0.0, %v588
  %v590 = vpop.f32.mrb[0].mxu0
  %v591 = vadd.f32 0.0, %v590
  %v592 = vpop.f32.mrb[0].mxu0
  %v593 = vpop.f32.mrb[0].mxu0
  %594 = vdwg.mxu0
  %v595 = vadd.f32 %v476, %v548
  %v596 = vadd.f32 %v477, %v550
  %v597 = vadd.f32 %v478, %v589
  %v598 = vadd.f32 %v479, %v591
  %v599 = vmul.f32 %v595, 0.5
  %v600 = vtanh.pop %v599
  %v601 = vmul.f32 %v600, 0.5
  %v602 = vadd.f32 %v601, 0.5
  %v603 = vmul.f32 %v596, 0.5
  %v604 = vtanh.pop %v603
  %v605 = vmul.f32 %v604, 0.5
  %v606 = vadd.f32 %v605, 0.5
  %v607 = vtanh.pop %v597
  %v608 = vmul.f32 %v598, 0.5
  %v609 = vtanh.pop %v608
  %v610 = vmul.f32 %v609, 0.5
  %v611 = vadd.f32 %v610, 0.5
  %v612 = vmul.f32 %v606, %v472
  %v613 = vmul.f32 %v602, %v607
  %v614 = vadd.f32 %v612, %v613
  %v615 = vtanh.pop %v614
  %v616 = vmul.f32 %v611, %v615
  %617 = vst [vmem:[#allocation3] sm:$0xff] %v616
  %618 = vst [vmem:[#allocation4] sm:$0xff] %v614
  %v619 = vld [vmem:[#allocation3] sm:$0xff]
  %v620 = vld [vmem:[#allocation4] sm:$0xff]
  %s621 = scalar_lea.vmem %s0, 32
  %v622 = vld [vmem:[%s621] sm:$0xff]
  %v623 = vld [vmem:[%s621 + $0x8] sm:$0xff]
  %v624 = vunpack.c.l.bf16 %v622
  %v625 = vunpack.c.h.bf16 %v622
  %v626 = vunpack.c.l.bf16 %v623
  %v627 = vunpack.c.h.bf16 %v623
  %v628 = vpack.c.bf16 %v619, %v619
  %v629 = vld [vmem:[#allocation2] sm:$0xff]
  %v630 = vld [vmem:[#allocation2 + $0x8] sm:$0xff]
  %v631 = vld [vmem:[#allocation2 + $0x10] sm:$0xff]
  %v632 = vld [vmem:[#allocation2 + $0x18] sm:$0xff]
  %v633 = vld [vmem:[#allocation2 + $0x20] sm:$0xff]
  %v634 = vld [vmem:[#allocation2 + $0x28] sm:$0xff]
  %v635 = vld [vmem:[#allocation2 + $0x30] sm:$0xff]
  %v636 = vld [vmem:[#allocation2 + $0x38] sm:$0xff]
  %v637 = vld [vmem:[#allocation2 + $0x40] sm:$0xff]
  %v638 = vld [vmem:[#allocation2 + $0x48] sm:$0xff]
  %v639 = vld [vmem:[#allocation2 + $0x50] sm:$0xff]
  %v640 = vld [vmem:[#allocation2 + $0x58] sm:$0xff]
  %v641 = vld [vmem:[#allocation2 + $0x60] sm:$0xff]
  %v642 = vld [vmem:[#allocation2 + $0x68] sm:$0xff]
  %v643 = vld [vmem:[#allocation2 + $0x70] sm:$0xff]
  %v644 = vld [vmem:[#allocation2 + $0x78] sm:$0xff]
  %v645 = vld [vmem:[#allocation2 + $0x80] sm:$0xff]
  %v646 = vld [vmem:[#allocation2 + $0x88] sm:$0xff]
  %v647 = vld [vmem:[#allocation2 + $0x90] sm:$0xff]
  %v648 = vld [vmem:[#allocation2 + $0x98] sm:$0xff]
  %v649 = vld [vmem:[#allocation2 + $0xa0] sm:$0xff]
  %v650 = vld [vmem:[#allocation2 + $0xa8] sm:$0xff]
  %v651 = vld [vmem:[#allocation2 + $0xb0] sm:$0xff]
  %v652 = vld [vmem:[#allocation2 + $0xb8] sm:$0xff]
  %v653 = vld [vmem:[#allocation2 + $0xc0] sm:$0xff]
  %v654 = vld [vmem:[#allocation2 + $0xc8] sm:$0xff]
  %v655 = vld [vmem:[#allocation2 + $0xd0] sm:$0xff]
  %v656 = vld [vmem:[#allocation2 + $0xd8] sm:$0xff]
  %v657 = vld [vmem:[#allocation2 + $0xe0] sm:$0xff]
  %v658 = vld [vmem:[#allocation2 + $0xe8] sm:$0xff]
  %v659 = vld [vmem:[#allocation2 + $0xf0] sm:$0xff]
  %v660 = vld [vmem:[#allocation2 + $0xf8] sm:$0xff]
  %661 = vmatprep.subr.bf16.mxu0 %v630
  %662 = vmatpush1.bf16.msra.mxu0 %v629
  %663 = vmatprep.subr.bf16.mxu0 %v634
  %664 = vmatpush1.bf16.msra.mxu0 %v633
  %665 = vmatprep.subr.bf16.mxu0 %v638
  %666 = vmatpush1.bf16.msra.mxu0 %v637
  %667 = vmatprep.subr.bf16.mxu0 %v642
  %668 = vmatpush1.bf16.msra.mxu0 %v641
  %669 = vmatprep.subr.bf16.mxu0 %v646
  %670 = vmatpush1.bf16.msra.mxu0 %v645
  %671 = vmatprep.subr.bf16.mxu0 %v650
  %672 = vmatpush1.bf16.msra.mxu0 %v649
  %673 = vmatprep.subr.bf16.mxu0 %v654
  %674 = vmatpush1.bf16.msra.mxu0 %v653
  %675 = vmatprep.subr.bf16.mxu0 %v658
  %676 = vmatpush1.bf16.msra.mxu0 %v657
  %677 = vmatprep.subr.bf16.mxu0 0
  %678 = vmatpush1.bf16.msra.mxu0 0
  %679 = vmatprep.subr.bf16.mxu0 0
  %680 = vmatpush1.bf16.msra.mxu0 0
  %681 = vmatprep.subr.bf16.mxu0 0
  %682 = vmatpush1.bf16.msra.mxu0 0
  %683 = vmatprep.subr.bf16.mxu0 0
  %684 = vmatpush1.bf16.msra.mxu0 0
  %685 = vmatprep.subr.bf16.mxu0 0
  %686 = vmatpush1.bf16.msra.mxu0 0
  %687 = vmatprep.subr.bf16.mxu0 0
  %688 = vmatpush1.bf16.msra.mxu0 0
  %689 = vmatprep.subr.bf16.mxu0 0
  %690 = vmatpush1.bf16.msra.mxu0 0
  %691 = vmatprep.subr.bf16.mxu0 0
  %692 = vmatpush1.bf16.msra.mxu0 0
  %693 = vmatprep.mubr.bf16.mxu0 0
  %694 = vmatmul.mubr.bf16.gmra.mrb[0].mxu0 %v628
  %v695 = vpop.f32.mrb[0].mxu0
  %v696 = vadd.f32 0.0, %v695
  %v697 = vpop.f32.mrb[0].mxu0
  %v698 = vadd.f32 0.0, %v697
  %v699 = vpop.f32.mrb[0].mxu0
  %v700 = vpop.f32.mrb[0].mxu0
  %701 = vdwg.mxu0
  %702 = vmatprep.subr.bf16.mxu0 %v632
  %703 = vmatpush1.bf16.msra.mxu0 %v631
  %704 = vmatprep.subr.bf16.mxu0 %v636
  %705 = vmatpush1.bf16.msra.mxu0 %v635
  %706 = vmatprep.subr.bf16.mxu0 %v640
  %707 = vmatpush1.bf16.msra.mxu0 %v639
  %708 = vmatprep.subr.bf16.mxu0 %v644
  %709 = vmatpush1.bf16.msra.mxu0 %v643
  %710 = vmatprep.subr.bf16.mxu0 %v648
  %711 = vmatpush1.bf16.msra.mxu0 %v647
  %712 = vmatprep.subr.bf16.mxu0 %v652
  %713 = vmatpush1.bf16.msra.mxu0 %v651
  %714 = vmatprep.subr.bf16.mxu0 %v656
  %715 = vmatpush1.bf16.msra.mxu0 %v655
  %716 = vmatprep.subr.bf16.mxu0 %v660
  %717 = vmatpush1.bf16.msra.mxu0 %v659
  %718 = vmatprep.subr.bf16.mxu0 0
  %719 = vmatpush1.bf16.msra.mxu0 0
  %720 = vmatprep.subr.bf16.mxu0 0
  %721 = vmatpush1.bf16.msra.mxu0 0
  %722 = vmatprep.subr.bf16.mxu0 0
  %723 = vmatpush1.bf16.msra.mxu0 0
  %724 = vmatprep.subr.bf16.mxu0 0
  %725 = vmatpush1.bf16.msra.mxu0 0
  %726 = vmatprep.subr.bf16.mxu0 0
  %727 = vmatpush1.bf16.msra.mxu0 0
  %728 = vmatprep.subr.bf16.mxu0 0
  %729 = vmatpush1.bf16.msra.mxu0 0
  %730 = vmatprep.subr.bf16.mxu0 0
  %731 = vmatpush1.bf16.msra.mxu0 0
  %732 = vmatprep.subr.bf16.mxu0 0
  %733 = vmatpush1.bf16.msra.mxu0 0
  %734 = vmatprep.mubr.bf16.mxu0 0
  %735 = vmatmul.mubr.bf16.gmra.mrb[0].mxu0 %v628
  %v736 = vpop.f32.mrb[0].mxu0
  %v737 = vadd.f32 0.0, %v736
  %v738 = vpop.f32.mrb[0].mxu0
  %v739 = vadd.f32 0.0, %v738
  %v740 = vpop.f32.mrb[0].mxu0
  %v741 = vpop.f32.mrb[0].mxu0
  %742 = vdwg.mxu0
  %v743 = vadd.f32 %v624, %v696
  %v744 = vadd.f32 %v625, %v698
  %v745 = vadd.f32 %v626, %v737
  %v746 = vadd.f32 %v627, %v739
  %v747 = vmul.f32 %v743, 0.5
  %v748 = vtanh.pop %v747
  %v749 = vmul.f32 %v748, 0.5
  %v750 = vadd.f32 %v749, 0.5
  %v751 = vmul.f32 %v744, 0.5
  %v752 = vtanh.pop %v751
  %v753 = vmul.f32 %v752, 0.5
  %v754 = vadd.f32 %v753, 0.5
  %v755 = vtanh.pop %v745
  %v756 = vmul.f32 %v746, 0.5
  %v757 = vtanh.pop %v756
  %v758 = vmul.f32 %v757, 0.5
  %v759 = vadd.f32 %v758, 0.5
  %v760 = vmul.f32 %v754, %v620
  %v761 = vmul.f32 %v750, %v755
  %v762 = vadd.f32 %v760, %v761
  %v763 = vtanh.pop %v762
  %v764 = vmul.f32 %v759, %v763
  %765 = vst [vmem:[#allocation3] sm:$0xff] %v764
  %766 = vst [vmem:[#allocation4] sm:$0xff] %v762
  %v767 = vld [vmem:[#allocation3] sm:$0xff]
  %v768 = vld [vmem:[#allocation4] sm:$0xff]
  %s769 = scalar_lea.vmem %s0, 48
  %v770 = vld [vmem:[%s769] sm:$0xff]
  %v771 = vld [vmem:[%s769 + $0x8] sm:$0xff]
  %v772 = vunpack.c.l.bf16 %v770
  %v773 = vunpack.c.h.bf16 %v770
  %v774 = vunpack.c.l.bf16 %v771
  %v775 = vunpack.c.h.bf16 %v771
  %v776 = vpack.c.bf16 %v767, %v767
  %v777 = vld [vmem:[#allocation2] sm:$0xff]
  %v778 = vld [vmem:[#allocation2 + $0x8] sm:$0xff]
  %v779 = vld [vmem:[#allocation2 + $0x10] sm:$0xff]
  %v780 = vld [vmem:[#allocation2 + $0x18] sm:$0xff]
  %v781 = vld [vmem:[#allocation2 + $0x20] sm:$0xff]
  %v782 = vld [vmem:[#allocation2 + $0x28] sm:$0xff]
  %v783 = vld [vmem:[#allocation2 + $0x30] sm:$0xff]
  %v784 = vld [vmem:[#allocation2 + $0x38] sm:$0xff]
  %v785 = vld [vmem:[#allocation2 + $0x40] sm:$0xff]
  %v786 = vld [vmem:[#allocation2 + $0x48] sm:$0xff]
  %v787 = vld [vmem:[#allocation2 + $0x50] sm:$0xff]
  %v788 = vld [vmem:[#allocation2 + $0x58] sm:$0xff]
  %v789 = vld [vmem:[#allocation2 + $0x60] sm:$0xff]
  %v790 = vld [vmem:[#allocation2 + $0x68] sm:$0xff]
  %v791 = vld [vmem:[#allocation2 + $0x70] sm:$0xff]
  %v792 = vld [vmem:[#allocation2 + $0x78] sm:$0xff]
  %v793 = vld [vmem:[#allocation2 + $0x80] sm:$0xff]
  %v794 = vld [vmem:[#allocation2 + $0x88] sm:$0xff]
  %v795 = vld [vmem:[#allocation2 + $0x90] sm:$0xff]
  %v796 = vld [vmem:[#allocation2 + $0x98] sm:$0xff]
  %v797 = vld [vmem:[#allocation2 + $0xa0] sm:$0xff]
  %v798 = vld [vmem:[#allocation2 + $0xa8] sm:$0xff]
  %v799 = vld [vmem:[#allocation2 + $0xb0] sm:$0xff]
  %v800 = vld [vmem:[#allocation2 + $0xb8] sm:$0xff]
  %v801 = vld [vmem:[#allocation2 + $0xc0] sm:$0xff]
  %v802 = vld [vmem:[#allocation2 + $0xc8] sm:$0xff]
  %v803 = vld [vmem:[#allocation2 + $0xd0] sm:$0xff]
  %v804 = vld [vmem:[#allocation2 + $0xd8] sm:$0xff]
  %v805 = vld [vmem:[#allocation2 + $0xe0] sm:$0xff]
  %v806 = vld [vmem:[#allocation2 + $0xe8] sm:$0xff]
  %v807 = vld [vmem:[#allocation2 + $0xf0] sm:$0xff]
  %v808 = vld [vmem:[#allocation2 + $0xf8] sm:$0xff]
  %809 = vmatprep.subr.bf16.mxu0 %v778
  %810 = vmatpush1.bf16.msra.mxu0 %v777
  %811 = vmatprep.subr.bf16.mxu0 %v782
  %812 = vmatpush1.bf16.msra.mxu0 %v781
  %813 = vmatprep.subr.bf16.mxu0 %v786
  %814 = vmatpush1.bf16.msra.mxu0 %v785
  %815 = vmatprep.subr.bf16.mxu0 %v790
  %816 = vmatpush1.bf16.msra.mxu0 %v789
  %817 = vmatprep.subr.bf16.mxu0 %v794
  %818 = vmatpush1.bf16.msra.mxu0 %v793
  %819 = vmatprep.subr.bf16.mxu0 %v798
  %820 = vmatpush1.bf16.msra.mxu0 %v797
  %821 = vmatprep.subr.bf16.mxu0 %v802
  %822 = vmatpush1.bf16.msra.mxu0 %v801
  %823 = vmatprep.subr.bf16.mxu0 %v806
  %824 = vmatpush1.bf16.msra.mxu0 %v805
  %825 = vmatprep.subr.bf16.mxu0 0
  %826 = vmatpush1.bf16.msra.mxu0 0
  %827 = vmatprep.subr.bf16.mxu0 0
  %828 = vmatpush1.bf16.msra.mxu0 0
  %829 = vmatprep.subr.bf16.mxu0 0
  %830 = vmatpush1.bf16.msra.mxu0 0
  %831 = vmatprep.subr.bf16.mxu0 0
  %832 = vmatpush1.bf16.msra.mxu0 0
  %833 = vmatprep.subr.bf16.mxu0 0
  %834 = vmatpush1.bf16.msra.mxu0 0
  %835 = vmatprep.subr.bf16.mxu0 0
  %836 = vmatpush1.bf16.msra.mxu0 0
  %837 = vmatprep.subr.bf16.mxu0 0
  %838 = vmatpush1.bf16.msra.mxu0 0
  %839 = vmatprep.subr.bf16.mxu0 0
  %840 = vmatpush1.bf16.msra.mxu0 0
  %841 = vmatprep.mubr.bf16.mxu0 0
  %842 = vmatmul.mubr.bf16.gmra.mrb[0].mxu0 %v776
  %v843 = vpop.f32.mrb[0].mxu0
  %v844 = vadd.f32 0.0, %v843
  %v845 = vpop.f32.mrb[0].mxu0
  %v846 = vadd.f32 0.0, %v845
  %v847 = vpop.f32.mrb[0].mxu0
  %v848 = vpop.f32.mrb[0].mxu0
  %849 = vdwg.mxu0
  %850 = vmatprep.subr.bf16.mxu0 %v780
  %851 = vmatpush1.bf16.msra.mxu0 %v779
  %852 = vmatprep.subr.bf16.mxu0 %v784
  %853 = vmatpush1.bf16.msra.mxu0 %v783
  %854 = vmatprep.subr.bf16.mxu0 %v788
  %855 = vmatpush1.bf16.msra.mxu0 %v787
  %856 = vmatprep.subr.bf16.mxu0 %v792
  %857 = vmatpush1.bf16.msra.mxu0 %v791
  %858 = vmatprep.subr.bf16.mxu0 %v796
  %859 = vmatpush1.bf16.msra.mxu0 %v795
  %860 = vmatprep.subr.bf16.mxu0 %v800
  %861 = vmatpush1.bf16.msra.mxu0 %v799
  %862 = vmatprep.subr.bf16.mxu0 %v804
  %863 = vmatpush1.bf16.msra.mxu0 %v803
  %864 = vmatprep.subr.bf16.mxu0 %v808
  %865 = vmatpush1.bf16.msra.mxu0 %v807
  %866 = vmatprep.subr.bf16.mxu0 0
  %867 = vmatpush1.bf16.msra.mxu0 0
  %868 = vmatprep.subr.bf16.mxu0 0
  %869 = vmatpush1.bf16.msra.mxu0 0
  %870 = vmatprep.subr.bf16.mxu0 0
  %871 = vmatpush1.bf16.msra.mxu0 0
  %872 = vmatprep.subr.bf16.mxu0 0
  %873 = vmatpush1.bf16.msra.mxu0 0
  %874 = vmatprep.subr.bf16.mxu0 0
  %875 = vmatpush1.bf16.msra.mxu0 0
  %876 = vmatprep.subr.bf16.mxu0 0
  %877 = vmatpush1.bf16.msra.mxu0 0
  %878 = vmatprep.subr.bf16.mxu0 0
  %879 = vmatpush1.bf16.msra.mxu0 0
  %880 = vmatprep.subr.bf16.mxu0 0
  %881 = vmatpush1.bf16.msra.mxu0 0
  %882 = vmatprep.mubr.bf16.mxu0 0
  %883 = vmatmul.mubr.bf16.gmra.mrb[0].mxu0 %v776
  %v884 = vpop.f32.mrb[0].mxu0
  %v885 = vadd.f32 0.0, %v884
  %v886 = vpop.f32.mrb[0].mxu0
  %v887 = vadd.f32 0.0, %v886
  %v888 = vpop.f32.mrb[0].mxu0
  %v889 = vpop.f32.mrb[0].mxu0
  %890 = vdwg.mxu0
  %v891 = vadd.f32 %v772, %v844
  %v892 = vadd.f32 %v773, %v846
  %v893 = vadd.f32 %v774, %v885
  %v894 = vadd.f32 %v775, %v887
  %v895 = vmul.f32 %v891, 0.5
  %v896 = vtanh.pop %v895
  %v897 = vmul.f32 %v896, 0.5
  %v898 = vadd.f32 %v897, 0.5
  %v899 = vmul.f32 %v892, 0.5
  %v900 = vtanh.pop %v899
  %v901 = vmul.f32 %v900, 0.5
  %v902 = vadd.f32 %v901, 0.5
  %v903 = vtanh.pop %v893
  %v904 = vmul.f32 %v894, 0.5
  %v905 = vtanh.pop %v904
  %v906 = vmul.f32 %v905, 0.5
  %v907 = vadd.f32 %v906, 0.5
  %v908 = vmul.f32 %v902, %v768
  %v909 = vmul.f32 %v898, %v903
  %v910 = vadd.f32 %v908, %v909
  %v911 = vtanh.pop %v910
  %v912 = vmul.f32 %v907, %v911
  %913 = vst [vmem:[#allocation3] sm:$0xff] %v912
  %914 = vst [vmem:[#allocation4] sm:$0xff] %v910
  %v915 = vld [vmem:[#allocation3] sm:$0xff]
  %v916 = vld [vmem:[#allocation4] sm:$0xff]
  %s917 = scalar_lea.vmem %s0, 64
  %v918 = vld [vmem:[%s917] sm:$0xff]
  %v919 = vld [vmem:[%s917 + $0x8] sm:$0xff]
  %v920 = vunpack.c.l.bf16 %v918
  %v921 = vunpack.c.h.bf16 %v918
  %v922 = vunpack.c.l.bf16 %v919
  %v923 = vunpack.c.h.bf16 %v919
  %v924 = vpack.c.bf16 %v915, %v915
  %v925 = vld [vmem:[#allocation2] sm:$0xff]
  %v926 = vld [vmem:[#allocation2 + $0x8] sm:$0xff]
  %v927 = vld [vmem:[#allocation2 + $0x10] sm:$0xff]
  %v928 = vld [vmem:[#allocation2 + $0x18] sm:$0xff]
  %v929 = vld [vmem:[#allocation2 + $0x20] sm:$0xff]
  %v930 = vld [vmem:[#allocation2 + $0x28] sm:$0xff]
  %v931 = vld [vmem:[#allocation2 + $0x30] sm:$0xff]
  %v932 = vld [vmem:[#allocation2 + $0x38] sm:$0xff]
  %v933 = vld [vmem:[#allocation2 + $0x40] sm:$0xff]
  %v934 = vld [vmem:[#allocation2 + $0x48] sm:$0xff]
  %v935 = vld [vmem:[#allocation2 + $0x50] sm:$0xff]
  %v936 = vld [vmem:[#allocation2 + $0x58] sm:$0xff]
  %v937 = vld [vmem:[#allocation2 + $0x60] sm:$0xff]
  %v938 = vld [vmem:[#allocation2 + $0x68] sm:$0xff]
  %v939 = vld [vmem:[#allocation2 + $0x70] sm:$0xff]
  %v940 = vld [vmem:[#allocation2 + $0x78] sm:$0xff]
  %v941 = vld [vmem:[#allocation2 + $0x80] sm:$0xff]
  %v942 = vld [vmem:[#allocation2 + $0x88] sm:$0xff]
  %v943 = vld [vmem:[#allocation2 + $0x90] sm:$0xff]
  %v944 = vld [vmem:[#allocation2 + $0x98] sm:$0xff]
  %v945 = vld [vmem:[#allocation2 + $0xa0] sm:$0xff]
  %v946 = vld [vmem:[#allocation2 + $0xa8] sm:$0xff]
  %v947 = vld [vmem:[#allocation2 + $0xb0] sm:$0xff]
  %v948 = vld [vmem:[#allocation2 + $0xb8] sm:$0xff]
  %v949 = vld [vmem:[#allocation2 + $0xc0] sm:$0xff]
  %v950 = vld [vmem:[#allocation2 + $0xc8] sm:$0xff]
  %v951 = vld [vmem:[#allocation2 + $0xd0] sm:$0xff]
  %v952 = vld [vmem:[#allocation2 + $0xd8] sm:$0xff]
  %v953 = vld [vmem:[#allocation2 + $0xe0] sm:$0xff]
  %v954 = vld [vmem:[#allocation2 + $0xe8] sm:$0xff]
  %v955 = vld [vmem:[#allocation2 + $0xf0] sm:$0xff]
  %v956 = vld [vmem:[#allocation2 + $0xf8] sm:$0xff]
  %957 = vmatprep.subr.bf16.mxu0 %v926
  %958 = vmatpush1.bf16.msra.mxu0 %v925
  %959 = vmatprep.subr.bf16.mxu0 %v930
  %960 = vmatpush1.bf16.msra.mxu0 %v929
  %961 = vmatprep.subr.bf16.mxu0 %v934
  %962 = vmatpush1.bf16.msra.mxu0 %v933
  %963 = vmatprep.subr.bf16.mxu0 %v938
  %964 = vmatpush1.bf16.msra.mxu0 %v937
  %965 = vmatprep.subr.bf16.mxu0 %v942
  %966 = vmatpush1.bf16.msra.mxu0 %v941
  %967 = vmatprep.subr.bf16.mxu0 %v946
  %968 = vmatpush1.bf16.msra.mxu0 %v945
  %969 = vmatprep.subr.bf16.mxu0 %v950
  %970 = vmatpush1.bf16.msra.mxu0 %v949
  %971 = vmatprep.subr.bf16.mxu0 %v954
  %972 = vmatpush1.bf16.msra.mxu0 %v953
  %973 = vmatprep.subr.bf16.mxu0 0
  %974 = vmatpush1.bf16.msra.mxu0 0
  %975 = vmatprep.subr.bf16.mxu0 0
  %976 = vmatpush1.bf16.msra.mxu0 0
  %977 = vmatprep.subr.bf16.mxu0 0
  %978 = vmatpush1.bf16.msra.mxu0 0
  %979 = vmatprep.subr.bf16.mxu0 0
  %980 = vmatpush1.bf16.msra.mxu0 0
  %981 = vmatprep.subr.bf16.mxu0 0
  %982 = vmatpush1.bf16.msra.mxu0 0
  %983 = vmatprep.subr.bf16.mxu0 0
  %984 = vmatpush1.bf16.msra.mxu0 0
  %985 = vmatprep.subr.bf16.mxu0 0
  %986 = vmatpush1.bf16.msra.mxu0 0
  %987 = vmatprep.subr.bf16.mxu0 0
  %988 = vmatpush1.bf16.msra.mxu0 0
  %989 = vmatprep.mubr.bf16.mxu0 0
  %990 = vmatmul.mubr.bf16.gmra.mrb[0].mxu0 %v924
  %v991 = vpop.f32.mrb[0].mxu0
  %v992 = vadd.f32 0.0, %v991
  %v993 = vpop.f32.mrb[0].mxu0
  %v994 = vadd.f32 0.0, %v993
  %v995 = vpop.f32.mrb[0].mxu0
  %v996 = vpop.f32.mrb[0].mxu0
  %997 = vdwg.mxu0
  %998 = vmatprep.subr.bf16.mxu0 %v928
  %999 = vmatpush1.bf16.msra.mxu0 %v927
  %1000 = vmatprep.subr.bf16.mxu0 %v932
  %1001 = vmatpush1.bf16.msra.mxu0 %v931
  %1002 = vmatprep.subr.bf16.mxu0 %v936
  %1003 = vmatpush1.bf16.msra.mxu0 %v935
  %1004 = vmatprep.subr.bf16.mxu0 %v940
  %1005 = vmatpush1.bf16.msra.mxu0 %v939
  %1006 = vmatprep.subr.bf16.mxu0 %v944
  %1007 = vmatpush1.bf16.msra.mxu0 %v943
  %1008 = vmatprep.subr.bf16.mxu0 %v948
  %1009 = vmatpush1.bf16.msra.mxu0 %v947
  %1010 = vmatprep.subr.bf16.mxu0 %v952
  %1011 = vmatpush1.bf16.msra.mxu0 %v951
  %1012 = vmatprep.subr.bf16.mxu0 %v956
  %1013 = vmatpush1.bf16.msra.mxu0 %v955
  %1014 = vmatprep.subr.bf16.mxu0 0
  %1015 = vmatpush1.bf16.msra.mxu0 0
  %1016 = vmatprep.subr.bf16.mxu0 0
  %1017 = vmatpush1.bf16.msra.mxu0 0
  %1018 = vmatprep.subr.bf16.mxu0 0
  %1019 = vmatpush1.bf16.msra.mxu0 0
  %1020 = vmatprep.subr.bf16.mxu0 0
  %1021 = vmatpush1.bf16.msra.mxu0 0
  %1022 = vmatprep.subr.bf16.mxu0 0
  %1023 = vmatpush1.bf16.msra.mxu0 0
  %1024 = vmatprep.subr.bf16.mxu0 0
  %1025 = vmatpush1.bf16.msra.mxu0 0
  %1026 = vmatprep.subr.bf16.mxu0 0
  %1027 = vmatpush1.bf16.msra.mxu0 0
  %1028 = vmatprep.subr.bf16.mxu0 0
  %1029 = vmatpush1.bf16.msra.mxu0 0
  %1030 = vmatprep.mubr.bf16.mxu0 0
  %1031 = vmatmul.mubr.bf16.gmra.mrb[0].mxu0 %v924
  %v1032 = vpop.f32.mrb[0].mxu0
  %v1033 = vadd.f32 0.0, %v1032
  %v1034 = vpop.f32.mrb[0].mxu0
  %v1035 = vadd.f32 0.0, %v1034
  %v1036 = vpop.f32.mrb[0].mxu0
  %v1037 = vpop.f32.mrb[0].mxu0
  %1038 = vdwg.mxu0
  %v1039 = vadd.f32 %v920, %v992
  %v1040 = vadd.f32 %v921, %v994
  %v1041 = vadd.f32 %v922, %v1033
  %v1042 = vadd.f32 %v923, %v1035
  %v1043 = vmul.f32 %v1039, 0.5
  %v1044 = vtanh.pop %v1043
  %v1045 = vmul.f32 %v1044, 0.5
  %v1046 = vadd.f32 %v1045, 0.5
  %v1047 = vmul.f32 %v1040, 0.5
  %v1048 = vtanh.pop %v1047
  %v1049 = vmul.f32 %v1048, 0.5
  %v1050 = vadd.f32 %v1049, 0.5
  %v1051 = vtanh.pop %v1041
  %v1052 = vmul.f32 %v1042, 0.5
  %v1053 = vtanh.pop %v1052
  %v1054 = vmul.f32 %v1053, 0.5
  %v1055 = vadd.f32 %v1054, 0.5
  %v1056 = vmul.f32 %v1050, %v916
  %v1057 = vmul.f32 %v1046, %v1051
  %v1058 = vadd.f32 %v1056, %v1057
  %v1059 = vtanh.pop %v1058
  %v1060 = vmul.f32 %v1055, %v1059
  %1061 = vst [vmem:[#allocation3] sm:$0xff] %v1060
  %1062 = vst [vmem:[#allocation4] sm:$0xff] %v1058
  %v1063 = vld [vmem:[#allocation3] sm:$0xff]
  %v1064 = vld [vmem:[#allocation4] sm:$0xff]
  %s1065 = scalar_lea.vmem %s0, 80
  %v1066 = vld [vmem:[%s1065] sm:$0xff]
  %v1067 = vld [vmem:[%s1065 + $0x8] sm:$0xff]
  %v1068 = vunpack.c.l.bf16 %v1066
  %v1069 = vunpack.c.h.bf16 %v1066
  %v1070 = vunpack.c.l.bf16 %v1067
  %v1071 = vunpack.c.h.bf16 %v1067
  %v1072 = vpack.c.bf16 %v1063, %v1063
  %v1073 = vld [vmem:[#allocation2] sm:$0xff]
  %v1074 = vld [vmem:[#allocation2 + $0x8] sm:$0xff]
  %v1075 = vld [vmem:[#allocation2 + $0x10] sm:$0xff]
  %v1076 = vld [vmem:[#allocation2 + $0x18] sm:$0xff]
  %v1077 = vld [vmem:[#allocation2 + $0x20] sm:$0xff]
  %v1078 = vld [vmem:[#allocation2 + $0x28] sm:$0xff]
  %v1079 = vld [vmem:[#allocation2 + $0x30] sm:$0xff]
  %v1080 = vld [vmem:[#allocation2 + $0x38] sm:$0xff]
  %v1081 = vld [vmem:[#allocation2 + $0x40] sm:$0xff]
  %v1082 = vld [vmem:[#allocation2 + $0x48] sm:$0xff]
  %v1083 = vld [vmem:[#allocation2 + $0x50] sm:$0xff]
  %v1084 = vld [vmem:[#allocation2 + $0x58] sm:$0xff]
  %v1085 = vld [vmem:[#allocation2 + $0x60] sm:$0xff]
  %v1086 = vld [vmem:[#allocation2 + $0x68] sm:$0xff]
  %v1087 = vld [vmem:[#allocation2 + $0x70] sm:$0xff]
  %v1088 = vld [vmem:[#allocation2 + $0x78] sm:$0xff]
  %v1089 = vld [vmem:[#allocation2 + $0x80] sm:$0xff]
  %v1090 = vld [vmem:[#allocation2 + $0x88] sm:$0xff]
  %v1091 = vld [vmem:[#allocation2 + $0x90] sm:$0xff]
  %v1092 = vld [vmem:[#allocation2 + $0x98] sm:$0xff]
  %v1093 = vld [vmem:[#allocation2 + $0xa0] sm:$0xff]
  %v1094 = vld [vmem:[#allocation2 + $0xa8] sm:$0xff]
  %v1095 = vld [vmem:[#allocation2 + $0xb0] sm:$0xff]
  %v1096 = vld [vmem:[#allocation2 + $0xb8] sm:$0xff]
  %v1097 = vld [vmem:[#allocation2 + $0xc0] sm:$0xff]
  %v1098 = vld [vmem:[#allocation2 + $0xc8] sm:$0xff]
  %v1099 = vld [vmem:[#allocation2 + $0xd0] sm:$0xff]
  %v1100 = vld [vmem:[#allocation2 + $0xd8] sm:$0xff]
  %v1101 = vld [vmem:[#allocation2 + $0xe0] sm:$0xff]
  %v1102 = vld [vmem:[#allocation2 + $0xe8] sm:$0xff]
  %v1103 = vld [vmem:[#allocation2 + $0xf0] sm:$0xff]
  %v1104 = vld [vmem:[#allocation2 + $0xf8] sm:$0xff]
  %1105 = vmatprep.subr.bf16.mxu0 %v1074
  %1106 = vmatpush1.bf16.msra.mxu0 %v1073
  %1107 = vmatprep.subr.bf16.mxu0 %v1078
  %1108 = vmatpush1.bf16.msra.mxu0 %v1077
  %1109 = vmatprep.subr.bf16.mxu0 %v1082
  %1110 = vmatpush1.bf16.msra.mxu0 %v1081
  %1111 = vmatprep.subr.bf16.mxu0 %v1086
  %1112 = vmatpush1.bf16.msra.mxu0 %v1085
  %1113 = vmatprep.subr.bf16.mxu0 %v1090
  %1114 = vmatpush1.bf16.msra.mxu0 %v1089
  %1115 = vmatprep.subr.bf16.mxu0 %v1094
  %1116 = vmatpush1.bf16.msra.mxu0 %v1093
  %1117 = vmatprep.subr.bf16.mxu0 %v1098
  %1118 = vmatpush1.bf16.msra.mxu0 %v1097
  %1119 = vmatprep.subr.bf16.mxu0 %v1102
  %1120 = vmatpush1.bf16.msra.mxu0 %v1101
  %1121 = vmatprep.subr.bf16.mxu0 0
  %1122 = vmatpush1.bf16.msra.mxu0 0
  %1123 = vmatprep.subr.bf16.mxu0 0
  %1124 = vmatpush1.bf16.msra.mxu0 0
  %1125 = vmatprep.subr.bf16.mxu0 0
  %1126 = vmatpush1.bf16.msra.mxu0 0
  %1127 = vmatprep.subr.bf16.mxu0 0
  %1128 = vmatpush1.bf16.msra.mxu0 0
  %1129 = vmatprep.subr.bf16.mxu0 0
  %1130 = vmatpush1.bf16.msra.mxu0 0
  %1131 = vmatprep.subr.bf16.mxu0 0
  %1132 = vmatpush1.bf16.msra.mxu0 0
  %1133 = vmatprep.subr.bf16.mxu0 0
  %1134 = vmatpush1.bf16.msra.mxu0 0
  %1135 = vmatprep.subr.bf16.mxu0 0
  %1136 = vmatpush1.bf16.msra.mxu0 0
  %1137 = vmatprep.mubr.bf16.mxu0 0
  %1138 = vmatmul.mubr.bf16.gmra.mrb[0].mxu0 %v1072
  %v1139 = vpop.f32.mrb[0].mxu0
  %v1140 = vadd.f32 0.0, %v1139
  %v1141 = vpop.f32.mrb[0].mxu0
  %v1142 = vadd.f32 0.0, %v1141
  %v1143 = vpop.f32.mrb[0].mxu0
  %v1144 = vpop.f32.mrb[0].mxu0
  %1145 = vdwg.mxu0
  %1146 = vmatprep.subr.bf16.mxu0 %v1076
  %1147 = vmatpush1.bf16.msra.mxu0 %v1075
  %1148 = vmatprep.subr.bf16.mxu0 %v1080
  %1149 = vmatpush1.bf16.msra.mxu0 %v1079
  %1150 = vmatprep.subr.bf16.mxu0 %v1084
  %1151 = vmatpush1.bf16.msra.mxu0 %v1083
  %1152 = vmatprep.subr.bf16.mxu0 %v1088
  %1153 = vmatpush1.bf16.msra.mxu0 %v1087
  %1154 = vmatprep.subr.bf16.mxu0 %v1092
  %1155 = vmatpush1.bf16.msra.mxu0 %v1091
  %1156 = vmatprep.subr.bf16.mxu0 %v1096
  %1157 = vmatpush1.bf16.msra.mxu0 %v1095
  %1158 = vmatprep.subr.bf16.mxu0 %v1100
  %1159 = vmatpush1.bf16.msra.mxu0 %v1099
  %1160 = vmatprep.subr.bf16.mxu0 %v1104
  %1161 = vmatpush1.bf16.msra.mxu0 %v1103
  %1162 = vmatprep.subr.bf16.mxu0 0
  %1163 = vmatpush1.bf16.msra.mxu0 0
  %1164 = vmatprep.subr.bf16.mxu0 0
  %1165 = vmatpush1.bf16.msra.mxu0 0
  %1166 = vmatprep.subr.bf16.mxu0 0
  %1167 = vmatpush1.bf16.msra.mxu0 0
  %1168 = vmatprep.subr.bf16.mxu0 0
  %1169 = vmatpush1.bf16.msra.mxu0 0
  %1170 = vmatprep.subr.bf16.mxu0 0
  %1171 = vmatpush1.bf16.msra.mxu0 0
  %1172 = vmatprep.subr.bf16.mxu0 0
  %1173 = vmatpush1.bf16.msra.mxu0 0
  %1174 = vmatprep.subr.bf16.mxu0 0
  %1175 = vmatpush1.bf16.msra.mxu0 0
  %1176 = vmatprep.subr.bf16.mxu0 0
  %1177 = vmatpush1.bf16.msra.mxu0 0
  %1178 = vmatprep.mubr.bf16.mxu0 0
  %1179 = vmatmul.mubr.bf16.gmra.mrb[0].mxu0 %v1072
  %v1180 = vpop.f32.mrb[0].mxu0
  %v1181 = vadd.f32 0.0, %v1180
  %v1182 = vpop.f32.mrb[0].mxu0
  %v1183 = vadd.f32 0.0, %v1182
  %v1184 = vpop.f32.mrb[0].mxu0
  %v1185 = vpop.f32.mrb[0].mxu0
  %1186 = vdwg.mxu0
  %v1187 = vadd.f32 %v1068, %v1140
  %v1188 = vadd.f32 %v1069, %v1142
  %v1189 = vadd.f32 %v1070, %v1181
  %v1190 = vadd.f32 %v1071, %v1183
  %v1191 = vmul.f32 %v1187, 0.5
  %v1192 = vtanh.pop %v1191
  %v1193 = vmul.f32 %v1192, 0.5
  %v1194 = vadd.f32 %v1193, 0.5
  %v1195 = vmul.f32 %v1188, 0.5
  %v1196 = vtanh.pop %v1195
  %v1197 = vmul.f32 %v1196, 0.5
  %v1198 = vadd.f32 %v1197, 0.5
  %v1199 = vtanh.pop %v1189
  %v1200 = vmul.f32 %v1190, 0.5
  %v1201 = vtanh.pop %v1200
  %v1202 = vmul.f32 %v1201, 0.5
  %v1203 = vadd.f32 %v1202, 0.5
  %v1204 = vmul.f32 %v1198, %v1064
  %v1205 = vmul.f32 %v1194, %v1199
  %v1206 = vadd.f32 %v1204, %v1205
  %v1207 = vtanh.pop %v1206
  %v1208 = vmul.f32 %v1203, %v1207
  %1209 = vst [vmem:[#allocation3] sm:$0xff] %v1208
  %1210 = vst [vmem:[#allocation4] sm:$0xff] %v1206
  %v1211 = vld [vmem:[#allocation3] sm:$0xff]
  %v1212 = vld [vmem:[#allocation4] sm:$0xff]
  %s1213 = scalar_lea.vmem %s0, 96
  %v1214 = vld [vmem:[%s1213] sm:$0xff]
  %v1215 = vld [vmem:[%s1213 + $0x8] sm:$0xff]
  %v1216 = vunpack.c.l.bf16 %v1214
  %v1217 = vunpack.c.h.bf16 %v1214
  %v1218 = vunpack.c.l.bf16 %v1215
  %v1219 = vunpack.c.h.bf16 %v1215
  %v1220 = vpack.c.bf16 %v1211, %v1211
  %v1221 = vld [vmem:[#allocation2] sm:$0xff]
  %v1222 = vld [vmem:[#allocation2 + $0x8] sm:$0xff]
  %v1223 = vld [vmem:[#allocation2 + $0x10] sm:$0xff]
  %v1224 = vld [vmem:[#allocation2 + $0x18] sm:$0xff]
  %v1225 = vld [vmem:[#allocation2 + $0x20] sm:$0xff]
  %v1226 = vld [vmem:[#allocation2 + $0x28] sm:$0xff]
  %v1227 = vld [vmem:[#allocation2 + $0x30] sm:$0xff]
  %v1228 = vld [vmem:[#allocation2 + $0x38] sm:$0xff]
  %v1229 = vld [vmem:[#allocation2 + $0x40] sm:$0xff]
  %v1230 = vld [vmem:[#allocation2 + $0x48] sm:$0xff]
  %v1231 = vld [vmem:[#allocation2 + $0x50] sm:$0xff]
  %v1232 = vld [vmem:[#allocation2 + $0x58] sm:$0xff]
  %v1233 = vld [vmem:[#allocation2 + $0x60] sm:$0xff]
  %v1234 = vld [vmem:[#allocation2 + $0x68] sm:$0xff]
  %v1235 = vld [vmem:[#allocation2 + $0x70] sm:$0xff]
  %v1236 = vld [vmem:[#allocation2 + $0x78] sm:$0xff]
  %v1237 = vld [vmem:[#allocation2 + $0x80] sm:$0xff]
  %v1238 = vld [vmem:[#allocation2 + $0x88] sm:$0xff]
  %v1239 = vld [vmem:[#allocation2 + $0x90] sm:$0xff]
  %v1240 = vld [vmem:[#allocation2 + $0x98] sm:$0xff]
  %v1241 = vld [vmem:[#allocation2 + $0xa0] sm:$0xff]
  %v1242 = vld [vmem:[#allocation2 + $0xa8] sm:$0xff]
  %v1243 = vld [vmem:[#allocation2 + $0xb0] sm:$0xff]
  %v1244 = vld [vmem:[#allocation2 + $0xb8] sm:$0xff]
  %v1245 = vld [vmem:[#allocation2 + $0xc0] sm:$0xff]
  %v1246 = vld [vmem:[#allocation2 + $0xc8] sm:$0xff]
  %v1247 = vld [vmem:[#allocation2 + $0xd0] sm:$0xff]
  %v1248 = vld [vmem:[#allocation2 + $0xd8] sm:$0xff]
  %v1249 = vld [vmem:[#allocation2 + $0xe0] sm:$0xff]
  %v1250 = vld [vmem:[#allocation2 + $0xe8] sm:$0xff]
  %v1251 = vld [vmem:[#allocation2 + $0xf0] sm:$0xff]
  %v1252 = vld [vmem:[#allocation2 + $0xf8] sm:$0xff]
  %1253 = vmatprep.subr.bf16.mxu0 %v1222
  %1254 = vmatpush1.bf16.msra.mxu0 %v1221
  %1255 = vmatprep.subr.bf16.mxu0 %v1226
  %1256 = vmatpush1.bf16.msra.mxu0 %v1225
  %1257 = vmatprep.subr.bf16.mxu0 %v1230
  %1258 = vmatpush1.bf16.msra.mxu0 %v1229
  %1259 = vmatprep.subr.bf16.mxu0 %v1234
  %1260 = vmatpush1.bf16.msra.mxu0 %v1233
  %1261 = vmatprep.subr.bf16.mxu0 %v1238
  %1262 = vmatpush1.bf16.msra.mxu0 %v1237
  %1263 = vmatprep.subr.bf16.mxu0 %v1242
  %1264 = vmatpush1.bf16.msra.mxu0 %v1241
  %1265 = vmatprep.subr.bf16.mxu0 %v1246
  %1266 = vmatpush1.bf16.msra.mxu0 %v1245
  %1267 = vmatprep.subr.bf16.mxu0 %v1250
  %1268 = vmatpush1.bf16.msra.mxu0 %v1249
  %1269 = vmatprep.subr.bf16.mxu0 0
  %1270 = vmatpush1.bf16.msra.mxu0 0
  %1271 = vmatprep.subr.bf16.mxu0 0
  %1272 = vmatpush1.bf16.msra.mxu0 0
  %1273 = vmatprep.subr.bf16.mxu0 0
  %1274 = vmatpush1.bf16.msra.mxu0 0
  %1275 = vmatprep.subr.bf16.mxu0 0
  %1276 = vmatpush1.bf16.msra.mxu0 0
  %1277 = vmatprep.subr.bf16.mxu0 0
  %1278 = vmatpush1.bf16.msra.mxu0 0
  %1279 = vmatprep.subr.bf16.mxu0 0
  %1280 = vmatpush1.bf16.msra.mxu0 0
  %1281 = vmatprep.subr.bf16.mxu0 0
  %1282 = vmatpush1.bf16.msra.mxu0 0
  %1283 = vmatprep.subr.bf16.mxu0 0
  %1284 = vmatpush1.bf16.msra.mxu0 0
  %1285 = vmatprep.mubr.bf16.mxu0 0
  %1286 = vmatmul.mubr.bf16.gmra.mrb[0].mxu0 %v1220
  %v1287 = vpop.f32.mrb[0].mxu0
  %v1288 = vadd.f32 0.0, %v1287
  %v1289 = vpop.f32.mrb[0].mxu0
  %v1290 = vadd.f32 0.0, %v1289
  %v1291 = vpop.f32.mrb[0].mxu0
  %v1292 = vpop.f32.mrb[0].mxu0
  %1293 = vdwg.mxu0
  %1294 = vmatprep.subr.bf16.mxu0 %v1224
  %1295 = vmatpush1.bf16.msra.mxu0 %v1223
  %1296 = vmatprep.subr.bf16.mxu0 %v1228
  %1297 = vmatpush1.bf16.msra.mxu0 %v1227
  %1298 = vmatprep.subr.bf16.mxu0 %v1232
  %1299 = vmatpush1.bf16.msra.mxu0 %v1231
  %1300 = vmatprep.subr.bf16.mxu0 %v1236
  %1301 = vmatpush1.bf16.msra.mxu0 %v1235
  %1302 = vmatprep.subr.bf16.mxu0 %v1240
  %1303 = vmatpush1.bf16.msra.mxu0 %v1239
  %1304 = vmatprep.subr.bf16.mxu0 %v1244
  %1305 = vmatpush1.bf16.msra.mxu0 %v1243
  %1306 = vmatprep.subr.bf16.mxu0 %v1248
  %1307 = vmatpush1.bf16.msra.mxu0 %v1247
  %1308 = vmatprep.subr.bf16.mxu0 %v1252
  %1309 = vmatpush1.bf16.msra.mxu0 %v1251
  %1310 = vmatprep.subr.bf16.mxu0 0
  %1311 = vmatpush1.bf16.msra.mxu0 0
  %1312 = vmatprep.subr.bf16.mxu0 0
  %1313 = vmatpush1.bf16.msra.mxu0 0
  %1314 = vmatprep.subr.bf16.mxu0 0
  %1315 = vmatpush1.bf16.msra.mxu0 0
  %1316 = vmatprep.subr.bf16.mxu0 0
  %1317 = vmatpush1.bf16.msra.mxu0 0
  %1318 = vmatprep.subr.bf16.mxu0 0
  %1319 = vmatpush1.bf16.msra.mxu0 0
  %1320 = vmatprep.subr.bf16.mxu0 0
  %1321 = vmatpush1.bf16.msra.mxu0 0
  %1322 = vmatprep.subr.bf16.mxu0 0
  %1323 = vmatpush1.bf16.msra.mxu0 0
  %1324 = vmatprep.subr.bf16.mxu0 0
  %1325 = vmatpush1.bf16.msra.mxu0 0
  %1326 = vmatprep.mubr.bf16.mxu0 0
  %1327 = vmatmul.mubr.bf16.gmra.mrb[0].mxu0 %v1220
  %v1328 = vpop.f32.mrb[0].mxu0
  %v1329 = vadd.f32 0.0, %v1328
  %v1330 = vpop.f32.mrb[0].mxu0
  %v1331 = vadd.f32 0.0, %v1330
  %v1332 = vpop.f32.mrb[0].mxu0
  %v1333 = vpop.f32.mrb[0].mxu0
  %1334 = vdwg.mxu0
  %v1335 = vadd.f32 %v1216, %v1288
  %v1336 = vadd.f32 %v1217, %v1290
  %v1337 = vadd.f32 %v1218, %v1329
  %v1338 = vadd.f32 %v1219, %v1331
  %v1339 = vmul.f32 %v1335, 0.5
  %v1340 = vtanh.pop %v1339
  %v1341 = vmul.f32 %v1340, 0.5
  %v1342 = vadd.f32 %v1341, 0.5
  %v1343 = vmul.f32 %v1336, 0.5
  %v1344 = vtanh.pop %v1343
  %v1345 = vmul.f32 %v1344, 0.5
  %v1346 = vadd.f32 %v1345, 0.5
  %v1347 = vtanh.pop %v1337
  %v1348 = vmul.f32 %v1338, 0.5
  %v1349 = vtanh.pop %v1348
  %v1350 = vmul.f32 %v1349, 0.5
  %v1351 = vadd.f32 %v1350, 0.5
  %v1352 = vmul.f32 %v1346, %v1212
  %v1353 = vmul.f32 %v1342, %v1347
  %v1354 = vadd.f32 %v1352, %v1353
  %v1355 = vtanh.pop %v1354
  %v1356 = vmul.f32 %v1351, %v1355
  %1357 = vst [vmem:[#allocation3] sm:$0xff] %v1356
  %1358 = vst [vmem:[#allocation4] sm:$0xff] %v1354
  %v1359 = vld [vmem:[#allocation3] sm:$0xff]
  %v1360 = vld [vmem:[#allocation4] sm:$0xff]
  %s1361 = scalar_lea.vmem %s0, 112
  %v1362 = vld [vmem:[%s1361] sm:$0xff]
  %v1363 = vld [vmem:[%s1361 + $0x8] sm:$0xff]
  %v1364 = vunpack.c.l.bf16 %v1362
  %v1365 = vunpack.c.h.bf16 %v1362
  %v1366 = vunpack.c.l.bf16 %v1363
  %v1367 = vunpack.c.h.bf16 %v1363
  %v1368 = vpack.c.bf16 %v1359, %v1359
  %v1369 = vld [vmem:[#allocation2] sm:$0xff]
  %v1370 = vld [vmem:[#allocation2 + $0x8] sm:$0xff]
  %v1371 = vld [vmem:[#allocation2 + $0x10] sm:$0xff]
  %v1372 = vld [vmem:[#allocation2 + $0x18] sm:$0xff]
  %v1373 = vld [vmem:[#allocation2 + $0x20] sm:$0xff]
  %v1374 = vld [vmem:[#allocation2 + $0x28] sm:$0xff]
  %v1375 = vld [vmem:[#allocation2 + $0x30] sm:$0xff]
  %v1376 = vld [vmem:[#allocation2 + $0x38] sm:$0xff]
  %v1377 = vld [vmem:[#allocation2 + $0x40] sm:$0xff]
  %v1378 = vld [vmem:[#allocation2 + $0x48] sm:$0xff]
  %v1379 = vld [vmem:[#allocation2 + $0x50] sm:$0xff]
  %v1380 = vld [vmem:[#allocation2 + $0x58] sm:$0xff]
  %v1381 = vld [vmem:[#allocation2 + $0x60] sm:$0xff]
  %v1382 = vld [vmem:[#allocation2 + $0x68] sm:$0xff]
  %v1383 = vld [vmem:[#allocation2 + $0x70] sm:$0xff]
  %v1384 = vld [vmem:[#allocation2 + $0x78] sm:$0xff]
  %v1385 = vld [vmem:[#allocation2 + $0x80] sm:$0xff]
  %v1386 = vld [vmem:[#allocation2 + $0x88] sm:$0xff]
  %v1387 = vld [vmem:[#allocation2 + $0x90] sm:$0xff]
  %v1388 = vld [vmem:[#allocation2 + $0x98] sm:$0xff]
  %v1389 = vld [vmem:[#allocation2 + $0xa0] sm:$0xff]
  %v1390 = vld [vmem:[#allocation2 + $0xa8] sm:$0xff]
  %v1391 = vld [vmem:[#allocation2 + $0xb0] sm:$0xff]
  %v1392 = vld [vmem:[#allocation2 + $0xb8] sm:$0xff]
  %v1393 = vld [vmem:[#allocation2 + $0xc0] sm:$0xff]
  %v1394 = vld [vmem:[#allocation2 + $0xc8] sm:$0xff]
  %v1395 = vld [vmem:[#allocation2 + $0xd0] sm:$0xff]
  %v1396 = vld [vmem:[#allocation2 + $0xd8] sm:$0xff]
  %v1397 = vld [vmem:[#allocation2 + $0xe0] sm:$0xff]
  %v1398 = vld [vmem:[#allocation2 + $0xe8] sm:$0xff]
  %v1399 = vld [vmem:[#allocation2 + $0xf0] sm:$0xff]
  %v1400 = vld [vmem:[#allocation2 + $0xf8] sm:$0xff]
  %1401 = vmatprep.subr.bf16.mxu0 %v1370
  %1402 = vmatpush1.bf16.msra.mxu0 %v1369
  %1403 = vmatprep.subr.bf16.mxu0 %v1374
  %1404 = vmatpush1.bf16.msra.mxu0 %v1373
  %1405 = vmatprep.subr.bf16.mxu0 %v1378
  %1406 = vmatpush1.bf16.msra.mxu0 %v1377
  %1407 = vmatprep.subr.bf16.mxu0 %v1382
  %1408 = vmatpush1.bf16.msra.mxu0 %v1381
  %1409 = vmatprep.subr.bf16.mxu0 %v1386
  %1410 = vmatpush1.bf16.msra.mxu0 %v1385
  %1411 = vmatprep.subr.bf16.mxu0 %v1390
  %1412 = vmatpush1.bf16.msra.mxu0 %v1389
  %1413 = vmatprep.subr.bf16.mxu0 %v1394
  %1414 = vmatpush1.bf16.msra.mxu0 %v1393
  %1415 = vmatprep.subr.bf16.mxu0 %v1398
  %1416 = vmatpush1.bf16.msra.mxu0 %v1397
  %1417 = vmatprep.subr.bf16.mxu0 0
  %1418 = vmatpush1.bf16.msra.mxu0 0
  %1419 = vmatprep.subr.bf16.mxu0 0
  %1420 = vmatpush1.bf16.msra.mxu0 0
  %1421 = vmatprep.subr.bf16.mxu0 0
  %1422 = vmatpush1.bf16.msra.mxu0 0
  %1423 = vmatprep.subr.bf16.mxu0 0
  %1424 = vmatpush1.bf16.msra.mxu0 0
  %1425 = vmatprep.subr.bf16.mxu0 0
  %1426 = vmatpush1.bf16.msra.mxu0 0
  %1427 = vmatprep.subr.bf16.mxu0 0
  %1428 = vmatpush1.bf16.msra.mxu0 0
  %1429 = vmatprep.subr.bf16.mxu0 0
  %1430 = vmatpush1.bf16.msra.mxu0 0
  %1431 = vmatprep.subr.bf16.mxu0 0
  %1432 = vmatpush1.bf16.msra.mxu0 0
  %1433 = vmatprep.mubr.bf16.mxu0 0
  %1434 = vmatmul.mubr.bf16.gmra.mrb[0].mxu0 %v1368
  %v1435 = vpop.f32.mrb[0].mxu0
  %v1436 = vadd.f32 0.0, %v1435
  %v1437 = vpop.f32.mrb[0].mxu0
  %v1438 = vadd.f32 0.0, %v1437
  %v1439 = vpop.f32.mrb[0].mxu0
  %v1440 = vpop.f32.mrb[0].mxu0
  %1441 = vdwg.mxu0
  %1442 = vmatprep.subr.bf16.mxu0 %v1372
  %1443 = vmatpush1.bf16.msra.mxu0 %v1371
  %1444 = vmatprep.subr.bf16.mxu0 %v1376
  %1445 = vmatpush1.bf16.msra.mxu0 %v1375
  %1446 = vmatprep.subr.bf16.mxu0 %v1380
  %1447 = vmatpush1.bf16.msra.mxu0 %v1379
  %1448 = vmatprep.subr.bf16.mxu0 %v1384
  %1449 = vmatpush1.bf16.msra.mxu0 %v1383
  %1450 = vmatprep.subr.bf16.mxu0 %v1388
  %1451 = vmatpush1.bf16.msra.mxu0 %v1387
  %1452 = vmatprep.subr.bf16.mxu0 %v1392
  %1453 = vmatpush1.bf16.msra.mxu0 %v1391
  %1454 = vmatprep.subr.bf16.mxu0 %v1396
  %1455 = vmatpush1.bf16.msra.mxu0 %v1395
  %1456 = vmatprep.subr.bf16.mxu0 %v1400
  %1457 = vmatpush1.bf16.msra.mxu0 %v1399
  %1458 = vmatprep.subr.bf16.mxu0 0
  %1459 = vmatpush1.bf16.msra.mxu0 0
  %1460 = vmatprep.subr.bf16.mxu0 0
  %1461 = vmatpush1.bf16.msra.mxu0 0
  %1462 = vmatprep.subr.bf16.mxu0 0
  %1463 = vmatpush1.bf16.msra.mxu0 0
  %1464 = vmatprep.subr.bf16.mxu0 0
  %1465 = vmatpush1.bf16.msra.mxu0 0
  %1466 = vmatprep.subr.bf16.mxu0 0
  %1467 = vmatpush1.bf16.msra.mxu0 0
  %1468 = vmatprep.subr.bf16.mxu0 0
  %1469 = vmatpush1.bf16.msra.mxu0 0
  %1470 = vmatprep.subr.bf16.mxu0 0
  %1471 = vmatpush1.bf16.msra.mxu0 0
  %1472 = vmatprep.subr.bf16.mxu0 0
  %1473 = vmatpush1.bf16.msra.mxu0 0
  %1474 = vmatprep.mubr.bf16.mxu0 0
  %1475 = vmatmul.mubr.bf16.gmra.mrb[0].mxu0 %v1368
  %v1476 = vpop.f32.mrb[0].mxu0
  %v1477 = vadd.f32 0.0, %v1476
  %v1478 = vpop.f32.mrb[0].mxu0
  %v1479 = vadd.f32 0.0, %v1478
  %v1480 = vpop.f32.mrb[0].mxu0
  %v1481 = vpop.f32.mrb[0].mxu0
  %1482 = vdwg.mxu0
  %v1483 = vadd.f32 %v1364, %v1436
  %v1484 = vadd.f32 %v1365, %v1438
  %v1485 = vadd.f32 %v1366, %v1477
  %v1486 = vadd.f32 %v1367, %v1479
  %v1487 = vmul.f32 %v1483, 0.5
  %v1488 = vtanh.pop %v1487
  %v1489 = vmul.f32 %v1488, 0.5
  %v1490 = vadd.f32 %v1489, 0.5
  %v1491 = vmul.f32 %v1484, 0.5
  %v1492 = vtanh.pop %v1491
  %v1493 = vmul.f32 %v1492, 0.5
  %v1494 = vadd.f32 %v1493, 0.5
  %v1495 = vtanh.pop %v1485
  %v1496 = vmul.f32 %v1486, 0.5
  %v1497 = vtanh.pop %v1496
  %v1498 = vmul.f32 %v1497, 0.5
  %v1499 = vadd.f32 %v1498, 0.5
  %v1500 = vmul.f32 %v1494, %v1360
  %v1501 = vmul.f32 %v1490, %v1495
  %v1502 = vadd.f32 %v1500, %v1501
  %v1503 = vtanh.pop %v1502
  %v1504 = vmul.f32 %v1499, %v1503
  %1505 = vst [vmem:[#allocation3] sm:$0xff] %v1504
  %1506 = vst [vmem:[#allocation4] sm:$0xff] %v1502
  // Predicated region
  $region47: #{lstm_processor_forward.3} parent=0 // pred_check
    %p1507 = pneg %p10
  $region48: #{lstm_processor_forward.3} parent=0 // pred_check_branch
    %1509 = sbr.rel (%p1507) target = $region50
  $region49: #{lstm_processor_forward.3} parent=0 // pred_region
    %v1510 = vld [vmem:[#allocation3] sm:$0xff]
    %1511 = vst [vmem:[%s2] sm:$0xff] %v1510
  $region50: #{lstm_processor_forward.3} parent=0 // pred_fallthru
    _
  // Predicated region
  $region51: #{lstm_processor_forward.3} parent=0 // pred_check
    _
  $region52: #{lstm_processor_forward.3} parent=0 // pred_check_branch
    %1513 = sbr.rel (0) target = $region54
  $region53: #{lstm_processor_forward.3} parent=0 // pred_region
    _
  $region54: #{lstm_processor_forward.3} parent=0 // pred_fallthru
    _
  // Predicated region
  $region55: #{lstm_processor_forward.3} parent=0 // pred_check
    _
  $region56: #{lstm_processor_forward.3} parent=0 // pred_check_branch
    %1515 = sbr.rel (0) target = $region58
  $region57: #{lstm_processor_forward.3} parent=0 // pred_region
    _
  $region58: #{lstm_processor_forward.3} parent=0 // pred_fallthru
    _
  %1516 = vsyncmov [#allocation5]
  %s1517 = vpop.sfrf %1516
  %p1518 = scmp.eq.s32.totalorder %s1517, 0
  %p1519 = pneg %p1518
  %1521 = shalt.err (%p1519)

// kernel: lstm_processor_forward.2
$region0: #{lstm_processor_forward.2}
  #allocation0 [shape = 'u32[]', space=smem, size = 0x4, offset = 0x4, fixed_abs, tag = 'smem constant byte address 0x4 - core index']
  #allocation1 [shape = 'u32[144,128]{1,0:T(1,128)}', space=vmem, size = 0x12000, scoped, tag = 'internal scratch']
  #allocation2 [shape = 'bf16[128,512]{1,0:T(16,128)(2,1)}', space=vmem, size = 0x20000, scoped, tag = 'scratch operand']
  #allocation3 [shape = 'f32[8,128]{1,0:T(8,128)}', space=vmem, size = 0x1000, scoped, tag = 'scratch operand']
  #allocation4 [shape = 'f32[8,128]{1,0:T(8,128)}', space=vmem, size = 0x1000, scoped, tag = 'scratch operand']
  #allocation5 [shape = 's32[1]{0}', space=sflag, size = 0x4, scoped, tag = 'scratch operand']
  #allocation6 [shape = 's32[]', space=sflag, size = 0x4, offset = 0, fixed_abs, tag = 'sflag constant byte address 0x0 - dummy sync flag']
  %s0 = inlined_call_operand.vmem [shape: bf16[8,8,512], index: 0, kind: input, shape index: {}]
  %s1 = inlined_call_operand.hbm [shape: bf16[128,512], index: 1, kind: input, shape index: {}]
  %s2 = inlined_call_operand.vmem [shape: bf16[8,8,128], index: 2, kind: output, shape index: {}]
  %s3 = sld [smem:[#allocation0]]
  $region18: #{lstm_processor_forward.2} parent=0
    _
  %s5 = ssub.s32 1, %s3
  %s6 = scalar_select 0, %s5, %s3
  // Predicated region
  $region2: #{lstm_processor_forward.2} parent=0 // pred_check
    _
  $region3: #{lstm_processor_forward.2} parent=0 // pred_check_branch
    %8 = sbr.rel (0) target = $region5
  $region4: #{lstm_processor_forward.2} parent=0 // pred_region
    _
  $region5: #{lstm_processor_forward.2} parent=0 // pred_fallthru
    _
  %p10 = scmp.eq.s32.totalorder 0, 0
  // Predicated region
  $region6: #{lstm_processor_forward.2} parent=0 // pred_check
    %p11 = pneg %p10
  $region7: #{lstm_processor_forward.2} parent=0 // pred_check_branch
    %13 = sbr.rel (%p11) target = $region9
  $region8: #{lstm_processor_forward.2} parent=0 // pred_region
    #allocation7 [shape = 'u32[9]{0}', space=smem, size = 0x24, scoped, tag = 'DMA stride descriptor']
    %14 = vst [vmem:[#allocation3] sm:$0xff] 0.0
    %15 = vst [vmem:[#allocation4] sm:$0xff] 0.0
    %s17 = sshll.u32 1, 14
    %s18 = sxor.u32 4294967295, %s17
    %s20 = sld [smem:[#allocation0]]
    %s21 = sadd.s32 2, %s20
    %s23 = sshll.u32 7, 26
    %s24 = sxor.u32 4294967295, %s23
    %s25 = sand.u32 0, %s24
    %s26 = sshll.u32 %s21, 26
    %s27 = sor.u32 %s25, %s26
    %s28 = sshll.u32 [#allocation2], 4
    %s29 = int_to_ptr.vmem [resolvable:$true] %s28
    %32 = sst [smem:[#allocation7]] 512
    %s33 = scalar_lea.smem [#allocation7], 1
    %34 = sst [smem:[%s33]] 512
    %s35 = scalar_lea.smem [#allocation7], 2
    %36 = sst [smem:[%s35]] 4
    %s37 = scalar_lea.smem [#allocation7], 3
    %38 = sst [smem:[%s37]] 64
    %s39 = scalar_lea.smem [#allocation7], 4
    %40 = sst [smem:[%s39]] 128
    %s41 = scalar_lea.smem [#allocation7], 5
    %42 = sst [smem:[%s41]] 2
    %s43 = scalar_lea.smem [#allocation7], 6
    %44 = sst [smem:[%s43]] 256
    %s45 = scalar_lea.smem [#allocation7], 7
    %46 = sst [smem:[%s45]] 64
    %s47 = scalar_lea.smem [#allocation7], 8
    %48 = sst [smem:[%s47]] 4
    %50 = dma.general %s1, 4096, %s29, [#allocation5], [#allocation6], [#allocation7], %s27, 0
    %s51 = smul.u32 4, 16
    %s52 = smul.u32 %s51, 4
    %s53 = sshll.u32 %s52, 4
    %54 = dma.done [#allocation5], %s53
  $region9: #{lstm_processor_forward.2} parent=0 // pred_fallthru
    _
  %v55 = vld [vmem:[#allocation3] sm:$0xff]
  %v56 = vld [vmem:[#allocation4] sm:$0xff]
  %v57 = vld [vmem:[%s0] sm:$0xff]
  %v58 = vld [vmem:[%s0 + $0x8] sm:$0xff]
  %v59 = vunpack.c.l.bf16 %v57
  %v60 = vunpack.c.h.bf16 %v57
  %v61 = vunpack.c.l.bf16 %v58
  %v62 = vunpack.c.h.bf16 %v58
  %v63 = vpack.c.bf16 %v55, %v55
  %v64 = vld [vmem:[#allocation2] sm:$0xff]
  %v65 = vld [vmem:[#allocation2 + $0x8] sm:$0xff]
  %v66 = vld [vmem:[#allocation2 + $0x10] sm:$0xff]
  %v67 = vld [vmem:[#allocation2 + $0x18] sm:$0xff]
  %v68 = vld [vmem:[#allocation2 + $0x20] sm:$0xff]
  %v69 = vld [vmem:[#allocation2 + $0x28] sm:$0xff]
  %v70 = vld [vmem:[#allocation2 + $0x30] sm:$0xff]
  %v71 = vld [vmem:[#allocation2 + $0x38] sm:$0xff]
  %v72 = vld [vmem:[#allocation2 + $0x40] sm:$0xff]
  %v73 = vld [vmem:[#allocation2 + $0x48] sm:$0xff]
  %v74 = vld [vmem:[#allocation2 + $0x50] sm:$0xff]
  %v75 = vld [vmem:[#allocation2 + $0x58] sm:$0xff]
  %v76 = vld [vmem:[#allocation2 + $0x60] sm:$0xff]
  %v77 = vld [vmem:[#allocation2 + $0x68] sm:$0xff]
  %v78 = vld [vmem:[#allocation2 + $0x70] sm:$0xff]
  %v79 = vld [vmem:[#allocation2 + $0x78] sm:$0xff]
  %v80 = vld [vmem:[#allocation2 + $0x80] sm:$0xff]
  %v81 = vld [vmem:[#allocation2 + $0x88] sm:$0xff]
  %v82 = vld [vmem:[#allocation2 + $0x90] sm:$0xff]
  %v83 = vld [vmem:[#allocation2 + $0x98] sm:$0xff]
  %v84 = vld [vmem:[#allocation2 + $0xa0] sm:$0xff]
  %v85 = vld [vmem:[#allocation2 + $0xa8] sm:$0xff]
  %v86 = vld [vmem:[#allocation2 + $0xb0] sm:$0xff]
  %v87 = vld [vmem:[#allocation2 + $0xb8] sm:$0xff]
  %v88 = vld [vmem:[#allocation2 + $0xc0] sm:$0xff]
  %v89 = vld [vmem:[#allocation2 + $0xc8] sm:$0xff]
  %v90 = vld [vmem:[#allocation2 + $0xd0] sm:$0xff]
  %v91 = vld [vmem:[#allocation2 + $0xd8] sm:$0xff]
  %v92 = vld [vmem:[#allocation2 + $0xe0] sm:$0xff]
  %v93 = vld [vmem:[#allocation2 + $0xe8] sm:$0xff]
  %v94 = vld [vmem:[#allocation2 + $0xf0] sm:$0xff]
  %v95 = vld [vmem:[#allocation2 + $0xf8] sm:$0xff]
  %96 = vmatprep.subr.bf16.mxu0 %v65
  %97 = vmatpush1.bf16.msra.mxu0 %v64
  %98 = vmatprep.subr.bf16.mxu0 %v69
  %99 = vmatpush1.bf16.msra.mxu0 %v68
  %100 = vmatprep.subr.bf16.mxu0 %v73
  %101 = vmatpush1.bf16.msra.mxu0 %v72
  %102 = vmatprep.subr.bf16.mxu0 %v77
  %103 = vmatpush1.bf16.msra.mxu0 %v76
  %104 = vmatprep.subr.bf16.mxu0 %v81
  %105 = vmatpush1.bf16.msra.mxu0 %v80
  %106 = vmatprep.subr.bf16.mxu0 %v85
  %107 = vmatpush1.bf16.msra.mxu0 %v84
  %108 = vmatprep.subr.bf16.mxu0 %v89
  %109 = vmatpush1.bf16.msra.mxu0 %v88
  %110 = vmatprep.subr.bf16.mxu0 %v93
  %111 = vmatpush1.bf16.msra.mxu0 %v92
  %112 = vmatprep.subr.bf16.mxu0 0
  %113 = vmatpush1.bf16.msra.mxu0 0
  %114 = vmatprep.subr.bf16.mxu0 0
  %115 = vmatpush1.bf16.msra.mxu0 0
  %116 = vmatprep.subr.bf16.mxu0 0
  %117 = vmatpush1.bf16.msra.mxu0 0
  %118 = vmatprep.subr.bf16.mxu0 0
  %119 = vmatpush1.bf16.msra.mxu0 0
  %120 = vmatprep.subr.bf16.mxu0 0
  %121 = vmatpush1.bf16.msra.mxu0 0
  %122 = vmatprep.subr.bf16.mxu0 0
  %123 = vmatpush1.bf16.msra.mxu0 0
  %124 = vmatprep.subr.bf16.mxu0 0
  %125 = vmatpush1.bf16.msra.mxu0 0
  %126 = vmatprep.subr.bf16.mxu0 0
  %127 = vmatpush1.bf16.msra.mxu0 0
  %128 = vmatprep.mubr.bf16.mxu0 0
  %129 = vmatmul.mubr.bf16.gmra.mrb[0].mxu0 %v63
  %v130 = vpop.f32.mrb[0].mxu0
  %v131 = vadd.f32 0.0, %v130
  %v132 = vpop.f32.mrb[0].mxu0
  %v133 = vadd.f32 0.0, %v132
  %v134 = vpop.f32.mrb[0].mxu0
  %v135 = vpop.f32.mrb[0].mxu0
  %136 = vdwg.mxu0
  %137 = vmatprep.subr.bf16.mxu0 %v67
  %138 = vmatpush1.bf16.msra.mxu0 %v66
  %139 = vmatprep.subr.bf16.mxu0 %v71
  %140 = vmatpush1.bf16.msra.mxu0 %v70
  %141 = vmatprep.subr.bf16.mxu0 %v75
  %142 = vmatpush1.bf16.msra.mxu0 %v74
  %143 = vmatprep.subr.bf16.mxu0 %v79
  %144 = vmatpush1.bf16.msra.mxu0 %v78
  %145 = vmatprep.subr.bf16.mxu0 %v83
  %146 = vmatpush1.bf16.msra.mxu0 %v82
  %147 = vmatprep.subr.bf16.mxu0 %v87
  %148 = vmatpush1.bf16.msra.mxu0 %v86
  %149 = vmatprep.subr.bf16.mxu0 %v91
  %150 = vmatpush1.bf16.msra.mxu0 %v90
  %151 = vmatprep.subr.bf16.mxu0 %v95
  %152 = vmatpush1.bf16.msra.mxu0 %v94
  %153 = vmatprep.subr.bf16.mxu0 0
  %154 = vmatpush1.bf16.msra.mxu0 0
  %155 = vmatprep.subr.bf16.mxu0 0
  %156 = vmatpush1.bf16.msra.mxu0 0
  %157 = vmatprep.subr.bf16.mxu0 0
  %158 = vmatpush1.bf16.msra.mxu0 0
  %159 = vmatprep.subr.bf16.mxu0 0
  %160 = vmatpush1.bf16.msra.mxu0 0
  %161 = vmatprep.subr.bf16.mxu0 0
  %162 = vmatpush1.bf16.msra.mxu0 0
  %163 = vmatprep.subr.bf16.mxu0 0
  %164 = vmatpush1.bf16.msra.mxu0 0
  %165 = vmatprep.subr.bf16.mxu0 0
  %166 = vmatpush1.bf16.msra.mxu0 0
  %167 = vmatprep.subr.bf16.mxu0 0
  %168 = vmatpush1.bf16.msra.mxu0 0
  %169 = vmatprep.mubr.bf16.mxu0 0
  %170 = vmatmul.mubr.bf16.gmra.mrb[0].mxu0 %v63
  %v171 = vpop.f32.mrb[0].mxu0
  %v172 = vadd.f32 0.0, %v171
  %v173 = vpop.f32.mrb[0].mxu0
  %v174 = vadd.f32 0.0, %v173
  %v175 = vpop.f32.mrb[0].mxu0
  %v176 = vpop.f32.mrb[0].mxu0
  %177 = vdwg.mxu0
  %v178 = vadd.f32 %v59, %v131
  %v179 = vadd.f32 %v60, %v133
  %v180 = vadd.f32 %v61, %v172
  %v181 = vadd.f32 %v62, %v174
  %v182 = vmul.f32 %v178, 0.5
  %v183 = vtanh.pop %v182
  %v184 = vmul.f32 %v183, 0.5
  %v185 = vadd.f32 %v184, 0.5
  %v186 = vmul.f32 %v179, 0.5
  %v187 = vtanh.pop %v186
  %v188 = vmul.f32 %v187, 0.5
  %v189 = vadd.f32 %v188, 0.5
  %v190 = vtanh.pop %v180
  %v191 = vmul.f32 %v181, 0.5
  %v192 = vtanh.pop %v191
  %v193 = vmul.f32 %v192, 0.5
  %v194 = vadd.f32 %v193, 0.5
  %v195 = vmul.f32 %v189, %v56
  %v196 = vmul.f32 %v185, %v190
  %v197 = vadd.f32 %v195, %v196
  %v198 = vtanh.pop %v197
  %v199 = vmul.f32 %v194, %v198
  %200 = vst [vmem:[#allocation3] sm:$0xff] %v199
  %201 = vst [vmem:[#allocation4] sm:$0xff] %v197
  %v202 = vpack.c.bf16 %v199, %v199
  %203 = vst [vmem:[%s2] sm:$0xf] %v202
  %v204 = vld [vmem:[#allocation3] sm:$0xff]
  %v205 = vld [vmem:[#allocation4] sm:$0xff]
  %s206 = scalar_lea.vmem %s0, 16
  %v207 = vld [vmem:[%s206] sm:$0xff]
  %v208 = vld [vmem:[%s206 + $0x8] sm:$0xff]
  %v209 = vunpack.c.l.bf16 %v207
  %v210 = vunpack.c.h.bf16 %v207
  %v211 = vunpack.c.l.bf16 %v208
  %v212 = vunpack.c.h.bf16 %v208
  %v213 = vpack.c.bf16 %v204, %v204
  %v214 = vld [vmem:[#allocation2] sm:$0xff]
  %v215 = vld [vmem:[#allocation2 + $0x8] sm:$0xff]
  %v216 = vld [vmem:[#allocation2 + $0x10] sm:$0xff]
  %v217 = vld [vmem:[#allocation2 + $0x18] sm:$0xff]
  %v218 = vld [vmem:[#allocation2 + $0x20] sm:$0xff]
  %v219 = vld [vmem:[#allocation2 + $0x28] sm:$0xff]
  %v220 = vld [vmem:[#allocation2 + $0x30] sm:$0xff]
  %v221 = vld [vmem:[#allocation2 + $0x38] sm:$0xff]
  %v222 = vld [vmem:[#allocation2 + $0x40] sm:$0xff]
  %v223 = vld [vmem:[#allocation2 + $0x48] sm:$0xff]
  %v224 = vld [vmem:[#allocation2 + $0x50] sm:$0xff]
  %v225 = vld [vmem:[#allocation2 + $0x58] sm:$0xff]
  %v226 = vld [vmem:[#allocation2 + $0x60] sm:$0xff]
  %v227 = vld [vmem:[#allocation2 + $0x68] sm:$0xff]
  %v228 = vld [vmem:[#allocation2 + $0x70] sm:$0xff]
  %v229 = vld [vmem:[#allocation2 + $0x78] sm:$0xff]
  %v230 = vld [vmem:[#allocation2 + $0x80] sm:$0xff]
  %v231 = vld [vmem:[#allocation2 + $0x88] sm:$0xff]
  %v232 = vld [vmem:[#allocation2 + $0x90] sm:$0xff]
  %v233 = vld [vmem:[#allocation2 + $0x98] sm:$0xff]
  %v234 = vld [vmem:[#allocation2 + $0xa0] sm:$0xff]
  %v235 = vld [vmem:[#allocation2 + $0xa8] sm:$0xff]
  %v236 = vld [vmem:[#allocation2 + $0xb0] sm:$0xff]
  %v237 = vld [vmem:[#allocation2 + $0xb8] sm:$0xff]
  %v238 = vld [vmem:[#allocation2 + $0xc0] sm:$0xff]
  %v239 = vld [vmem:[#allocation2 + $0xc8] sm:$0xff]
  %v240 = vld [vmem:[#allocation2 + $0xd0] sm:$0xff]
  %v241 = vld [vmem:[#allocation2 + $0xd8] sm:$0xff]
  %v242 = vld [vmem:[#allocation2 + $0xe0] sm:$0xff]
  %v243 = vld [vmem:[#allocation2 + $0xe8] sm:$0xff]
  %v244 = vld [vmem:[#allocation2 + $0xf0] sm:$0xff]
  %v245 = vld [vmem:[#allocation2 + $0xf8] sm:$0xff]
  %246 = vmatprep.subr.bf16.mxu0 %v215
  %247 = vmatpush1.bf16.msra.mxu0 %v214
  %248 = vmatprep.subr.bf16.mxu0 %v219
  %249 = vmatpush1.bf16.msra.mxu0 %v218
  %250 = vmatprep.subr.bf16.mxu0 %v223
  %251 = vmatpush1.bf16.msra.mxu0 %v222
  %252 = vmatprep.subr.bf16.mxu0 %v227
  %253 = vmatpush1.bf16.msra.mxu0 %v226
  %254 = vmatprep.subr.bf16.mxu0 %v231
  %255 = vmatpush1.bf16.msra.mxu0 %v230
  %256 = vmatprep.subr.bf16.mxu0 %v235
  %257 = vmatpush1.bf16.msra.mxu0 %v234
  %258 = vmatprep.subr.bf16.mxu0 %v239
  %259 = vmatpush1.bf16.msra.mxu0 %v238
  %260 = vmatprep.subr.bf16.mxu0 %v243
  %261 = vmatpush1.bf16.msra.mxu0 %v242
  %262 = vmatprep.subr.bf16.mxu0 0
  %263 = vmatpush1.bf16.msra.mxu0 0
  %264 = vmatprep.subr.bf16.mxu0 0
  %265 = vmatpush1.bf16.msra.mxu0 0
  %266 = vmatprep.subr.bf16.mxu0 0
  %267 = vmatpush1.bf16.msra.mxu0 0
  %268 = vmatprep.subr.bf16.mxu0 0
  %269 = vmatpush1.bf16.msra.mxu0 0
  %270 = vmatprep.subr.bf16.mxu0 0
  %271 = vmatpush1.bf16.msra.mxu0 0
  %272 = vmatprep.subr.bf16.mxu0 0
  %273 = vmatpush1.bf16.msra.mxu0 0
  %274 = vmatprep.subr.bf16.mxu0 0
  %275 = vmatpush1.bf16.msra.mxu0 0
  %276 = vmatprep.subr.bf16.mxu0 0
  %277 = vmatpush1.bf16.msra.mxu0 0
  %278 = vmatprep.mubr.bf16.mxu0 0
  %279 = vmatmul.mubr.bf16.gmra.mrb[0].mxu0 %v213
  %v280 = vpop.f32.mrb[0].mxu0
  %v281 = vadd.f32 0.0, %v280
  %v282 = vpop.f32.mrb[0].mxu0
  %v283 = vadd.f32 0.0, %v282
  %v284 = vpop.f32.mrb[0].mxu0
  %v285 = vpop.f32.mrb[0].mxu0
  %286 = vdwg.mxu0
  %287 = vmatprep.subr.bf16.mxu0 %v217
  %288 = vmatpush1.bf16.msra.mxu0 %v216
  %289 = vmatprep.subr.bf16.mxu0 %v221
  %290 = vmatpush1.bf16.msra.mxu0 %v220
  %291 = vmatprep.subr.bf16.mxu0 %v225
  %292 = vmatpush1.bf16.msra.mxu0 %v224
  %293 = vmatprep.subr.bf16.mxu0 %v229
  %294 = vmatpush1.bf16.msra.mxu0 %v228
  %295 = vmatprep.subr.bf16.mxu0 %v233
  %296 = vmatpush1.bf16.msra.mxu0 %v232
  %297 = vmatprep.subr.bf16.mxu0 %v237
  %298 = vmatpush1.bf16.msra.mxu0 %v236
  %299 = vmatprep.subr.bf16.mxu0 %v241
  %300 = vmatpush1.bf16.msra.mxu0 %v240
  %301 = vmatprep.subr.bf16.mxu0 %v245
  %302 = vmatpush1.bf16.msra.mxu0 %v244
  %303 = vmatprep.subr.bf16.mxu0 0
  %304 = vmatpush1.bf16.msra.mxu0 0
  %305 = vmatprep.subr.bf16.mxu0 0
  %306 = vmatpush1.bf16.msra.mxu0 0
  %307 = vmatprep.subr.bf16.mxu0 0
  %308 = vmatpush1.bf16.msra.mxu0 0
  %309 = vmatprep.subr.bf16.mxu0 0
  %310 = vmatpush1.bf16.msra.mxu0 0
  %311 = vmatprep.subr.bf16.mxu0 0
  %312 = vmatpush1.bf16.msra.mxu0 0
  %313 = vmatprep.subr.bf16.mxu0 0
  %314 = vmatpush1.bf16.msra.mxu0 0
  %315 = vmatprep.subr.bf16.mxu0 0
  %316 = vmatpush1.bf16.msra.mxu0 0
  %317 = vmatprep.subr.bf16.mxu0 0
  %318 = vmatpush1.bf16.msra.mxu0 0
  %319 = vmatprep.mubr.bf16.mxu0 0
  %320 = vmatmul.mubr.bf16.gmra.mrb[0].mxu0 %v213
  %v321 = vpop.f32.mrb[0].mxu0
  %v322 = vadd.f32 0.0, %v321
  %v323 = vpop.f32.mrb[0].mxu0
  %v324 = vadd.f32 0.0, %v323
  %v325 = vpop.f32.mrb[0].mxu0
  %v326 = vpop.f32.mrb[0].mxu0
  %327 = vdwg.mxu0
  %v328 = vadd.f32 %v209, %v281
  %v329 = vadd.f32 %v210, %v283
  %v330 = vadd.f32 %v211, %v322
  %v331 = vadd.f32 %v212, %v324
  %v332 = vmul.f32 %v328, 0.5
  %v333 = vtanh.pop %v332
  %v334 = vmul.f32 %v333, 0.5
  %v335 = vadd.f32 %v334, 0.5
  %v336 = vmul.f32 %v329, 0.5
  %v337 = vtanh.pop %v336
  %v338 = vmul.f32 %v337, 0.5
  %v339 = vadd.f32 %v338, 0.5
  %v340 = vtanh.pop %v330
  %v341 = vmul.f32 %v331, 0.5
  %v342 = vtanh.pop %v341
  %v343 = vmul.f32 %v342, 0.5
  %v344 = vadd.f32 %v343, 0.5
  %v345 = vmul.f32 %v339, %v205
  %v346 = vmul.f32 %v335, %v340
  %v347 = vadd.f32 %v345, %v346
  %v348 = vtanh.pop %v347
  %v349 = vmul.f32 %v344, %v348
  %350 = vst [vmem:[#allocation3] sm:$0xff] %v349
  %351 = vst [vmem:[#allocation4] sm:$0xff] %v347
  %v352 = vpack.c.bf16 %v349, %v349
  %s353 = scalar_lea.vmem %s2, 4
  %354 = vst [vmem:[%s353] sm:$0xf] %v352
  %v355 = vld [vmem:[#allocation3] sm:$0xff]
  %v356 = vld [vmem:[#allocation4] sm:$0xff]
  %s357 = scalar_lea.vmem %s0, 32
  %v358 = vld [vmem:[%s357] sm:$0xff]
  %v359 = vld [vmem:[%s357 + $0x8] sm:$0xff]
  %v360 = vunpack.c.l.bf16 %v358
  %v361 = vunpack.c.h.bf16 %v358
  %v362 = vunpack.c.l.bf16 %v359
  %v363 = vunpack.c.h.bf16 %v359
  %v364 = vpack.c.bf16 %v355, %v355
  %v365 = vld [vmem:[#allocation2] sm:$0xff]
  %v366 = vld [vmem:[#allocation2 + $0x8] sm:$0xff]
  %v367 = vld [vmem:[#allocation2 + $0x10] sm:$0xff]
  %v368 = vld [vmem:[#allocation2 + $0x18] sm:$0xff]
  %v369 = vld [vmem:[#allocation2 + $0x20] sm:$0xff]
  %v370 = vld [vmem:[#allocation2 + $0x28] sm:$0xff]
  %v371 = vld [vmem:[#allocation2 + $0x30] sm:$0xff]
  %v372 = vld [vmem:[#allocation2 + $0x38] sm:$0xff]
  %v373 = vld [vmem:[#allocation2 + $0x40] sm:$0xff]
  %v374 = vld [vmem:[#allocation2 + $0x48] sm:$0xff]
  %v375 = vld [vmem:[#allocation2 + $0x50] sm:$0xff]
  %v376 = vld [vmem:[#allocation2 + $0x58] sm:$0xff]
  %v377 = vld [vmem:[#allocation2 + $0x60] sm:$0xff]
  %v378 = vld [vmem:[#allocation2 + $0x68] sm:$0xff]
  %v379 = vld [vmem:[#allocation2 + $0x70] sm:$0xff]
  %v380 = vld [vmem:[#allocation2 + $0x78] sm:$0xff]
  %v381 = vld [vmem:[#allocation2 + $0x80] sm:$0xff]
  %v382 = vld [vmem:[#allocation2 + $0x88] sm:$0xff]
  %v383 = vld [vmem:[#allocation2 + $0x90] sm:$0xff]
  %v384 = vld [vmem:[#allocation2 + $0x98] sm:$0xff]
  %v385 = vld [vmem:[#allocation2 + $0xa0] sm:$0xff]
  %v386 = vld [vmem:[#allocation2 + $0xa8] sm:$0xff]
  %v387 = vld [vmem:[#allocation2 + $0xb0] sm:$0xff]
  %v388 = vld [vmem:[#allocation2 + $0xb8] sm:$0xff]
  %v389 = vld [vmem:[#allocation2 + $0xc0] sm:$0xff]
  %v390 = vld [vmem:[#allocation2 + $0xc8] sm:$0xff]
  %v391 = vld [vmem:[#allocation2 + $0xd0] sm:$0xff]
  %v392 = vld [vmem:[#allocation2 + $0xd8] sm:$0xff]
  %v393 = vld [vmem:[#allocation2 + $0xe0] sm:$0xff]
  %v394 = vld [vmem:[#allocation2 + $0xe8] sm:$0xff]
  %v395 = vld [vmem:[#allocation2 + $0xf0] sm:$0xff]
  %v396 = vld [vmem:[#allocation2 + $0xf8] sm:$0xff]
  %397 = vmatprep.subr.bf16.mxu0 %v366
  %398 = vmatpush1.bf16.msra.mxu0 %v365
  %399 = vmatprep.subr.bf16.mxu0 %v370
  %400 = vmatpush1.bf16.msra.mxu0 %v369
  %401 = vmatprep.subr.bf16.mxu0 %v374
  %402 = vmatpush1.bf16.msra.mxu0 %v373
  %403 = vmatprep.subr.bf16.mxu0 %v378
  %404 = vmatpush1.bf16.msra.mxu0 %v377
  %405 = vmatprep.subr.bf16.mxu0 %v382
  %406 = vmatpush1.bf16.msra.mxu0 %v381
  %407 = vmatprep.subr.bf16.mxu0 %v386
  %408 = vmatpush1.bf16.msra.mxu0 %v385
  %409 = vmatprep.subr.bf16.mxu0 %v390
  %410 = vmatpush1.bf16.msra.mxu0 %v389
  %411 = vmatprep.subr.bf16.mxu0 %v394
  %412 = vmatpush1.bf16.msra.mxu0 %v393
  %413 = vmatprep.subr.bf16.mxu0 0
  %414 = vmatpush1.bf16.msra.mxu0 0
  %415 = vmatprep.subr.bf16.mxu0 0
  %416 = vmatpush1.bf16.msra.mxu0 0
  %417 = vmatprep.subr.bf16.mxu0 0
  %418 = vmatpush1.bf16.msra.mxu0 0
  %419 = vmatprep.subr.bf16.mxu0 0
  %420 = vmatpush1.bf16.msra.mxu0 0
  %421 = vmatprep.subr.bf16.mxu0 0
  %422 = vmatpush1.bf16.msra.mxu0 0
  %423 = vmatprep.subr.bf16.mxu0 0
  %424 = vmatpush1.bf16.msra.mxu0 0
  %425 = vmatprep.subr.bf16.mxu0 0
  %426 = vmatpush1.bf16.msra.mxu0 0
  %427 = vmatprep.subr.bf16.mxu0 0
  %428 = vmatpush1.bf16.msra.mxu0 0
  %429 = vmatprep.mubr.bf16.mxu0 0
  %430 = vmatmul.mubr.bf16.gmra.mrb[0].mxu0 %v364
  %v431 = vpop.f32.mrb[0].mxu0
  %v432 = vadd.f32 0.0, %v431
  %v433 = vpop.f32.mrb[0].mxu0
  %v434 = vadd.f32 0.0, %v433
  %v435 = vpop.f32.mrb[0].mxu0
  %v436 = vpop.f32.mrb[0].mxu0
  %437 = vdwg.mxu0
  %438 = vmatprep.subr.bf16.mxu0 %v368
  %439 = vmatpush1.bf16.msra.mxu0 %v367
  %440 = vmatprep.subr.bf16.mxu0 %v372
  %441 = vmatpush1.bf16.msra.mxu0 %v371
  %442 = vmatprep.subr.bf16.mxu0 %v376
  %443 = vmatpush1.bf16.msra.mxu0 %v375
  %444 = vmatprep.subr.bf16.mxu0 %v380
  %445 = vmatpush1.bf16.msra.mxu0 %v379
  %446 = vmatprep.subr.bf16.mxu0 %v384
  %447 = vmatpush1.bf16.msra.mxu0 %v383
  %448 = vmatprep.subr.bf16.mxu0 %v388
  %449 = vmatpush1.bf16.msra.mxu0 %v387
  %450 = vmatprep.subr.bf16.mxu0 %v392
  %451 = vmatpush1.bf16.msra.mxu0 %v391
  %452 = vmatprep.subr.bf16.mxu0 %v396
  %453 = vmatpush1.bf16.msra.mxu0 %v395
  %454 = vmatprep.subr.bf16.mxu0 0
  %455 = vmatpush1.bf16.msra.mxu0 0
  %456 = vmatprep.subr.bf16.mxu0 0
  %457 = vmatpush1.bf16.msra.mxu0 0
  %458 = vmatprep.subr.bf16.mxu0 0
  %459 = vmatpush1.bf16.msra.mxu0 0
  %460 = vmatprep.subr.bf16.mxu0 0
  %461 = vmatpush1.bf16.msra.mxu0 0
  %462 = vmatprep.subr.bf16.mxu0 0
  %463 = vmatpush1.bf16.msra.mxu0 0
  %464 = vmatprep.subr.bf16.mxu0 0
  %465 = vmatpush1.bf16.msra.mxu0 0
  %466 = vmatprep.subr.bf16.mxu0 0
  %467 = vmatpush1.bf16.msra.mxu0 0
  %468 = vmatprep.subr.bf16.mxu0 0
  %469 = vmatpush1.bf16.msra.mxu0 0
  %470 = vmatprep.mubr.bf16.mxu0 0
  %471 = vmatmul.mubr.bf16.gmra.mrb[0].mxu0 %v364
  %v472 = vpop.f32.mrb[0].mxu0
  %v473 = vadd.f32 0.0, %v472
  %v474 = vpop.f32.mrb[0].mxu0
  %v475 = vadd.f32 0.0, %v474
  %v476 = vpop.f32.mrb[0].mxu0
  %v477 = vpop.f32.mrb[0].mxu0
  %478 = vdwg.mxu0
  %v479 = vadd.f32 %v360, %v432
  %v480 = vadd.f32 %v361, %v434
  %v481 = vadd.f32 %v362, %v473
  %v482 = vadd.f32 %v363, %v475
  %v483 = vmul.f32 %v479, 0.5
  %v484 = vtanh.pop %v483
  %v485 = vmul.f32 %v484, 0.5
  %v486 = vadd.f32 %v485, 0.5
  %v487 = vmul.f32 %v480, 0.5
  %v488 = vtanh.pop %v487
  %v489 = vmul.f32 %v488, 0.5
  %v490 = vadd.f32 %v489, 0.5
  %v491 = vtanh.pop %v481
  %v492 = vmul.f32 %v482, 0.5
  %v493 = vtanh.pop %v492
  %v494 = vmul.f32 %v493, 0.5
  %v495 = vadd.f32 %v494, 0.5
  %v496 = vmul.f32 %v490, %v356
  %v497 = vmul.f32 %v486, %v491
  %v498 = vadd.f32 %v496, %v497
  %v499 = vtanh.pop %v498
  %v500 = vmul.f32 %v495, %v499
  %501 = vst [vmem:[#allocation3] sm:$0xff] %v500
  %502 = vst [vmem:[#allocation4] sm:$0xff] %v498
  %v503 = vpack.c.bf16 %v500, %v500
  %s504 = scalar_lea.vmem %s2, 8
  %505 = vst [vmem:[%s504] sm:$0xf] %v503
  %v506 = vld [vmem:[#allocation3] sm:$0xff]
  %v507 = vld [vmem:[#allocation4] sm:$0xff]
  %s508 = scalar_lea.vmem %s0, 48
  %v509 = vld [vmem:[%s508] sm:$0xff]
  %v510 = vld [vmem:[%s508 + $0x8] sm:$0xff]
  %v511 = vunpack.c.l.bf16 %v509
  %v512 = vunpack.c.h.bf16 %v509
  %v513 = vunpack.c.l.bf16 %v510
  %v514 = vunpack.c.h.bf16 %v510
  %v515 = vpack.c.bf16 %v506, %v506
  %v516 = vld [vmem:[#allocation2] sm:$0xff]
  %v517 = vld [vmem:[#allocation2 + $0x8] sm:$0xff]
  %v518 = vld [vmem:[#allocation2 + $0x10] sm:$0xff]
  %v519 = vld [vmem:[#allocation2 + $0x18] sm:$0xff]
  %v520 = vld [vmem:[#allocation2 + $0x20] sm:$0xff]
  %v521 = vld [vmem:[#allocation2 + $0x28] sm:$0xff]
  %v522 = vld [vmem:[#allocation2 + $0x30] sm:$0xff]
  %v523 = vld [vmem:[#allocation2 + $0x38] sm:$0xff]
  %v524 = vld [vmem:[#allocation2 + $0x40] sm:$0xff]
  %v525 = vld [vmem:[#allocation2 + $0x48] sm:$0xff]
  %v526 = vld [vmem:[#allocation2 + $0x50] sm:$0xff]
  %v527 = vld [vmem:[#allocation2 + $0x58] sm:$0xff]
  %v528 = vld [vmem:[#allocation2 + $0x60] sm:$0xff]
  %v529 = vld [vmem:[#allocation2 + $0x68] sm:$0xff]
  %v530 = vld [vmem:[#allocation2 + $0x70] sm:$0xff]
  %v531 = vld [vmem:[#allocation2 + $0x78] sm:$0xff]
  %v532 = vld [vmem:[#allocation2 + $0x80] sm:$0xff]
  %v533 = vld [vmem:[#allocation2 + $0x88] sm:$0xff]
  %v534 = vld [vmem:[#allocation2 + $0x90] sm:$0xff]
  %v535 = vld [vmem:[#allocation2 + $0x98] sm:$0xff]
  %v536 = vld [vmem:[#allocation2 + $0xa0] sm:$0xff]
  %v537 = vld [vmem:[#allocation2 + $0xa8] sm:$0xff]
  %v538 = vld [vmem:[#allocation2 + $0xb0] sm:$0xff]
  %v539 = vld [vmem:[#allocation2 + $0xb8] sm:$0xff]
  %v540 = vld [vmem:[#allocation2 + $0xc0] sm:$0xff]
  %v541 = vld [vmem:[#allocation2 + $0xc8] sm:$0xff]
  %v542 = vld [vmem:[#allocation2 + $0xd0] sm:$0xff]
  %v543 = vld [vmem:[#allocation2 + $0xd8] sm:$0xff]
  %v544 = vld [vmem:[#allocation2 + $0xe0] sm:$0xff]
  %v545 = vld [vmem:[#allocation2 + $0xe8] sm:$0xff]
  %v546 = vld [vmem:[#allocation2 + $0xf0] sm:$0xff]
  %v547 = vld [vmem:[#allocation2 + $0xf8] sm:$0xff]
  %548 = vmatprep.subr.bf16.mxu0 %v517
  %549 = vmatpush1.bf16.msra.mxu0 %v516
  %550 = vmatprep.subr.bf16.mxu0 %v521
  %551 = vmatpush1.bf16.msra.mxu0 %v520
  %552 = vmatprep.subr.bf16.mxu0 %v525
  %553 = vmatpush1.bf16.msra.mxu0 %v524
  %554 = vmatprep.subr.bf16.mxu0 %v529
  %555 = vmatpush1.bf16.msra.mxu0 %v528
  %556 = vmatprep.subr.bf16.mxu0 %v533
  %557 = vmatpush1.bf16.msra.mxu0 %v532
  %558 = vmatprep.subr.bf16.mxu0 %v537
  %559 = vmatpush1.bf16.msra.mxu0 %v536
  %560 = vmatprep.subr.bf16.mxu0 %v541
  %561 = vmatpush1.bf16.msra.mxu0 %v540
  %562 = vmatprep.subr.bf16.mxu0 %v545
  %563 = vmatpush1.bf16.msra.mxu0 %v544
  %564 = vmatprep.subr.bf16.mxu0 0
  %565 = vmatpush1.bf16.msra.mxu0 0
  %566 = vmatprep.subr.bf16.mxu0 0
  %567 = vmatpush1.bf16.msra.mxu0 0
  %568 = vmatprep.subr.bf16.mxu0 0
  %569 = vmatpush1.bf16.msra.mxu0 0
  %570 = vmatprep.subr.bf16.mxu0 0
  %571 = vmatpush1.bf16.msra.mxu0 0
  %572 = vmatprep.subr.bf16.mxu0 0
  %573 = vmatpush1.bf16.msra.mxu0 0
  %574 = vmatprep.subr.bf16.mxu0 0
  %575 = vmatpush1.bf16.msra.mxu0 0
  %576 = vmatprep.subr.bf16.mxu0 0
  %577 = vmatpush1.bf16.msra.mxu0 0
  %578 = vmatprep.subr.bf16.mxu0 0
  %579 = vmatpush1.bf16.msra.mxu0 0
  %580 = vmatprep.mubr.bf16.mxu0 0
  %581 = vmatmul.mubr.bf16.gmra.mrb[0].mxu0 %v515
  %v582 = vpop.f32.mrb[0].mxu0
  %v583 = vadd.f32 0.0, %v582
  %v584 = vpop.f32.mrb[0].mxu0
  %v585 = vadd.f32 0.0, %v584
  %v586 = vpop.f32.mrb[0].mxu0
  %v587 = vpop.f32.mrb[0].mxu0
  %588 = vdwg.mxu0
  %589 = vmatprep.subr.bf16.mxu0 %v519
  %590 = vmatpush1.bf16.msra.mxu0 %v518
  %591 = vmatprep.subr.bf16.mxu0 %v523
  %592 = vmatpush1.bf16.msra.mxu0 %v522
  %593 = vmatprep.subr.bf16.mxu0 %v527
  %594 = vmatpush1.bf16.msra.mxu0 %v526
  %595 = vmatprep.subr.bf16.mxu0 %v531
  %596 = vmatpush1.bf16.msra.mxu0 %v530
  %597 = vmatprep.subr.bf16.mxu0 %v535
  %598 = vmatpush1.bf16.msra.mxu0 %v534
  %599 = vmatprep.subr.bf16.mxu0 %v539
  %600 = vmatpush1.bf16.msra.mxu0 %v538
  %601 = vmatprep.subr.bf16.mxu0 %v543
  %602 = vmatpush1.bf16.msra.mxu0 %v542
  %603 = vmatprep.subr.bf16.mxu0 %v547
  %604 = vmatpush1.bf16.msra.mxu0 %v546
  %605 = vmatprep.subr.bf16.mxu0 0
  %606 = vmatpush1.bf16.msra.mxu0 0
  %607 = vmatprep.subr.bf16.mxu0 0
  %608 = vmatpush1.bf16.msra.mxu0 0
  %609 = vmatprep.subr.bf16.mxu0 0
  %610 = vmatpush1.bf16.msra.mxu0 0
  %611 = vmatprep.subr.bf16.mxu0 0
  %612 = vmatpush1.bf16.msra.mxu0 0
  %613 = vmatprep.subr.bf16.mxu0 0
  %614 = vmatpush1.bf16.msra.mxu0 0
  %615 = vmatprep.subr.bf16.mxu0 0
  %616 = vmatpush1.bf16.msra.mxu0 0
  %617 = vmatprep.subr.bf16.mxu0 0
  %618 = vmatpush1.bf16.msra.mxu0 0
  %619 = vmatprep.subr.bf16.mxu0 0
  %620 = vmatpush1.bf16.msra.mxu0 0
  %621 = vmatprep.mubr.bf16.mxu0 0
  %622 = vmatmul.mubr.bf16.gmra.mrb[0].mxu0 %v515
  %v623 = vpop.f32.mrb[0].mxu0
  %v624 = vadd.f32 0.0, %v623
  %v625 = vpop.f32.mrb[0].mxu0
  %v626 = vadd.f32 0.0, %v625
  %v627 = vpop.f32.mrb[0].mxu0
  %v628 = vpop.f32.mrb[0].mxu0
  %629 = vdwg.mxu0
  %v630 = vadd.f32 %v511, %v583
  %v631 = vadd.f32 %v512, %v585
  %v632 = vadd.f32 %v513, %v624
  %v633 = vadd.f32 %v514, %v626
  %v634 = vmul.f32 %v630, 0.5
  %v635 = vtanh.pop %v634
  %v636 = vmul.f32 %v635, 0.5
  %v637 = vadd.f32 %v636, 0.5
  %v638 = vmul.f32 %v631, 0.5
  %v639 = vtanh.pop %v638
  %v640 = vmul.f32 %v639, 0.5
  %v641 = vadd.f32 %v640, 0.5
  %v642 = vtanh.pop %v632
  %v643 = vmul.f32 %v633, 0.5
  %v644 = vtanh.pop %v643
  %v645 = vmul.f32 %v644, 0.5
  %v646 = vadd.f32 %v645, 0.5
  %v647 = vmul.f32 %v641, %v507
  %v648 = vmul.f32 %v637, %v642
  %v649 = vadd.f32 %v647, %v648
  %v650 = vtanh.pop %v649
  %v651 = vmul.f32 %v646, %v650
  %652 = vst [vmem:[#allocation3] sm:$0xff] %v651
  %653 = vst [vmem:[#allocation4] sm:$0xff] %v649
  %v654 = vpack.c.bf16 %v651, %v651
  %s655 = scalar_lea.vmem %s2, 12
  %656 = vst [vmem:[%s655] sm:$0xf] %v654
  %v657 = vld [vmem:[#allocation3] sm:$0xff]
  %v658 = vld [vmem:[#allocation4] sm:$0xff]
  %s659 = scalar_lea.vmem %s0, 64
  %v660 = vld [vmem:[%s659] sm:$0xff]
  %v661 = vld [vmem:[%s659 + $0x8] sm:$0xff]
  %v662 = vunpack.c.l.bf16 %v660
  %v663 = vunpack.c.h.bf16 %v660
  %v664 = vunpack.c.l.bf16 %v661
  %v665 = vunpack.c.h.bf16 %v661
  %v666 = vpack.c.bf16 %v657, %v657
  %v667 = vld [vmem:[#allocation2] sm:$0xff]
  %v668 = vld [vmem:[#allocation2 + $0x8] sm:$0xff]
  %v669 = vld [vmem:[#allocation2 + $0x10] sm:$0xff]
  %v670 = vld [vmem:[#allocation2 + $0x18] sm:$0xff]
  %v671 = vld [vmem:[#allocation2 + $0x20] sm:$0xff]
  %v672 = vld [vmem:[#allocation2 + $0x28] sm:$0xff]
  %v673 = vld [vmem:[#allocation2 + $0x30] sm:$0xff]
  %v674 = vld [vmem:[#allocation2 + $0x38] sm:$0xff]
  %v675 = vld [vmem:[#allocation2 + $0x40] sm:$0xff]
  %v676 = vld [vmem:[#allocation2 + $0x48] sm:$0xff]
  %v677 = vld [vmem:[#allocation2 + $0x50] sm:$0xff]
  %v678 = vld [vmem:[#allocation2 + $0x58] sm:$0xff]
  %v679 = vld [vmem:[#allocation2 + $0x60] sm:$0xff]
  %v680 = vld [vmem:[#allocation2 + $0x68] sm:$0xff]
  %v681 = vld [vmem:[#allocation2 + $0x70] sm:$0xff]
  %v682 = vld [vmem:[#allocation2 + $0x78] sm:$0xff]
  %v683 = vld [vmem:[#allocation2 + $0x80] sm:$0xff]
  %v684 = vld [vmem:[#allocation2 + $0x88] sm:$0xff]
  %v685 = vld [vmem:[#allocation2 + $0x90] sm:$0xff]
  %v686 = vld [vmem:[#allocation2 + $0x98] sm:$0xff]
  %v687 = vld [vmem:[#allocation2 + $0xa0] sm:$0xff]
  %v688 = vld [vmem:[#allocation2 + $0xa8] sm:$0xff]
  %v689 = vld [vmem:[#allocation2 + $0xb0] sm:$0xff]
  %v690 = vld [vmem:[#allocation2 + $0xb8] sm:$0xff]
  %v691 = vld [vmem:[#allocation2 + $0xc0] sm:$0xff]
  %v692 = vld [vmem:[#allocation2 + $0xc8] sm:$0xff]
  %v693 = vld [vmem:[#allocation2 + $0xd0] sm:$0xff]
  %v694 = vld [vmem:[#allocation2 + $0xd8] sm:$0xff]
  %v695 = vld [vmem:[#allocation2 + $0xe0] sm:$0xff]
  %v696 = vld [vmem:[#allocation2 + $0xe8] sm:$0xff]
  %v697 = vld [vmem:[#allocation2 + $0xf0] sm:$0xff]
  %v698 = vld [vmem:[#allocation2 + $0xf8] sm:$0xff]
  %699 = vmatprep.subr.bf16.mxu0 %v668
  %700 = vmatpush1.bf16.msra.mxu0 %v667
  %701 = vmatprep.subr.bf16.mxu0 %v672
  %702 = vmatpush1.bf16.msra.mxu0 %v671
  %703 = vmatprep.subr.bf16.mxu0 %v676
  %704 = vmatpush1.bf16.msra.mxu0 %v675
  %705 = vmatprep.subr.bf16.mxu0 %v680
  %706 = vmatpush1.bf16.msra.mxu0 %v679
  %707 = vmatprep.subr.bf16.mxu0 %v684
  %708 = vmatpush1.bf16.msra.mxu0 %v683
  %709 = vmatprep.subr.bf16.mxu0 %v688
  %710 = vmatpush1.bf16.msra.mxu0 %v687
  %711 = vmatprep.subr.bf16.mxu0 %v692
  %712 = vmatpush1.bf16.msra.mxu0 %v691
  %713 = vmatprep.subr.bf16.mxu0 %v696
  %714 = vmatpush1.bf16.msra.mxu0 %v695
  %715 = vmatprep.subr.bf16.mxu0 0
  %716 = vmatpush1.bf16.msra.mxu0 0
  %717 = vmatprep.subr.bf16.mxu0 0
  %718 = vmatpush1.bf16.msra.mxu0 0
  %719 = vmatprep.subr.bf16.mxu0 0
  %720 = vmatpush1.bf16.msra.mxu0 0
  %721 = vmatprep.subr.bf16.mxu0 0
  %722 = vmatpush1.bf16.msra.mxu0 0
  %723 = vmatprep.subr.bf16.mxu0 0
  %724 = vmatpush1.bf16.msra.mxu0 0
  %725 = vmatprep.subr.bf16.mxu0 0
  %726 = vmatpush1.bf16.msra.mxu0 0
  %727 = vmatprep.subr.bf16.mxu0 0
  %728 = vmatpush1.bf16.msra.mxu0 0
  %729 = vmatprep.subr.bf16.mxu0 0
  %730 = vmatpush1.bf16.msra.mxu0 0
  %731 = vmatprep.mubr.bf16.mxu0 0
  %732 = vmatmul.mubr.bf16.gmra.mrb[0].mxu0 %v666
  %v733 = vpop.f32.mrb[0].mxu0
  %v734 = vadd.f32 0.0, %v733
  %v735 = vpop.f32.mrb[0].mxu0
  %v736 = vadd.f32 0.0, %v735
  %v737 = vpop.f32.mrb[0].mxu0
  %v738 = vpop.f32.mrb[0].mxu0
  %739 = vdwg.mxu0
  %740 = vmatprep.subr.bf16.mxu0 %v670
  %741 = vmatpush1.bf16.msra.mxu0 %v669
  %742 = vmatprep.subr.bf16.mxu0 %v674
  %743 = vmatpush1.bf16.msra.mxu0 %v673
  %744 = vmatprep.subr.bf16.mxu0 %v678
  %745 = vmatpush1.bf16.msra.mxu0 %v677
  %746 = vmatprep.subr.bf16.mxu0 %v682
  %747 = vmatpush1.bf16.msra.mxu0 %v681
  %748 = vmatprep.subr.bf16.mxu0 %v686
  %749 = vmatpush1.bf16.msra.mxu0 %v685
  %750 = vmatprep.subr.bf16.mxu0 %v690
  %751 = vmatpush1.bf16.msra.mxu0 %v689
  %752 = vmatprep.subr.bf16.mxu0 %v694
  %753 = vmatpush1.bf16.msra.mxu0 %v693
  %754 = vmatprep.subr.bf16.mxu0 %v698
  %755 = vmatpush1.bf16.msra.mxu0 %v697
  %756 = vmatprep.subr.bf16.mxu0 0
  %757 = vmatpush1.bf16.msra.mxu0 0
  %758 = vmatprep.subr.bf16.mxu0 0
  %759 = vmatpush1.bf16.msra.mxu0 0
  %760 = vmatprep.subr.bf16.mxu0 0
  %761 = vmatpush1.bf16.msra.mxu0 0
  %762 = vmatprep.subr.bf16.mxu0 0
  %763 = vmatpush1.bf16.msra.mxu0 0
  %764 = vmatprep.subr.bf16.mxu0 0
  %765 = vmatpush1.bf16.msra.mxu0 0
  %766 = vmatprep.subr.bf16.mxu0 0
  %767 = vmatpush1.bf16.msra.mxu0 0
  %768 = vmatprep.subr.bf16.mxu0 0
  %769 = vmatpush1.bf16.msra.mxu0 0
  %770 = vmatprep.subr.bf16.mxu0 0
  %771 = vmatpush1.bf16.msra.mxu0 0
  %772 = vmatprep.mubr.bf16.mxu0 0
  %773 = vmatmul.mubr.bf16.gmra.mrb[0].mxu0 %v666
  %v774 = vpop.f32.mrb[0].mxu0
  %v775 = vadd.f32 0.0, %v774
  %v776 = vpop.f32.mrb[0].mxu0
  %v777 = vadd.f32 0.0, %v776
  %v778 = vpop.f32.mrb[0].mxu0
  %v779 = vpop.f32.mrb[0].mxu0
  %780 = vdwg.mxu0
  %v781 = vadd.f32 %v662, %v734
  %v782 = vadd.f32 %v663, %v736
  %v783 = vadd.f32 %v664, %v775
  %v784 = vadd.f32 %v665, %v777
  %v785 = vmul.f32 %v781, 0.5
  %v786 = vtanh.pop %v785
  %v787 = vmul.f32 %v786, 0.5
  %v788 = vadd.f32 %v787, 0.5
  %v789 = vmul.f32 %v782, 0.5
  %v790 = vtanh.pop %v789
  %v791 = vmul.f32 %v790, 0.5
  %v792 = vadd.f32 %v791, 0.5
  %v793 = vtanh.pop %v783
  %v794 = vmul.f32 %v784, 0.5
  %v795 = vtanh.pop %v794
  %v796 = vmul.f32 %v795, 0.5
  %v797 = vadd.f32 %v796, 0.5
  %v798 = vmul.f32 %v792, %v658
  %v799 = vmul.f32 %v788, %v793
  %v800 = vadd.f32 %v798, %v799
  %v801 = vtanh.pop %v800
  %v802 = vmul.f32 %v797, %v801
  %803 = vst [vmem:[#allocation3] sm:$0xff] %v802
  %804 = vst [vmem:[#allocation4] sm:$0xff] %v800
  %v805 = vpack.c.bf16 %v802, %v802
  %s806 = scalar_lea.vmem %s2, 16
  %807 = vst [vmem:[%s806] sm:$0xf] %v805
  %v808 = vld [vmem:[#allocation3] sm:$0xff]
  %v809 = vld [vmem:[#allocation4] sm:$0xff]
  %s810 = scalar_lea.vmem %s0, 80
  %v811 = vld [vmem:[%s810] sm:$0xff]
  %v812 = vld [vmem:[%s810 + $0x8] sm:$0xff]
  %v813 = vunpack.c.l.bf16 %v811
  %v814 = vunpack.c.h.bf16 %v811
  %v815 = vunpack.c.l.bf16 %v812
  %v816 = vunpack.c.h.bf16 %v812
  %v817 = vpack.c.bf16 %v808, %v808
  %v818 = vld [vmem:[#allocation2] sm:$0xff]
  %v819 = vld [vmem:[#allocation2 + $0x8] sm:$0xff]
  %v820 = vld [vmem:[#allocation2 + $0x10] sm:$0xff]
  %v821 = vld [vmem:[#allocation2 + $0x18] sm:$0xff]
  %v822 = vld [vmem:[#allocation2 + $0x20] sm:$0xff]
  %v823 = vld [vmem:[#allocation2 + $0x28] sm:$0xff]
  %v824 = vld [vmem:[#allocation2 + $0x30] sm:$0xff]
  %v825 = vld [vmem:[#allocation2 + $0x38] sm:$0xff]
  %v826 = vld [vmem:[#allocation2 + $0x40] sm:$0xff]
  %v827 = vld [vmem:[#allocation2 + $0x48] sm:$0xff]
  %v828 = vld [vmem:[#allocation2 + $0x50] sm:$0xff]
  %v829 = vld [vmem:[#allocation2 + $0x58] sm:$0xff]
  %v830 = vld [vmem:[#allocation2 + $0x60] sm:$0xff]
  %v831 = vld [vmem:[#allocation2 + $0x68] sm:$0xff]
  %v832 = vld [vmem:[#allocation2 + $0x70] sm:$0xff]
  %v833 = vld [vmem:[#allocation2 + $0x78] sm:$0xff]
  %v834 = vld [vmem:[#allocation2 + $0x80] sm:$0xff]
  %v835 = vld [vmem:[#allocation2 + $0x88] sm:$0xff]
  %v836 = vld [vmem:[#allocation2 + $0x90] sm:$0xff]
  %v837 = vld [vmem:[#allocation2 + $0x98] sm:$0xff]
  %v838 = vld [vmem:[#allocation2 + $0xa0] sm:$0xff]
  %v839 = vld [vmem:[#allocation2 + $0xa8] sm:$0xff]
  %v840 = vld [vmem:[#allocation2 + $0xb0] sm:$0xff]
  %v841 = vld [vmem:[#allocation2 + $0xb8] sm:$0xff]
  %v842 = vld [vmem:[#allocation2 + $0xc0] sm:$0xff]
  %v843 = vld [vmem:[#allocation2 + $0xc8] sm:$0xff]
  %v844 = vld [vmem:[#allocation2 + $0xd0] sm:$0xff]
  %v845 = vld [vmem:[#allocation2 + $0xd8] sm:$0xff]
  %v846 = vld [vmem:[#allocation2 + $0xe0] sm:$0xff]
  %v847 = vld [vmem:[#allocation2 + $0xe8] sm:$0xff]
  %v848 = vld [vmem:[#allocation2 + $0xf0] sm:$0xff]
  %v849 = vld [vmem:[#allocation2 + $0xf8] sm:$0xff]
  %850 = vmatprep.subr.bf16.mxu0 %v819
  %851 = vmatpush1.bf16.msra.mxu0 %v818
  %852 = vmatprep.subr.bf16.mxu0 %v823
  %853 = vmatpush1.bf16.msra.mxu0 %v822
  %854 = vmatprep.subr.bf16.mxu0 %v827
  %855 = vmatpush1.bf16.msra.mxu0 %v826
  %856 = vmatprep.subr.bf16.mxu0 %v831
  %857 = vmatpush1.bf16.msra.mxu0 %v830
  %858 = vmatprep.subr.bf16.mxu0 %v835
  %859 = vmatpush1.bf16.msra.mxu0 %v834
  %860 = vmatprep.subr.bf16.mxu0 %v839
  %861 = vmatpush1.bf16.msra.mxu0 %v838
  %862 = vmatprep.subr.bf16.mxu0 %v843
  %863 = vmatpush1.bf16.msra.mxu0 %v842
  %864 = vmatprep.subr.bf16.mxu0 %v847
  %865 = vmatpush1.bf16.msra.mxu0 %v846
  %866 = vmatprep.subr.bf16.mxu0 0
  %867 = vmatpush1.bf16.msra.mxu0 0
  %868 = vmatprep.subr.bf16.mxu0 0
  %869 = vmatpush1.bf16.msra.mxu0 0
  %870 = vmatprep.subr.bf16.mxu0 0
  %871 = vmatpush1.bf16.msra.mxu0 0
  %872 = vmatprep.subr.bf16.mxu0 0
  %873 = vmatpush1.bf16.msra.mxu0 0
  %874 = vmatprep.subr.bf16.mxu0 0
  %875 = vmatpush1.bf16.msra.mxu0 0
  %876 = vmatprep.subr.bf16.mxu0 0
  %877 = vmatpush1.bf16.msra.mxu0 0
  %878 = vmatprep.subr.bf16.mxu0 0
  %879 = vmatpush1.bf16.msra.mxu0 0
  %880 = vmatprep.subr.bf16.mxu0 0
  %881 = vmatpush1.bf16.msra.mxu0 0
  %882 = vmatprep.mubr.bf16.mxu0 0
  %883 = vmatmul.mubr.bf16.gmra.mrb[0].mxu0 %v817
  %v884 = vpop.f32.mrb[0].mxu0
  %v885 = vadd.f32 0.0, %v884
  %v886 = vpop.f32.mrb[0].mxu0
  %v887 = vadd.f32 0.0, %v886
  %v888 = vpop.f32.mrb[0].mxu0
  %v889 = vpop.f32.mrb[0].mxu0
  %890 = vdwg.mxu0
  %891 = vmatprep.subr.bf16.mxu0 %v821
  %892 = vmatpush1.bf16.msra.mxu0 %v820
  %893 = vmatprep.subr.bf16.mxu0 %v825
  %894 = vmatpush1.bf16.msra.mxu0 %v824
  %895 = vmatprep.subr.bf16.mxu0 %v829
  %896 = vmatpush1.bf16.msra.mxu0 %v828
  %897 = vmatprep.subr.bf16.mxu0 %v833
  %898 = vmatpush1.bf16.msra.mxu0 %v832
  %899 = vmatprep.subr.bf16.mxu0 %v837
  %900 = vmatpush1.bf16.msra.mxu0 %v836
  %901 = vmatprep.subr.bf16.mxu0 %v841
  %902 = vmatpush1.bf16.msra.mxu0 %v840
  %903 = vmatprep.subr.bf16.mxu0 %v845
  %904 = vmatpush1.bf16.msra.mxu0 %v844
  %905 = vmatprep.subr.bf16.mxu0 %v849
  %906 = vmatpush1.bf16.msra.mxu0 %v848
  %907 = vmatprep.subr.bf16.mxu0 0
  %908 = vmatpush1.bf16.msra.mxu0 0
  %909 = vmatprep.subr.bf16.mxu0 0
  %910 = vmatpush1.bf16.msra.mxu0 0
  %911 = vmatprep.subr.bf16.mxu0 0
  %912 = vmatpush1.bf16.msra.mxu0 0
  %913 = vmatprep.subr.bf16.mxu0 0
  %914 = vmatpush1.bf16.msra.mxu0 0
  %915 = vmatprep.subr.bf16.mxu0 0
  %916 = vmatpush1.bf16.msra.mxu0 0
  %917 = vmatprep.subr.bf16.mxu0 0
  %918 = vmatpush1.bf16.msra.mxu0 0
  %919 = vmatprep.subr.bf16.mxu0 0
  %920 = vmatpush1.bf16.msra.mxu0 0
  %921 = vmatprep.subr.bf16.mxu0 0
  %922 = vmatpush1.bf16.msra.mxu0 0
  %923 = vmatprep.mubr.bf16.mxu0 0
  %924 = vmatmul.mubr.bf16.gmra.mrb[0].mxu0 %v817
  %v925 = vpop.f32.mrb[0].mxu0
  %v926 = vadd.f32 0.0, %v925
  %v927 = vpop.f32.mrb[0].mxu0
  %v928 = vadd.f32 0.0, %v927
  %v929 = vpop.f32.mrb[0].mxu0
  %v930 = vpop.f32.mrb[0].mxu0
  %931 = vdwg.mxu0
  %v932 = vadd.f32 %v813, %v885
  %v933 = vadd.f32 %v814, %v887
  %v934 = vadd.f32 %v815, %v926
  %v935 = vadd.f32 %v816, %v928
  %v936 = vmul.f32 %v932, 0.5
  %v937 = vtanh.pop %v936
  %v938 = vmul.f32 %v937, 0.5
  %v939 = vadd.f32 %v938, 0.5
  %v940 = vmul.f32 %v933, 0.5
  %v941 = vtanh.pop %v940
  %v942 = vmul.f32 %v941, 0.5
  %v943 = vadd.f32 %v942, 0.5
  %v944 = vtanh.pop %v934
  %v945 = vmul.f32 %v935, 0.5
  %v946 = vtanh.pop %v945
  %v947 = vmul.f32 %v946, 0.5
  %v948 = vadd.f32 %v947, 0.5
  %v949 = vmul.f32 %v943, %v809
  %v950 = vmul.f32 %v939, %v944
  %v951 = vadd.f32 %v949, %v950
  %v952 = vtanh.pop %v951
  %v953 = vmul.f32 %v948, %v952
  %954 = vst [vmem:[#allocation3] sm:$0xff] %v953
  %955 = vst [vmem:[#allocation4] sm:$0xff] %v951
  %v956 = vpack.c.bf16 %v953, %v953
  %s957 = scalar_lea.vmem %s2, 20
  %958 = vst [vmem:[%s957] sm:$0xf] %v956
  %v959 = vld [vmem:[#allocation3] sm:$0xff]
  %v960 = vld [vmem:[#allocation4] sm:$0xff]
  %s961 = scalar_lea.vmem %s0, 96
  %v962 = vld [vmem:[%s961] sm:$0xff]
  %v963 = vld [vmem:[%s961 + $0x8] sm:$0xff]
  %v964 = vunpack.c.l.bf16 %v962
  %v965 = vunpack.c.h.bf16 %v962
  %v966 = vunpack.c.l.bf16 %v963
  %v967 = vunpack.c.h.bf16 %v963
  %v968 = vpack.c.bf16 %v959, %v959
  %v969 = vld [vmem:[#allocation2] sm:$0xff]
  %v970 = vld [vmem:[#allocation2 + $0x8] sm:$0xff]
  %v971 = vld [vmem:[#allocation2 + $0x10] sm:$0xff]
  %v972 = vld [vmem:[#allocation2 + $0x18] sm:$0xff]
  %v973 = vld [vmem:[#allocation2 + $0x20] sm:$0xff]
  %v974 = vld [vmem:[#allocation2 + $0x28] sm:$0xff]
  %v975 = vld [vmem:[#allocation2 + $0x30] sm:$0xff]
  %v976 = vld [vmem:[#allocation2 + $0x38] sm:$0xff]
  %v977 = vld [vmem:[#allocation2 + $0x40] sm:$0xff]
  %v978 = vld [vmem:[#allocation2 + $0x48] sm:$0xff]
  %v979 = vld [vmem:[#allocation2 + $0x50] sm:$0xff]
  %v980 = vld [vmem:[#allocation2 + $0x58] sm:$0xff]
  %v981 = vld [vmem:[#allocation2 + $0x60] sm:$0xff]
  %v982 = vld [vmem:[#allocation2 + $0x68] sm:$0xff]
  %v983 = vld [vmem:[#allocation2 + $0x70] sm:$0xff]
  %v984 = vld [vmem:[#allocation2 + $0x78] sm:$0xff]
  %v985 = vld [vmem:[#allocation2 + $0x80] sm:$0xff]
  %v986 = vld [vmem:[#allocation2 + $0x88] sm:$0xff]
  %v987 = vld [vmem:[#allocation2 + $0x90] sm:$0xff]
  %v988 = vld [vmem:[#allocation2 + $0x98] sm:$0xff]
  %v989 = vld [vmem:[#allocation2 + $0xa0] sm:$0xff]
  %v990 = vld [vmem:[#allocation2 + $0xa8] sm:$0xff]
  %v991 = vld [vmem:[#allocation2 + $0xb0] sm:$0xff]
  %v992 = vld [vmem:[#allocation2 + $0xb8] sm:$0xff]
  %v993 = vld [vmem:[#allocation2 + $0xc0] sm:$0xff]
  %v994 = vld [vmem:[#allocation2 + $0xc8] sm:$0xff]
  %v995 = vld [vmem:[#allocation2 + $0xd0] sm:$0xff]
  %v996 = vld [vmem:[#allocation2 + $0xd8] sm:$0xff]
  %v997 = vld [vmem:[#allocation2 + $0xe0] sm:$0xff]
  %v998 = vld [vmem:[#allocation2 + $0xe8] sm:$0xff]
  %v999 = vld [vmem:[#allocation2 + $0xf0] sm:$0xff]
  %v1000 = vld [vmem:[#allocation2 + $0xf8] sm:$0xff]
  %1001 = vmatprep.subr.bf16.mxu0 %v970
  %1002 = vmatpush1.bf16.msra.mxu0 %v969
  %1003 = vmatprep.subr.bf16.mxu0 %v974
  %1004 = vmatpush1.bf16.msra.mxu0 %v973
  %1005 = vmatprep.subr.bf16.mxu0 %v978
  %1006 = vmatpush1.bf16.msra.mxu0 %v977
  %1007 = vmatprep.subr.bf16.mxu0 %v982
  %1008 = vmatpush1.bf16.msra.mxu0 %v981
  %1009 = vmatprep.subr.bf16.mxu0 %v986
  %1010 = vmatpush1.bf16.msra.mxu0 %v985
  %1011 = vmatprep.subr.bf16.mxu0 %v990
  %1012 = vmatpush1.bf16.msra.mxu0 %v989
  %1013 = vmatprep.subr.bf16.mxu0 %v994
  %1014 = vmatpush1.bf16.msra.mxu0 %v993
  %1015 = vmatprep.subr.bf16.mxu0 %v998
  %1016 = vmatpush1.bf16.msra.mxu0 %v997
  %1017 = vmatprep.subr.bf16.mxu0 0
  %1018 = vmatpush1.bf16.msra.mxu0 0
  %1019 = vmatprep.subr.bf16.mxu0 0
  %1020 = vmatpush1.bf16.msra.mxu0 0
  %1021 = vmatprep.subr.bf16.mxu0 0
  %1022 = vmatpush1.bf16.msra.mxu0 0
  %1023 = vmatprep.subr.bf16.mxu0 0
  %1024 = vmatpush1.bf16.msra.mxu0 0
  %1025 = vmatprep.subr.bf16.mxu0 0
  %1026 = vmatpush1.bf16.msra.mxu0 0
  %1027 = vmatprep.subr.bf16.mxu0 0
  %1028 = vmatpush1.bf16.msra.mxu0 0
  %1029 = vmatprep.subr.bf16.mxu0 0
  %1030 = vmatpush1.bf16.msra.mxu0 0
  %1031 = vmatprep.subr.bf16.mxu0 0
  %1032 = vmatpush1.bf16.msra.mxu0 0
  %1033 = vmatprep.mubr.bf16.mxu0 0
  %1034 = vmatmul.mubr.bf16.gmra.mrb[0].mxu0 %v968
  %v1035 = vpop.f32.mrb[0].mxu0
  %v1036 = vadd.f32 0.0, %v1035
  %v1037 = vpop.f32.mrb[0].mxu0
  %v1038 = vadd.f32 0.0, %v1037
  %v1039 = vpop.f32.mrb[0].mxu0
  %v1040 = vpop.f32.mrb[0].mxu0
  %1041 = vdwg.mxu0
  %1042 = vmatprep.subr.bf16.mxu0 %v972
  %1043 = vmatpush1.bf16.msra.mxu0 %v971
  %1044 = vmatprep.subr.bf16.mxu0 %v976
  %1045 = vmatpush1.bf16.msra.mxu0 %v975
  %1046 = vmatprep.subr.bf16.mxu0 %v980
  %1047 = vmatpush1.bf16.msra.mxu0 %v979
  %1048 = vmatprep.subr.bf16.mxu0 %v984
  %1049 = vmatpush1.bf16.msra.mxu0 %v983
  %1050 = vmatprep.subr.bf16.mxu0 %v988
  %1051 = vmatpush1.bf16.msra.mxu0 %v987
  %1052 = vmatprep.subr.bf16.mxu0 %v992
  %1053 = vmatpush1.bf16.msra.mxu0 %v991
  %1054 = vmatprep.subr.bf16.mxu0 %v996
  %1055 = vmatpush1.bf16.msra.mxu0 %v995
  %1056 = vmatprep.subr.bf16.mxu0 %v1000
  %1057 = vmatpush1.bf16.msra.mxu0 %v999
  %1058 = vmatprep.subr.bf16.mxu0 0
  %1059 = vmatpush1.bf16.msra.mxu0 0
  %1060 = vmatprep.subr.bf16.mxu0 0
  %1061 = vmatpush1.bf16.msra.mxu0 0
  %1062 = vmatprep.subr.bf16.mxu0 0
  %1063 = vmatpush1.bf16.msra.mxu0 0
  %1064 = vmatprep.subr.bf16.mxu0 0
  %1065 = vmatpush1.bf16.msra.mxu0 0
  %1066 = vmatprep.subr.bf16.mxu0 0
  %1067 = vmatpush1.bf16.msra.mxu0 0
  %1068 = vmatprep.subr.bf16.mxu0 0
  %1069 = vmatpush1.bf16.msra.mxu0 0
  %1070 = vmatprep.subr.bf16.mxu0 0
  %1071 = vmatpush1.bf16.msra.mxu0 0
  %1072 = vmatprep.subr.bf16.mxu0 0
  %1073 = vmatpush1.bf16.msra.mxu0 0
  %1074 = vmatprep.mubr.bf16.mxu0 0
  %1075 = vmatmul.mubr.bf16.gmra.mrb[0].mxu0 %v968
  %v1076 = vpop.f32.mrb[0].mxu0
  %v1077 = vadd.f32 0.0, %v1076
  %v1078 = vpop.f32.mrb[0].mxu0
  %v1079 = vadd.f32 0.0, %v1078
  %v1080 = vpop.f32.mrb[0].mxu0
  %v1081 = vpop.f32.mrb[0].mxu0
  %1082 = vdwg.mxu0
  %v1083 = vadd.f32 %v964, %v1036
  %v1084 = vadd.f32 %v965, %v1038
  %v1085 = vadd.f32 %v966, %v1077
  %v1086 = vadd.f32 %v967, %v1079
  %v1087 = vmul.f32 %v1083, 0.5
  %v1088 = vtanh.pop %v1087
  %v1089 = vmul.f32 %v1088, 0.5
  %v1090 = vadd.f32 %v1089, 0.5
  %v1091 = vmul.f32 %v1084, 0.5
  %v1092 = vtanh.pop %v1091
  %v1093 = vmul.f32 %v1092, 0.5
  %v1094 = vadd.f32 %v1093, 0.5
  %v1095 = vtanh.pop %v1085
  %v1096 = vmul.f32 %v1086, 0.5
  %v1097 = vtanh.pop %v1096
  %v1098 = vmul.f32 %v1097, 0.5
  %v1099 = vadd.f32 %v1098, 0.5
  %v1100 = vmul.f32 %v1094, %v960
  %v1101 = vmul.f32 %v1090, %v1095
  %v1102 = vadd.f32 %v1100, %v1101
  %v1103 = vtanh.pop %v1102
  %v1104 = vmul.f32 %v1099, %v1103
  %1105 = vst [vmem:[#allocation3] sm:$0xff] %v1104
  %1106 = vst [vmem:[#allocation4] sm:$0xff] %v1102
  %v1107 = vpack.c.bf16 %v1104, %v1104
  %s1108 = scalar_lea.vmem %s2, 24
  %1109 = vst [vmem:[%s1108] sm:$0xf] %v1107
  %v1110 = vld [vmem:[#allocation3] sm:$0xff]
  %v1111 = vld [vmem:[#allocation4] sm:$0xff]
  %s1112 = scalar_lea.vmem %s0, 112
  %v1113 = vld [vmem:[%s1112] sm:$0xff]
  %v1114 = vld [vmem:[%s1112 + $0x8] sm:$0xff]
  %v1115 = vunpack.c.l.bf16 %v1113
  %v1116 = vunpack.c.h.bf16 %v1113
  %v1117 = vunpack.c.l.bf16 %v1114
  %v1118 = vunpack.c.h.bf16 %v1114
  %v1119 = vpack.c.bf16 %v1110, %v1110
  %v1120 = vld [vmem:[#allocation2] sm:$0xff]
  %v1121 = vld [vmem:[#allocation2 + $0x8] sm:$0xff]
  %v1122 = vld [vmem:[#allocation2 + $0x10] sm:$0xff]
  %v1123 = vld [vmem:[#allocation2 + $0x18] sm:$0xff]
  %v1124 = vld [vmem:[#allocation2 + $0x20] sm:$0xff]
  %v1125 = vld [vmem:[#allocation2 + $0x28] sm:$0xff]
  %v1126 = vld [vmem:[#allocation2 + $0x30] sm:$0xff]
  %v1127 = vld [vmem:[#allocation2 + $0x38] sm:$0xff]
  %v1128 = vld [vmem:[#allocation2 + $0x40] sm:$0xff]
  %v1129 = vld [vmem:[#allocation2 + $0x48] sm:$0xff]
  %v1130 = vld [vmem:[#allocation2 + $0x50] sm:$0xff]
  %v1131 = vld [vmem:[#allocation2 + $0x58] sm:$0xff]
  %v1132 = vld [vmem:[#allocation2 + $0x60] sm:$0xff]
  %v1133 = vld [vmem:[#allocation2 + $0x68] sm:$0xff]
  %v1134 = vld [vmem:[#allocation2 + $0x70] sm:$0xff]
  %v1135 = vld [vmem:[#allocation2 + $0x78] sm:$0xff]
  %v1136 = vld [vmem:[#allocation2 + $0x80] sm:$0xff]
  %v1137 = vld [vmem:[#allocation2 + $0x88] sm:$0xff]
  %v1138 = vld [vmem:[#allocation2 + $0x90] sm:$0xff]
  %v1139 = vld [vmem:[#allocation2 + $0x98] sm:$0xff]
  %v1140 = vld [vmem:[#allocation2 + $0xa0] sm:$0xff]
  %v1141 = vld [vmem:[#allocation2 + $0xa8] sm:$0xff]
  %v1142 = vld [vmem:[#allocation2 + $0xb0] sm:$0xff]
  %v1143 = vld [vmem:[#allocation2 + $0xb8] sm:$0xff]
  %v1144 = vld [vmem:[#allocation2 + $0xc0] sm:$0xff]
  %v1145 = vld [vmem:[#allocation2 + $0xc8] sm:$0xff]
  %v1146 = vld [vmem:[#allocation2 + $0xd0] sm:$0xff]
  %v1147 = vld [vmem:[#allocation2 + $0xd8] sm:$0xff]
  %v1148 = vld [vmem:[#allocation2 + $0xe0] sm:$0xff]
  %v1149 = vld [vmem:[#allocation2 + $0xe8] sm:$0xff]
  %v1150 = vld [vmem:[#allocation2 + $0xf0] sm:$0xff]
  %v1151 = vld [vmem:[#allocation2 + $0xf8] sm:$0xff]
  %1152 = vmatprep.subr.bf16.mxu0 %v1121
  %1153 = vmatpush1.bf16.msra.mxu0 %v1120
  %1154 = vmatprep.subr.bf16.mxu0 %v1125
  %1155 = vmatpush1.bf16.msra.mxu0 %v1124
  %1156 = vmatprep.subr.bf16.mxu0 %v1129
  %1157 = vmatpush1.bf16.msra.mxu0 %v1128
  %1158 = vmatprep.subr.bf16.mxu0 %v1133
  %1159 = vmatpush1.bf16.msra.mxu0 %v1132
  %1160 = vmatprep.subr.bf16.mxu0 %v1137
  %1161 = vmatpush1.bf16.msra.mxu0 %v1136
  %1162 = vmatprep.subr.bf16.mxu0 %v1141
  %1163 = vmatpush1.bf16.msra.mxu0 %v1140
  %1164 = vmatprep.subr.bf16.mxu0 %v1145
  %1165 = vmatpush1.bf16.msra.mxu0 %v1144
  %1166 = vmatprep.subr.bf16.mxu0 %v1149
  %1167 = vmatpush1.bf16.msra.mxu0 %v1148
  %1168 = vmatprep.subr.bf16.mxu0 0
  %1169 = vmatpush1.bf16.msra.mxu0 0
  %1170 = vmatprep.subr.bf16.mxu0 0
  %1171 = vmatpush1.bf16.msra.mxu0 0
  %1172 = vmatprep.subr.bf16.mxu0 0
  %1173 = vmatpush1.bf16.msra.mxu0 0
  %1174 = vmatprep.subr.bf16.mxu0 0
  %1175 = vmatpush1.bf16.msra.mxu0 0
  %1176 = vmatprep.subr.bf16.mxu0 0
  %1177 = vmatpush1.bf16.msra.mxu0 0
  %1178 = vmatprep.subr.bf16.mxu0 0
  %1179 = vmatpush1.bf16.msra.mxu0 0
  %1180 = vmatprep.subr.bf16.mxu0 0
  %1181 = vmatpush1.bf16.msra.mxu0 0
  %1182 = vmatprep.subr.bf16.mxu0 0
  %1183 = vmatpush1.bf16.msra.mxu0 0
  %1184 = vmatprep.mubr.bf16.mxu0 0
  %1185 = vmatmul.mubr.bf16.gmra.mrb[0].mxu0 %v1119
  %v1186 = vpop.f32.mrb[0].mxu0
  %v1187 = vadd.f32 0.0, %v1186
  %v1188 = vpop.f32.mrb[0].mxu0
  %v1189 = vadd.f32 0.0, %v1188
  %v1190 = vpop.f32.mrb[0].mxu0
  %v1191 = vpop.f32.mrb[0].mxu0
  %1192 = vdwg.mxu0
  %1193 = vmatprep.subr.bf16.mxu0 %v1123
  %1194 = vmatpush1.bf16.msra.mxu0 %v1122
  %1195 = vmatprep.subr.bf16.mxu0 %v1127
  %1196 = vmatpush1.bf16.msra.mxu0 %v1126
  %1197 = vmatprep.subr.bf16.mxu0 %v1131
  %1198 = vmatpush1.bf16.msra.mxu0 %v1130
  %1199 = vmatprep.subr.bf16.mxu0 %v1135
  %1200 = vmatpush1.bf16.msra.mxu0 %v1134
  %1201 = vmatprep.subr.bf16.mxu0 %v1139
  %1202 = vmatpush1.bf16.msra.mxu0 %v1138
  %1203 = vmatprep.subr.bf16.mxu0 %v1143
  %1204 = vmatpush1.bf16.msra.mxu0 %v1142
  %1205 = vmatprep.subr.bf16.mxu0 %v1147
  %1206 = vmatpush1.bf16.msra.mxu0 %v1146
  %1207 = vmatprep.subr.bf16.mxu0 %v1151
  %1208 = vmatpush1.bf16.msra.mxu0 %v1150
  %1209 = vmatprep.subr.bf16.mxu0 0
  %1210 = vmatpush1.bf16.msra.mxu0 0
  %1211 = vmatprep.subr.bf16.mxu0 0
  %1212 = vmatpush1.bf16.msra.mxu0 0
  %1213 = vmatprep.subr.bf16.mxu0 0
  %1214 = vmatpush1.bf16.msra.mxu0 0
  %1215 = vmatprep.subr.bf16.mxu0 0
  %1216 = vmatpush1.bf16.msra.mxu0 0
  %1217 = vmatprep.subr.bf16.mxu0 0
  %1218 = vmatpush1.bf16.msra.mxu0 0
  %1219 = vmatprep.subr.bf16.mxu0 0
  %1220 = vmatpush1.bf16.msra.mxu0 0
  %1221 = vmatprep.subr.bf16.mxu0 0
  %1222 = vmatpush1.bf16.msra.mxu0 0
  %1223 = vmatprep.subr.bf16.mxu0 0
  %1224 = vmatpush1.bf16.msra.mxu0 0
  %1225 = vmatprep.mubr.bf16.mxu0 0
  %1226 = vmatmul.mubr.bf16.gmra.mrb[0].mxu0 %v1119
  %v1227 = vpop.f32.mrb[0].mxu0
  %v1228 = vadd.f32 0.0, %v1227
  %v1229 = vpop.f32.mrb[0].mxu0
  %v1230 = vadd.f32 0.0, %v1229
  %v1231 = vpop.f32.mrb[0].mxu0
  %v1232 = vpop.f32.mrb[0].mxu0
  %1233 = vdwg.mxu0
  %v1234 = vadd.f32 %v1115, %v1187
  %v1235 = vadd.f32 %v1116, %v1189
  %v1236 = vadd.f32 %v1117, %v1228
  %v1237 = vadd.f32 %v1118, %v1230
  %v1238 = vmul.f32 %v1234, 0.5
  %v1239 = vtanh.pop %v1238
  %v1240 = vmul.f32 %v1239, 0.5
  %v1241 = vadd.f32 %v1240, 0.5
  %v1242 = vmul.f32 %v1235, 0.5
  %v1243 = vtanh.pop %v1242
  %v1244 = vmul.f32 %v1243, 0.5
  %v1245 = vadd.f32 %v1244, 0.5
  %v1246 = vtanh.pop %v1236
  %v1247 = vmul.f32 %v1237, 0.5
  %v1248 = vtanh.pop %v1247
  %v1249 = vmul.f32 %v1248, 0.5
  %v1250 = vadd.f32 %v1249, 0.5
  %v1251 = vmul.f32 %v1245, %v1111
  %v1252 = vmul.f32 %v1241, %v1246
  %v1253 = vadd.f32 %v1251, %v1252
  %v1254 = vtanh.pop %v1253
  %v1255 = vmul.f32 %v1250, %v1254
  %1256 = vst [vmem:[#allocation3] sm:$0xff] %v1255
  %1257 = vst [vmem:[#allocation4] sm:$0xff] %v1253
  %v1258 = vpack.c.bf16 %v1255, %v1255
  %s1259 = scalar_lea.vmem %s2, 28
  %1260 = vst [vmem:[%s1259] sm:$0xf] %v1258
  // Predicated region
  $region10: #{lstm_processor_forward.2} parent=0 // pred_check
    _
  $region11: #{lstm_processor_forward.2} parent=0 // pred_check_branch
    %1262 = sbr.rel (0) target = $region13
  $region12: #{lstm_processor_forward.2} parent=0 // pred_region
    _
  $region13: #{lstm_processor_forward.2} parent=0 // pred_fallthru
    _
  // Predicated region
  $region14: #{lstm_processor_forward.2} parent=0 // pred_check
    _
  $region15: #{lstm_processor_forward.2} parent=0 // pred_check_branch
    %1264 = sbr.rel (0) target = $region17
  $region16: #{lstm_processor_forward.2} parent=0 // pred_region
    _
  $region17: #{lstm_processor_forward.2} parent=0 // pred_fallthru
    _
  %1265 = vsyncmov [#allocation5]
  %s1266 = vpop.sfrf %1265
  %p1267 = scmp.eq.s32.totalorder %s1266, 0
  %p1268 = pneg %p1267
  %1270 = shalt.err (%p1268)

</llo_original>
